<compile_context>
chip_gen: v7x
topology: tpu7x:2x2x1
jax: 0.10.0
libtpu: 0.0.40
codegen_flags: <defaults>
</compile_context>

<pallas_src>
import numpy as np
import jax
import jax.numpy as jnp
from jax.experimental import pallas as pl
from jax.experimental.pallas import tpu as pltpu

Z_DIM = 100
Z_PAD = 128            # latent padded to a full lane group
H1, H2, H3 = 128, 256, 512
OUT = 28 * 28          # 784 (= 6*128 + 16)
OUT_PAD = 896          # 7*128: padded W4 width for clean MXU N tiles


def _round_up(x, m):
    return (x + m - 1) // m * m


def _vmem_capacity_bytes():
    try:
        info = pltpu.get_tpu_info()
        cap = getattr(info, "vmem_capacity_bytes", None)
        if cap:
            return int(cap)
    except Exception:
        pass
    return 64 << 20  # conservative (v7x-sized) default


_VMEM_CAP = _vmem_capacity_bytes()
# v5e/v6e have 128 MiB physical VMEM -> 64 MiB scoped limit is safe.
# v7x has only 64 MiB physical -> keep the scoped limit at 40 MiB.
_VMEM_LIMIT = (64 << 20) if _VMEM_CAP >= (96 << 20) else (40 << 20)
_DEFAULT_BLOCK_M = 1024

_BUFFER_WEIGHTS_OK = True  # flipped if this JAX rejects pl.Buffered(1)


def _generator_kernel(z_ref,
                      w1_ref, b1_ref,
                      w2_ref, b2_ref,
                      w3_ref, b3_ref,
                      w4_ref, b4_ref,
                      o_ref):
    # bf16 operands into the MXU, f32 accumulation, f32 bias/activation.
    h = jnp.dot(z_ref[...].astype(jnp.bfloat16), w1_ref[...],
                preferred_element_type=jnp.float32)
    h = jnp.maximum(h + b1_ref[...], 0.0)

    h = jnp.dot(h.astype(jnp.bfloat16), w2_ref[...],
                preferred_element_type=jnp.float32)
    h = jnp.maximum(h + b2_ref[...], 0.0)

    h = jnp.dot(h.astype(jnp.bfloat16), w3_ref[...],
                preferred_element_type=jnp.float32)
    h = jnp.maximum(h + b3_ref[...], 0.0)

    h = jnp.dot(h.astype(jnp.bfloat16), w4_ref[...],
                preferred_element_type=jnp.float32)
    # Bias / tanh / store only the 784 real columns (matmul stayed lane-dense
    # at the padded 896 width).
    o_ref[...] = jnp.tanh(h[:, :OUT] + b4_ref[...])


def _choose_tile(B, block_m):
    """Largest power-of-two batch tile (<= block_m) with <= 12.5% padding."""
    tm = 8
    for cand in (1024, 512, 256, 128, 64, 32, 16, 8):
        if cand > block_m:
            continue
        Bp = _round_up(B, cand)
        if (Bp - B) * 8 <= Bp:
            tm = cand
            break
    Bp = _round_up(B, tm)
    # If everything fits in one tile, split it so the "parallel" batch axis
    # can shard across both TensorCores on v7x (harmless on v5e/v6e).
    if Bp == tm and tm > 8:
        half = _round_up((tm + 1) // 2, 8)
        if half < tm:
            tm = half
            Bp = _round_up(B, tm)
    return tm, Bp


def _build_call(tm, Bp, weight_bytes, buffer_weights):
    const = lambda i: (0, 0)   # weights/biases resident across all grid steps
    if buffer_weights:
        wspec = lambda shape: pl.BlockSpec(shape, const,
                                           pipeline_mode=pl.Buffered(1))
    else:
        wspec = lambda shape: pl.BlockSpec(shape, const)

    flops_per_row = 2 * (Z_PAD * H1 + H1 * H2 + H2 * H3 + H3 * OUT_PAD)
    cost = pl.CostEstimate(
        flops=int(Bp) * int(flops_per_row),
        transcendentals=int(Bp) * OUT,
        bytes_accessed=int(weight_bytes) + int(Bp) * (Z_PAD + OUT) * 4,
    )

    return pl.pallas_call(
        _generator_kernel,
        out_shape=jax.ShapeDtypeStruct((Bp, OUT), jnp.float32),
        grid=(Bp // tm,),
        in_specs=[
            pl.BlockSpec((tm, Z_PAD), lambda i: (i, 0)),  # z tile (pipelined)
            wspec((Z_PAD, H1)),                           # W1 (bf16, row-padded)
            wspec((1, H1)),                               # b1
            wspec((H1, H2)),                              # W2
            wspec((1, H2)),                               # b2
            wspec((H2, H3)),                              # W3
            wspec((1, H3)),                               # b3
            wspec((H3, OUT_PAD)),                         # W4 (col-padded)
            wspec((1, OUT)),                              # b4 (unpadded, 784)
        ],
        out_specs=pl.BlockSpec((tm, OUT), lambda i: (i, 0)),
        compiler_params=pltpu.CompilerParams(
            dimension_semantics=("parallel",),
            vmem_limit_bytes=_VMEM_LIMIT,
        ),
        cost_estimate=cost,
    )


def generator_forward(z, params, *, block_m=_DEFAULT_BLOCK_M):
    """z: (B, Z_DIM) float32 -> (B, 1, 28, 28) float32 (NCHW, like PyTorch)."""
    global _BUFFER_WEIGHTS_OK
    B = z.shape[0]
    tm, Bp = _choose_tile(B, block_m)
    z_p = jnp.pad(z, ((0, Bp - B), (0, Z_PAD - Z_DIM)))

    weight_bytes = sum(int(np.prod(p.shape)) * p.dtype.itemsize for p in params)

    modes = (True, False) if _BUFFER_WEIGHTS_OK else (False,)
    flat = None
    for buffer_weights in modes:
        try:
            flat = _build_call(tm, Bp, weight_bytes, buffer_weights)(z_p, *params)
            break
        except Exception:
            if not buffer_weights:
                raise
            _BUFFER_WEIGHTS_OK = False  # retry with default double buffering

    out = flat if Bp == B else flat[:B]
    return out.reshape(B, 1, 28, 28)


def init_params(key):
    """Init mimicking PyTorch nn.Linear default (uniform +-1/sqrt(fan_in)).
    Weights stored as (in_features, out_features) in bf16; biases f32.
    W1 is zero-padded 100->128 input rows; W4 zero-padded 784->896 output
    columns (b4 stays at 784)."""
    dims = [(Z_DIM, H1), (H1, H2), (H2, H3), (H3, OUT)]
    params = []
    for fan_in, fan_out in dims:
        key, kw, kb = jax.random.split(key, 3)
        bound = 1.0 / np.sqrt(fan_in)
        w = jax.random.uniform(kw, (fan_in, fan_out), jnp.float32, -bound, bound)
        b = jax.random.uniform(kb, (1, fan_out), jnp.float32, -bound, bound)
        if fan_in == Z_DIM:
            w = jnp.pad(w, ((0, Z_PAD - Z_DIM), (0, 0)))
        if fan_out == OUT:
            w = jnp.pad(w, ((0, 0), (0, OUT_PAD - OUT)))
        params.extend([w.astype(jnp.bfloat16), b])
    return tuple(params)


def generator_reference(z, params):
    """Pure-JAX reference (same bf16-in / f32-accumulate math as the kernel)."""
    w1, b1, w2, b2, w3, b3, w4, b4 = params
    z_p = jnp.pad(z, ((0, 0), (0, Z_PAD - Z_DIM)))

    def lin(x, w, b):
        return jnp.dot(x.astype(jnp.bfloat16), w,
                       preferred_element_type=jnp.float32) + b

    h = jnp.maximum(lin(z_p, w1, b1), 0.0)
    h = jnp.maximum(lin(h, w2, b2), 0.0)
    h = jnp.maximum(lin(h, w3, b3), 0.0)
    h4 = jnp.dot(h.astype(jnp.bfloat16), w4, preferred_element_type=jnp.float32)
    out = jnp.tanh(h4[:, :OUT] + b4)
    return out.reshape(-1, 1, 28, 28)


if __name__ == "__main__":
    key = jax.random.PRNGKey(0)
    key, kz1, kz2, kz3 = jax.random.split(key, 4)
    params = init_params(key)

    # Small-batch check (matches the PyTorch module's typical usage).
    B = 2
    z = jax.random.normal(kz1, (B, Z_DIM), jnp.float32)
    out = jax.block_until_ready(generator_forward(z, params))
    assert out.shape == (B, 1, 28, 28), f"bad output shape {out.shape}"
    assert out.dtype == jnp.float32
    ref = jax.block_until_ready(generator_reference(z, params))
    np.testing.assert_allclose(np.asarray(out), np.asarray(ref),
                               rtol=1e-2, atol=1e-2)

    # Single-tile batch -> exercises the 2-way TensorCore split (grid = 2).
    B2 = 256
    z2 = jax.random.normal(kz2, (B2, Z_DIM), jnp.float32)
    out2 = jax.block_until_ready(generator_forward(z2, params))
    assert out2.shape == (B2, 1, 28, 28), f"bad output shape {out2.shape}"
    ref2 = jax.block_until_ready(generator_reference(z2, params))
    np.testing.assert_allclose(np.asarray(out2), np.asarray(ref2),
                               rtol=1e-2, atol=1e-2)

    # Non-tile-multiple batch -> exercises adaptive tile choice + batch pad.
    B3 = 1040
    z3 = jax.random.normal(kz3, (B3, Z_DIM), jnp.float32)
    out3 = jax.block_until_ready(generator_forward(z3, params))
    assert out3.shape == (B3, 1, 28, 28), f"bad output shape {out3.shape}"
    ref3 = jax.block_until_ready(generator_reference(z3, params))
    np.testing.assert_allclose(np.asarray(out3), np.asarray(ref3),
                               rtol=1e-2, atol=1e-2)

    print("KERNEL_OK")
</pallas_src>

<mosaic_0001>
module attributes {stable_mosaic.version = 11 : i64} {
  func.func @_generator_kernel(%arg0: i32, %arg1: memref<8x128xf32, #tpu.memory_space<vmem>>, %arg2: memref<128x128xbf16, #tpu.memory_space<vmem>>, %arg3: memref<1x128xf32, #tpu.memory_space<vmem>>, %arg4: memref<128x256xbf16, #tpu.memory_space<vmem>>, %arg5: memref<1x256xf32, #tpu.memory_space<vmem>>, %arg6: memref<256x512xbf16, #tpu.memory_space<vmem>>, %arg7: memref<1x512xf32, #tpu.memory_space<vmem>>, %arg8: memref<512x896xbf16, #tpu.memory_space<vmem>>, %arg9: memref<1x784xf32, #tpu.memory_space<vmem>>, %arg10: memref<8x784xf32, #tpu.memory_space<vmem>>) attributes {dimension_semantics = [#tpu.dimension_semantics<parallel>], iteration_bounds = array<i64: 1>, scalar_prefetch = 0 : i64, scratch_operands = 0 : i64, tpu.core_type = #tpu.core_type<tc>, window_params = [{transform_indices = @transform_0, window_bounds = array<i64: 8, 128>}, {pipeline_mode = #tpu.pipeline_mode<synchronous>, transform_indices = @transform_1, window_bounds = array<i64: 128, 128>}, {pipeline_mode = #tpu.pipeline_mode<synchronous>, transform_indices = @transform_2, window_bounds = array<i64: 1, 128>}, {pipeline_mode = #tpu.pipeline_mode<synchronous>, transform_indices = @transform_3, window_bounds = array<i64: 128, 256>}, {pipeline_mode = #tpu.pipeline_mode<synchronous>, transform_indices = @transform_4, window_bounds = array<i64: 1, 256>}, {pipeline_mode = #tpu.pipeline_mode<synchronous>, transform_indices = @transform_5, window_bounds = array<i64: 256, 512>}, {pipeline_mode = #tpu.pipeline_mode<synchronous>, transform_indices = @transform_6, window_bounds = array<i64: 1, 512>}, {pipeline_mode = #tpu.pipeline_mode<synchronous>, transform_indices = @transform_7, window_bounds = array<i64: 512, 896>}, {pipeline_mode = #tpu.pipeline_mode<synchronous>, transform_indices = @transform_8, window_bounds = array<i64: 1, 784>}, {transform_indices = @transform_9, window_bounds = array<i64: 8, 784>}]} {
    %c0 = arith.constant 0 : index
    %c0_0 = arith.constant 0 : index
    %0 = vector.load %arg1[%c0, %c0_0] : memref<8x128xf32, #tpu.memory_space<vmem>>, vector<8x128xf32>
    %1 = arith.truncf %0 : vector<8x128xf32> to vector<8x128xbf16>
    %c0_1 = arith.constant 0 : index
    %c0_2 = arith.constant 0 : index
    %2 = vector.load %arg2[%c0_1, %c0_2] : memref<128x128xbf16, #tpu.memory_space<vmem>>, vector<128x128xbf16>
    %cst = arith.constant dense<0.000000e+00> : vector<8x128xf32>
    %3 = tpu.matmul %1, %2, %cst {dimension_numbers = #tpu.dot_dimension_numbers<[1], [0], [0], [1], [0, 0, 1, 1], [], []>} : vector<8x128xbf16>, vector<128x128xbf16>, vector<8x128xf32> -> vector<8x128xf32>
    %c0_3 = arith.constant 0 : index
    %c0_4 = arith.constant 0 : index
    %4 = vector.load %arg3[%c0_3, %c0_4] : memref<1x128xf32, #tpu.memory_space<vmem>>, vector<1x128xf32>
    %5 = vector.broadcast %4 : vector<1x128xf32> to vector<8x128xf32>
    %6 = arith.addf %3, %5 : vector<8x128xf32>
    %cst_5 = arith.constant 0.000000e+00 : f32
    %7 = vector.broadcast %cst_5 : f32 to vector<8x128xf32>
    %8 = arith.maximumf %6, %7 : vector<8x128xf32>
    %9 = arith.truncf %8 : vector<8x128xf32> to vector<8x128xbf16>
    %c0_6 = arith.constant 0 : index
    %c0_7 = arith.constant 0 : index
    %10 = vector.load %arg4[%c0_6, %c0_7] : memref<128x256xbf16, #tpu.memory_space<vmem>>, vector<128x256xbf16>
    %cst_8 = arith.constant dense<0.000000e+00> : vector<8x256xf32>
    %11 = tpu.matmul %9, %10, %cst_8 {dimension_numbers = #tpu.dot_dimension_numbers<[1], [0], [0], [1], [0, 0, 1, 1], [], []>} : vector<8x128xbf16>, vector<128x256xbf16>, vector<8x256xf32> -> vector<8x256xf32>
    %c0_9 = arith.constant 0 : index
    %c0_10 = arith.constant 0 : index
    %12 = vector.load %arg5[%c0_9, %c0_10] : memref<1x256xf32, #tpu.memory_space<vmem>>, vector<1x256xf32>
    %13 = vector.broadcast %12 : vector<1x256xf32> to vector<8x256xf32>
    %14 = arith.addf %11, %13 : vector<8x256xf32>
    %cst_11 = arith.constant 0.000000e+00 : f32
    %15 = vector.broadcast %cst_11 : f32 to vector<8x256xf32>
    %16 = arith.maximumf %14, %15 : vector<8x256xf32>
    %17 = arith.truncf %16 : vector<8x256xf32> to vector<8x256xbf16>
    %c0_12 = arith.constant 0 : index
    %c0_13 = arith.constant 0 : index
    %18 = vector.load %arg6[%c0_12, %c0_13] : memref<256x512xbf16, #tpu.memory_space<vmem>>, vector<256x512xbf16>
    %cst_14 = arith.constant dense<0.000000e+00> : vector<8x512xf32>
    %19 = tpu.matmul %17, %18, %cst_14 {dimension_numbers = #tpu.dot_dimension_numbers<[1], [0], [0], [1], [0, 0, 1, 1], [], []>} : vector<8x256xbf16>, vector<256x512xbf16>, vector<8x512xf32> -> vector<8x512xf32>
    %c0_15 = arith.constant 0 : index
    %c0_16 = arith.constant 0 : index
    %20 = vector.load %arg7[%c0_15, %c0_16] : memref<1x512xf32, #tpu.memory_space<vmem>>, vector<1x512xf32>
    %21 = vector.broadcast %20 : vector<1x512xf32> to vector<8x512xf32>
    %22 = arith.addf %19, %21 : vector<8x512xf32>
    %cst_17 = arith.constant 0.000000e+00 : f32
    %23 = vector.broadcast %cst_17 : f32 to vector<8x512xf32>
    %24 = arith.maximumf %22, %23 : vector<8x512xf32>
    %25 = arith.truncf %24 : vector<8x512xf32> to vector<8x512xbf16>
    %c0_18 = arith.constant 0 : index
    %c0_19 = arith.constant 0 : index
    %26 = vector.load %arg8[%c0_18, %c0_19] : memref<512x896xbf16, #tpu.memory_space<vmem>>, vector<512x896xbf16>
    %cst_20 = arith.constant dense<0.000000e+00> : vector<8x896xf32>
    %27 = tpu.matmul %25, %26, %cst_20 {dimension_numbers = #tpu.dot_dimension_numbers<[1], [0], [0], [1], [0, 0, 1, 1], [], []>} : vector<8x512xbf16>, vector<512x896xbf16>, vector<8x896xf32> -> vector<8x896xf32>
    %28 = vector.extract_strided_slice %27 {offsets = [0, 0], sizes = [8, 784], strides = [1, 1]} : vector<8x896xf32> to vector<8x784xf32>
    %c0_21 = arith.constant 0 : index
    %c0_22 = arith.constant 0 : index
    %29 = vector.load %arg9[%c0_21, %c0_22] : memref<1x784xf32, #tpu.memory_space<vmem>>, vector<1x784xf32>
    %30 = vector.broadcast %29 : vector<1x784xf32> to vector<8x784xf32>
    %31 = arith.addf %28, %30 : vector<8x784xf32>
    %32 = math.tanh %31 : vector<8x784xf32>
    %c0_23 = arith.constant 0 : index
    %c0_24 = arith.constant 0 : index
    %33 = vector.load %arg10[%c0_23, %c0_24] : memref<8x784xf32, #tpu.memory_space<vmem>>, vector<8x784xf32>
    tpu.vector_store %arg10[%c0_23, %c0_24], %32 {strides = array<i32>} : memref<8x784xf32, #tpu.memory_space<vmem>>, vector<8x784xf32>,
    return
  }
  func.func @transform_0(%arg0: i32) -> (i32, i32) {
    %c0_i32 = arith.constant 0 : i32
    %c0_i32_0 = arith.constant 0 : i32
    return %arg0, %c0_i32 : i32, i32
  }
  func.func @transform_1(%arg0: i32) -> (i32, i32) {
    %c0_i32 = arith.constant 0 : i32
    %c0_i32_0 = arith.constant 0 : i32
    %c0_i32_1 = arith.constant 0 : i32
    return %c0_i32, %c0_i32_0 : i32, i32
  }
  func.func @transform_2(%arg0: i32) -> (i32, i32) {
    %c0_i32 = arith.constant 0 : i32
    %c0_i32_0 = arith.constant 0 : i32
    %c0_i32_1 = arith.constant 0 : i32
    return %c0_i32, %c0_i32_0 : i32, i32
  }
  func.func @transform_3(%arg0: i32) -> (i32, i32) {
    %c0_i32 = arith.constant 0 : i32
    %c0_i32_0 = arith.constant 0 : i32
    %c0_i32_1 = arith.constant 0 : i32
    return %c0_i32, %c0_i32_0 : i32, i32
  }
  func.func @transform_4(%arg0: i32) -> (i32, i32) {
    %c0_i32 = arith.constant 0 : i32
    %c0_i32_0 = arith.constant 0 : i32
    %c0_i32_1 = arith.constant 0 : i32
    return %c0_i32, %c0_i32_0 : i32, i32
  }
  func.func @transform_5(%arg0: i32) -> (i32, i32) {
    %c0_i32 = arith.constant 0 : i32
    %c0_i32_0 = arith.constant 0 : i32
    %c0_i32_1 = arith.constant 0 : i32
    return %c0_i32, %c0_i32_0 : i32, i32
  }
  func.func @transform_6(%arg0: i32) -> (i32, i32) {
    %c0_i32 = arith.constant 0 : i32
    %c0_i32_0 = arith.constant 0 : i32
    %c0_i32_1 = arith.constant 0 : i32
    return %c0_i32, %c0_i32_0 : i32, i32
  }
  func.func @transform_7(%arg0: i32) -> (i32, i32) {
    %c0_i32 = arith.constant 0 : i32
    %c0_i32_0 = arith.constant 0 : i32
    %c0_i32_1 = arith.constant 0 : i32
    return %c0_i32, %c0_i32_0 : i32, i32
  }
  func.func @transform_8(%arg0: i32) -> (i32, i32) {
    %c0_i32 = arith.constant 0 : i32
    %c0_i32_0 = arith.constant 0 : i32
    %c0_i32_1 = arith.constant 0 : i32
    return %c0_i32, %c0_i32_0 : i32, i32
  }
  func.func @transform_9(%arg0: i32) -> (i32, i32) {
    %c0_i32 = arith.constant 0 : i32
    %c0_i32_0 = arith.constant 0 : i32
    return %arg0, %c0_i32 : i32, i32
  }
}

module attributes {stable_mosaic.version = 11 : i64} {
  func.func @_generator_kernel(%arg0: i32, %arg1: memref<8x128xf32, #tpu.memory_space<vmem>>, %arg2: memref<128x128xbf16, #tpu.memory_space<vmem>>, %arg3: memref<1x128xf32, #tpu.memory_space<vmem>>, %arg4: memref<128x256xbf16, #tpu.memory_space<vmem>>, %arg5: memref<1x256xf32, #tpu.memory_space<vmem>>, %arg6: memref<256x512xbf16, #tpu.memory_space<vmem>>, %arg7: memref<1x512xf32, #tpu.memory_space<vmem>>, %arg8: memref<512x896xbf16, #tpu.memory_space<vmem>>, %arg9: memref<1x784xf32, #tpu.memory_space<vmem>>, %arg10: memref<8x784xf32, #tpu.memory_space<vmem>>) attributes {dimension_semantics = [#tpu.dimension_semantics<parallel>], iteration_bounds = array<i64: 1>, scalar_prefetch = 0 : i64, scratch_operands = 0 : i64, tpu.core_type = #tpu.core_type<tc>, window_params = [{transform_indices = @transform_0, window_bounds = array<i64: 8, 128>}, {pipeline_mode = #tpu.pipeline_mode<synchronous>, transform_indices = @transform_1, window_bounds = array<i64: 128, 128>}, {pipeline_mode = #tpu.pipeline_mode<synchronous>, transform_indices = @transform_2, window_bounds = array<i64: 1, 128>}, {pipeline_mode = #tpu.pipeline_mode<synchronous>, transform_indices = @transform_3, window_bounds = array<i64: 128, 256>}, {pipeline_mode = #tpu.pipeline_mode<synchronous>, transform_indices = @transform_4, window_bounds = array<i64: 1, 256>}, {pipeline_mode = #tpu.pipeline_mode<synchronous>, transform_indices = @transform_5, window_bounds = array<i64: 256, 512>}, {pipeline_mode = #tpu.pipeline_mode<synchronous>, transform_indices = @transform_6, window_bounds = array<i64: 1, 512>}, {pipeline_mode = #tpu.pipeline_mode<synchronous>, transform_indices = @transform_7, window_bounds = array<i64: 512, 896>}, {pipeline_mode = #tpu.pipeline_mode<synchronous>, transform_indices = @transform_8, window_bounds = array<i64: 1, 784>}, {transform_indices = @transform_9, window_bounds = array<i64: 8, 784>}]} {
    %c0 = arith.constant 0 : index
    %c0_0 = arith.constant 0 : index
    %0 = vector.load %arg1[%c0, %c0_0] : memref<8x128xf32, #tpu.memory_space<vmem>>, vector<8x128xf32>
    %1 = arith.truncf %0 : vector<8x128xf32> to vector<8x128xbf16>
    %c0_1 = arith.constant 0 : index
    %c0_2 = arith.constant 0 : index
    %2 = vector.load %arg2[%c0_1, %c0_2] : memref<128x128xbf16, #tpu.memory_space<vmem>>, vector<128x128xbf16>
    %cst = arith.constant dense<0.000000e+00> : vector<8x128xf32>
    %3 = tpu.matmul %1, %2, %cst {dimension_numbers = #tpu.dot_dimension_numbers<[1], [0], [0], [1], [0, 0, 1, 1], [], []>} : vector<8x128xbf16>, vector<128x128xbf16>, vector<8x128xf32> -> vector<8x128xf32>
    %c0_3 = arith.constant 0 : index
    %c0_4 = arith.constant 0 : index
    %4 = vector.load %arg3[%c0_3, %c0_4] : memref<1x128xf32, #tpu.memory_space<vmem>>, vector<1x128xf32>
    %5 = vector.broadcast %4 : vector<1x128xf32> to vector<8x128xf32>
    %6 = arith.addf %3, %5 : vector<8x128xf32>
    %cst_5 = arith.constant 0.000000e+00 : f32
    %7 = vector.broadcast %cst_5 : f32 to vector<8x128xf32>
    %8 = arith.maximumf %6, %7 : vector<8x128xf32>
    %9 = arith.truncf %8 : vector<8x128xf32> to vector<8x128xbf16>
    %c0_6 = arith.constant 0 : index
    %c0_7 = arith.constant 0 : index
    %10 = vector.load %arg4[%c0_6, %c0_7] : memref<128x256xbf16, #tpu.memory_space<vmem>>, vector<128x256xbf16>
    %cst_8 = arith.constant dense<0.000000e+00> : vector<8x256xf32>
    %11 = tpu.matmul %9, %10, %cst_8 {dimension_numbers = #tpu.dot_dimension_numbers<[1], [0], [0], [1], [0, 0, 1, 1], [], []>} : vector<8x128xbf16>, vector<128x256xbf16>, vector<8x256xf32> -> vector<8x256xf32>
    %c0_9 = arith.constant 0 : index
    %c0_10 = arith.constant 0 : index
    %12 = vector.load %arg5[%c0_9, %c0_10] : memref<1x256xf32, #tpu.memory_space<vmem>>, vector<1x256xf32>
    %13 = vector.broadcast %12 : vector<1x256xf32> to vector<8x256xf32>
    %14 = arith.addf %11, %13 : vector<8x256xf32>
    %cst_11 = arith.constant 0.000000e+00 : f32
    %15 = vector.broadcast %cst_11 : f32 to vector<8x256xf32>
    %16 = arith.maximumf %14, %15 : vector<8x256xf32>
    %17 = arith.truncf %16 : vector<8x256xf32> to vector<8x256xbf16>
    %c0_12 = arith.constant 0 : index
    %c0_13 = arith.constant 0 : index
    %18 = vector.load %arg6[%c0_12, %c0_13] : memref<256x512xbf16, #tpu.memory_space<vmem>>, vector<256x512xbf16>
    %cst_14 = arith.constant dense<0.000000e+00> : vector<8x512xf32>
    %19 = tpu.matmul %17, %18, %cst_14 {dimension_numbers = #tpu.dot_dimension_numbers<[1], [0], [0], [1], [0, 0, 1, 1], [], []>} : vector<8x256xbf16>, vector<256x512xbf16>, vector<8x512xf32> -> vector<8x512xf32>
    %c0_15 = arith.constant 0 : index
    %c0_16 = arith.constant 0 : index
    %20 = vector.load %arg7[%c0_15, %c0_16] : memref<1x512xf32, #tpu.memory_space<vmem>>, vector<1x512xf32>
    %21 = vector.broadcast %20 : vector<1x512xf32> to vector<8x512xf32>
    %22 = arith.addf %19, %21 : vector<8x512xf32>
    %cst_17 = arith.constant 0.000000e+00 : f32
    %23 = vector.broadcast %cst_17 : f32 to vector<8x512xf32>
    %24 = arith.maximumf %22, %23 : vector<8x512xf32>
    %25 = arith.truncf %24 : vector<8x512xf32> to vector<8x512xbf16>
    %c0_18 = arith.constant 0 : index
    %c0_19 = arith.constant 0 : index
    %26 = vector.load %arg8[%c0_18, %c0_19] : memref<512x896xbf16, #tpu.memory_space<vmem>>, vector<512x896xbf16>
    %cst_20 = arith.constant dense<0.000000e+00> : vector<8x896xf32>
    %27 = tpu.matmul %25, %26, %cst_20 {dimension_numbers = #tpu.dot_dimension_numbers<[1], [0], [0], [1], [0, 0, 1, 1], [], []>} : vector<8x512xbf16>, vector<512x896xbf16>, vector<8x896xf32> -> vector<8x896xf32>
    %28 = vector.extract_strided_slice %27 {offsets = [0, 0], sizes = [8, 784], strides = [1, 1]} : vector<8x896xf32> to vector<8x784xf32>
    %c0_21 = arith.constant 0 : index
    %c0_22 = arith.constant 0 : index
    %29 = vector.load %arg9[%c0_21, %c0_22] : memref<1x784xf32, #tpu.memory_space<vmem>>, vector<1x784xf32>
    %30 = vector.broadcast %29 : vector<1x784xf32> to vector<8x784xf32>
    %31 = arith.addf %28, %30 : vector<8x784xf32>
    %32 = math.tanh %31 : vector<8x784xf32>
    %c0_23 = arith.constant 0 : index
    %c0_24 = arith.constant 0 : index
    %33 = vector.load %arg10[%c0_23, %c0_24] : memref<8x784xf32, #tpu.memory_space<vmem>>, vector<8x784xf32>
    tpu.vector_store %arg10[%c0_23, %c0_24], %32 {strides = array<i32>} : memref<8x784xf32, #tpu.memory_space<vmem>>, vector<8x784xf32>,
    return
  }
  func.func @transform_0(%arg0: i32) -> (i32, i32) {
    %c0_i32 = arith.constant 0 : i32
    %c0_i32_0 = arith.constant 0 : i32
    return %arg0, %c0_i32 : i32, i32
  }
  func.func @transform_1(%arg0: i32) -> (i32, i32) {
    %c0_i32 = arith.constant 0 : i32
    %c0_i32_0 = arith.constant 0 : i32
    %c0_i32_1 = arith.constant 0 : i32
    return %c0_i32, %c0_i32_0 : i32, i32
  }
  func.func @transform_2(%arg0: i32) -> (i32, i32) {
    %c0_i32 = arith.constant 0 : i32
    %c0_i32_0 = arith.constant 0 : i32
    %c0_i32_1 = arith.constant 0 : i32
    return %c0_i32, %c0_i32_0 : i32, i32
  }
  func.func @transform_3(%arg0: i32) -> (i32, i32) {
    %c0_i32 = arith.constant 0 : i32
    %c0_i32_0 = arith.constant 0 : i32
    %c0_i32_1 = arith.constant 0 : i32
    return %c0_i32, %c0_i32_0 : i32, i32
  }
  func.func @transform_4(%arg0: i32) -> (i32, i32) {
    %c0_i32 = arith.constant 0 : i32
    %c0_i32_0 = arith.constant 0 : i32
    %c0_i32_1 = arith.constant 0 : i32
    return %c0_i32, %c0_i32_0 : i32, i32
  }
  func.func @transform_5(%arg0: i32) -> (i32, i32) {
    %c0_i32 = arith.constant 0 : i32
    %c0_i32_0 = arith.constant 0 : i32
    %c0_i32_1 = arith.constant 0 : i32
    return %c0_i32, %c0_i32_0 : i32, i32
  }
  func.func @transform_6(%arg0: i32) -> (i32, i32) {
    %c0_i32 = arith.constant 0 : i32
    %c0_i32_0 = arith.constant 0 : i32
    %c0_i32_1 = arith.constant 0 : i32
    return %c0_i32, %c0_i32_0 : i32, i32
  }
  func.func @transform_7(%arg0: i32) -> (i32, i32) {
    %c0_i32 = arith.constant 0 : i32
    %c0_i32_0 = arith.constant 0 : i32
    %c0_i32_1 = arith.constant 0 : i32
    return %c0_i32, %c0_i32_0 : i32, i32
  }
  func.func @transform_8(%arg0: i32) -> (i32, i32) {
    %c0_i32 = arith.constant 0 : i32
    %c0_i32_0 = arith.constant 0 : i32
    %c0_i32_1 = arith.constant 0 : i32
    return %c0_i32, %c0_i32_0 : i32, i32
  }
  func.func @transform_9(%arg0: i32) -> (i32, i32) {
    %c0_i32 = arith.constant 0 : i32
    %c0_i32_0 = arith.constant 0 : i32
    return %arg0, %c0_i32 : i32, i32
  }
}

</mosaic_0001>

<llo_original>
// kernel: tpu_custom_call.1
$region0: #{tpu_custom_call.1}
  #allocation0 [shape = 'u32[]', space=smem, size = 0x4, offset = 0x4, fixed_abs, tag = 'smem constant byte address 0x4 - core index']
  #allocation1 [shape = 'u32[144,128]{1,0:T(1,128)}', space=vmem, size = 0x12000, scoped, tag = 'internal scratch']
  %s0 = inlined_call_operand.hbm [shape: f32[8,128], index: 0, kind: input, shape index: {}]
  %s1 = inlined_call_operand.hbm [shape: bf16[128,128], index: 1, kind: input, shape index: {}]
  %s2 = inlined_call_operand.vmem [shape: f32[1,128], index: 2, kind: input, shape index: {}]
  %s3 = inlined_call_operand.hbm [shape: bf16[128,256], index: 3, kind: input, shape index: {}]
  %s4 = inlined_call_operand.vmem [shape: f32[1,256], index: 4, kind: input, shape index: {}]
  %s5 = inlined_call_operand.hbm [shape: bf16[256,512], index: 5, kind: input, shape index: {}]
  %s6 = inlined_call_operand.vmem [shape: f32[1,512], index: 6, kind: input, shape index: {}]
  %s7 = inlined_call_operand.hbm [shape: bf16[512,896], index: 7, kind: input, shape index: {}]
  %s8 = inlined_call_operand.vmem [shape: f32[1,784], index: 8, kind: input, shape index: {}]
  %s9 = inlined_call_operand.hbm [shape: f32[8,784], index: 9, kind: output, shape index: {}]
  %s10 = sld [smem:[#allocation0]]
  $region66: #{tpu_custom_call.1} parent=0
    _
  %s12 = ssub.s32 1, %s10
  %s13 = scalar_select 0, %s12, %s10
  $region1: #{tpu_custom_call.1} parent=0
    #allocation2 [shape = 'u8[4096]{0}', space=vmem, size = 0x1000, scoped, tag = 'input window, operand 0, single buffered']
    #allocation3 [shape = 's32[1]{0}', space=sflag, size = 0x4, scoped, tag = 'scoped memory for tpu_custom_call.1']
    #allocation4 [shape = 's32[1]{0}', space=sflag, size = 0x4, scoped, tag = 'scoped memory for tpu_custom_call.1']
    #allocation5 [shape = 'u8[32768]{0}', space=vmem, size = 0x8000, scoped, tag = 'input window, operand 1, single buffered']
    #allocation6 [shape = 's32[1]{0}', space=sflag, size = 0x4, scoped, tag = 'scoped memory for tpu_custom_call.1']
    #allocation7 [shape = 'u8[65536]{0}', space=vmem, size = 0x10000, scoped, tag = 'input window, operand 3, single buffered']
    #allocation8 [shape = 'u8[262144]{0}', space=vmem, size = 0x40000, scoped, tag = 'input window, operand 5, single buffered']
    #allocation9 [shape = 's32[1]{0}', space=sflag, size = 0x4, scoped, tag = 'scoped memory for tpu_custom_call.1']
    #allocation10 [shape = 'u8[917504]{0}', space=vmem, size = 0xe0000, scoped, tag = 'input window, operand 7, single buffered']
    #allocation11 [shape = 'u8[28672]{0}', space=vmem, size = 0x7000, scoped, tag = 'output window, operand 0, single buffered']
    %14 = vsyncpa [#allocation3], 0
    %15 = vsyncpa [#allocation6], 0
    %16 = vsyncpa [#allocation9], 0
    %17 = vsyncpa [#allocation4], 0
    // Predicated region
    $region2: #{tpu_custom_call.1} parent=1 // pred_check
      _
    $region3: #{tpu_custom_call.1} parent=1 // pred_check_branch
      %19 = sbr.rel (0) target = $region5
    $region4: #{tpu_custom_call.1} parent=1 // pred_region
      %s21 = ssub.s32 128, 128
      %22 = vsyncadd [#allocation3], %s21
      %s24 = sshll.u32 [#allocation2], 4
      %s25 = int_to_ptr.vmem [resolvable:$true] %s24
      %27 = dma.hbm_to_vmem [thread:$0]  %s0, 128, %s25, [#allocation3]
    $region5: #{tpu_custom_call.1} parent=1 // pred_fallthru
      _
    // Predicated region
    $region6: #{tpu_custom_call.1} parent=1 // pred_check
      _
    $region7: #{tpu_custom_call.1} parent=1 // pred_check_branch
      %29 = sbr.rel (0) target = $region9
    $region8: #{tpu_custom_call.1} parent=1 // pred_region
      %s31 = ssub.s32 1024, 1024
      %32 = vsyncadd [#allocation6], %s31
      %s33 = sshll.u32 [#allocation5], 4
      %s34 = int_to_ptr.vmem [resolvable:$true] %s33
      %39 = dma.hbm_to_vmem [thread:$0]  %s1, 1024, %s34, [#allocation6], 64, 64, 4
    $region9: #{tpu_custom_call.1} parent=1 // pred_fallthru
      _
    // Predicated region
    $region10: #{tpu_custom_call.1} parent=1 // pred_check
      _
    $region11: #{tpu_custom_call.1} parent=1 // pred_check_branch
      %41 = sbr.rel (0) target = $region13
    $region12: #{tpu_custom_call.1} parent=1 // pred_region
      _
    $region13: #{tpu_custom_call.1} parent=1 // pred_fallthru
      _
    // Predicated region
    $region14: #{tpu_custom_call.1} parent=1 // pred_check
      _
    $region15: #{tpu_custom_call.1} parent=1 // pred_check_branch
      %43 = sbr.rel (0) target = $region17
    $region16: #{tpu_custom_call.1} parent=1 // pred_region
      %s45 = ssub.s32 2048, 2048
      %46 = vsyncadd [#allocation6], %s45
      %s47 = sshll.u32 [#allocation7], 4
      %s48 = int_to_ptr.vmem [resolvable:$true] %s47
      %53 = dma.hbm_to_vmem [thread:$0]  %s3, 2048, %s48, [#allocation6], 128, 128, 8
    $region17: #{tpu_custom_call.1} parent=1 // pred_fallthru
      _
    // Predicated region
    $region18: #{tpu_custom_call.1} parent=1 // pred_check
      _
    $region19: #{tpu_custom_call.1} parent=1 // pred_check_branch
      %55 = sbr.rel (0) target = $region21
    $region20: #{tpu_custom_call.1} parent=1 // pred_region
      _
    $region21: #{tpu_custom_call.1} parent=1 // pred_fallthru
      _
    // Predicated region
    $region22: #{tpu_custom_call.1} parent=1 // pred_check
      _
    $region23: #{tpu_custom_call.1} parent=1 // pred_check_branch
      %57 = sbr.rel (0) target = $region25
    $region24: #{tpu_custom_call.1} parent=1 // pred_region
      %s59 = ssub.s32 8192, 8192
      %60 = vsyncadd [#allocation9], %s59
      %s61 = sshll.u32 [#allocation8], 4
      %s62 = int_to_ptr.vmem [resolvable:$true] %s61
      %67 = dma.hbm_to_vmem [thread:$0]  %s5, 8192, %s62, [#allocation9], 256, 256, 16
    $region25: #{tpu_custom_call.1} parent=1 // pred_fallthru
      _
    // Predicated region
    $region26: #{tpu_custom_call.1} parent=1 // pred_check
      _
    $region27: #{tpu_custom_call.1} parent=1 // pred_check_branch
      %69 = sbr.rel (0) target = $region29
    $region28: #{tpu_custom_call.1} parent=1 // pred_region
      _
    $region29: #{tpu_custom_call.1} parent=1 // pred_fallthru
      _
    // Predicated region
    $region30: #{tpu_custom_call.1} parent=1 // pred_check
      _
    $region31: #{tpu_custom_call.1} parent=1 // pred_check_branch
      %71 = sbr.rel (0) target = $region33
    $region32: #{tpu_custom_call.1} parent=1 // pred_region
      %s73 = ssub.s32 28672, 28672
      %74 = vsyncadd [#allocation9], %s73
      %s75 = sshll.u32 [#allocation10], 4
      %s76 = int_to_ptr.vmem [resolvable:$true] %s75
      %81 = dma.hbm_to_vmem [thread:$0]  %s7, 28672, %s76, [#allocation9], 448, 448, 28
    $region33: #{tpu_custom_call.1} parent=1 // pred_fallthru
      _
    // Predicated region
    $region34: #{tpu_custom_call.1} parent=1 // pred_check
      _
    $region35: #{tpu_custom_call.1} parent=1 // pred_check_branch
      %83 = sbr.rel (0) target = $region37
    $region36: #{tpu_custom_call.1} parent=1 // pred_region
      _
    $region37: #{tpu_custom_call.1} parent=1 // pred_fallthru
      _
    // Predicated region
    $region38: #{tpu_custom_call.1} parent=1 // pred_check
      _
    $region39: #{tpu_custom_call.1} parent=1 // pred_check_branch
      %85 = sbr.rel (0) target = $region41
    $region40: #{tpu_custom_call.1} parent=1 // pred_region
      %86 = dma.done [#allocation3], 128
    $region41: #{tpu_custom_call.1} parent=1 // pred_fallthru
      _
    // Predicated region
    $region42: #{tpu_custom_call.1} parent=1 // pred_check
      _
    $region43: #{tpu_custom_call.1} parent=1 // pred_check_branch
      %88 = sbr.rel (0) target = $region45
    $region44: #{tpu_custom_call.1} parent=1 // pred_region
      %89 = dma.done [#allocation6], 1024
    $region45: #{tpu_custom_call.1} parent=1 // pred_fallthru
      _
    // Predicated region
    $region46: #{tpu_custom_call.1} parent=1 // pred_check
      _
    $region47: #{tpu_custom_call.1} parent=1 // pred_check_branch
      %91 = sbr.rel (0) target = $region49
    $region48: #{tpu_custom_call.1} parent=1 // pred_region
      %92 = dma.done [#allocation6], 2048
    $region49: #{tpu_custom_call.1} parent=1 // pred_fallthru
      _
    // Predicated region
    $region50: #{tpu_custom_call.1} parent=1 // pred_check
      _
    $region51: #{tpu_custom_call.1} parent=1 // pred_check_branch
      %94 = sbr.rel (0) target = $region53
    $region52: #{tpu_custom_call.1} parent=1 // pred_region
      %95 = dma.done [#allocation9], 8192
    $region53: #{tpu_custom_call.1} parent=1 // pred_fallthru
      _
    // Predicated region
    $region54: #{tpu_custom_call.1} parent=1 // pred_check
      _
    $region55: #{tpu_custom_call.1} parent=1 // pred_check_branch
      %97 = sbr.rel (0) target = $region57
    $region56: #{tpu_custom_call.1} parent=1 // pred_region
      %98 = dma.done [#allocation9], 28672
    $region57: #{tpu_custom_call.1} parent=1 // pred_fallthru
      _
    %v100 = vld [vmem:[#allocation2] sm:$0xff]
    %v101 = vpack.c.bf16 %v100, %v100
    %v102 = vld [vmem:[#allocation5] sm:$0xf]
    %v103 = vld [vmem:[#allocation5 + $0x4] sm:$0xf]
    %v104 = vld [vmem:[#allocation5 + $0x8] sm:$0xf]
    %v105 = vld [vmem:[#allocation5 + $0xc] sm:$0xf]
    %v106 = vld [vmem:[#allocation5 + $0x10] sm:$0xf]
    %v107 = vld [vmem:[#allocation5 + $0x14] sm:$0xf]
    %v108 = vld [vmem:[#allocation5 + $0x18] sm:$0xf]
    %v109 = vld [vmem:[#allocation5 + $0x1c] sm:$0xf]
    %v110 = vld [vmem:[#allocation5 + $0x20] sm:$0xf]
    %v111 = vld [vmem:[#allocation5 + $0x24] sm:$0xf]
    %v112 = vld [vmem:[#allocation5 + $0x28] sm:$0xf]
    %v113 = vld [vmem:[#allocation5 + $0x2c] sm:$0xf]
    %v114 = vld [vmem:[#allocation5 + $0x30] sm:$0xf]
    %v115 = vld [vmem:[#allocation5 + $0x34] sm:$0xf]
    %v116 = vld [vmem:[#allocation5 + $0x38] sm:$0xf]
    %v117 = vld [vmem:[#allocation5 + $0x3c] sm:$0xf]
    %v118 = vld [vmem:[%s2] sm:$0x1]
    %v120 = vlaneseq
    %v121 = vshrl.u32 %v120, 7
    %v122 = vsub.s32 0, %v121
    %v123 = vrot.slane %v118, %v122
    %v141 = vunpack.c.l.b16 %v102
    %v142 = vunpack.c.l.b16 %v103
    %v143 = vunpack.c.l.b16 %v104
    %v144 = vunpack.c.l.b16 %v105
    %v145 = vunpack.c.l.b16 %v106
    %v146 = vunpack.c.l.b16 %v107
    %v147 = vunpack.c.l.b16 %v108
    %v148 = vunpack.c.l.b16 %v109
    %v149 = vunpack.c.l.b16 %v110
    %v150 = vunpack.c.l.b16 %v111
    %v151 = vunpack.c.l.b16 %v112
    %v152 = vunpack.c.l.b16 %v113
    %v153 = vunpack.c.l.b16 %v114
    %v154 = vunpack.c.l.b16 %v115
    %v155 = vunpack.c.l.b16 %v116
    %v156 = vunpack.c.l.b16 %v117
    %v157 = vpack.c.b16 %v142, %v141
    %v158 = vpack.c.b16 %v144, %v143
    %v159 = vpack.c.b16 %v146, %v145
    %v160 = vpack.c.b16 %v148, %v147
    %v161 = vpack.c.b16 %v150, %v149
    %v162 = vpack.c.b16 %v152, %v151
    %v163 = vpack.c.b16 %v154, %v153
    %v164 = vpack.c.b16 %v156, %v155
    %173 = vmatprep.subr.bf16.mxu0 0
    %174 = vmatpush1.bf16.msra.mxu0 %v157
    %175 = vmatprep.subr.bf16.mxu0 0
    %176 = vmatpush1.bf16.msra.mxu0 %v158
    %177 = vmatprep.subr.bf16.mxu0 0
    %178 = vmatpush1.bf16.msra.mxu0 %v159
    %179 = vmatprep.subr.bf16.mxu0 0
    %180 = vmatpush1.bf16.msra.mxu0 %v160
    %181 = vmatprep.subr.bf16.mxu0 0
    %182 = vmatpush1.bf16.msra.mxu0 %v161
    %183 = vmatprep.subr.bf16.mxu0 0
    %184 = vmatpush1.bf16.msra.mxu0 %v162
    %185 = vmatprep.subr.bf16.mxu0 0
    %186 = vmatpush1.bf16.msra.mxu0 %v163
    %187 = vmatprep.subr.bf16.mxu0 0
    %188 = vmatpush1.bf16.msra.mxu0 %v164
    %189 = vmatprep.subr.bf16.mxu0 0
    %190 = vmatpush1.bf16.msra.mxu0 0
    %191 = vmatprep.subr.bf16.mxu0 0
    %192 = vmatpush1.bf16.msra.mxu0 0
    %193 = vmatprep.subr.bf16.mxu0 0
    %194 = vmatpush1.bf16.msra.mxu0 0
    %195 = vmatprep.subr.bf16.mxu0 0
    %196 = vmatpush1.bf16.msra.mxu0 0
    %197 = vmatprep.subr.bf16.mxu0 0
    %198 = vmatpush1.bf16.msra.mxu0 0
    %199 = vmatprep.subr.bf16.mxu0 0
    %200 = vmatpush1.bf16.msra.mxu0 0
    %201 = vmatprep.subr.bf16.mxu0 0
    %202 = vmatpush1.bf16.msra.mxu0 0
    %203 = vmatprep.subr.bf16.mxu0 0
    %204 = vmatpush1.bf16.msra.mxu0 0
    %205 = vmatprep.mubr.bf16.mxu0 0
    %206 = vmatmul.mubr.bf16.gmra.mrb[0].mxu0 %v101
    %v207 = vpop.f32.mrb[0].mxu0
    %v208 = vadd.f32 %v123, %v207
    %v209 = vpop.f32.mrb[0].mxu0
    %v210 = vpop.f32.mrb[0].mxu0
    %v211 = vpop.f32.mrb[0].mxu0
    %212 = vdwg.mxu0
    %v213 = vmax.f32 %v208, 0.0
    %v214 = vpack.c.bf16 %v213, %v213
    %v215 = vld [vmem:[#allocation7] sm:$0xff]
    %v216 = vld [vmem:[#allocation7 + $0x8] sm:$0xff]
    %v217 = vld [vmem:[#allocation7 + $0x10] sm:$0xff]
    %v218 = vld [vmem:[#allocation7 + $0x18] sm:$0xff]
    %v219 = vld [vmem:[#allocation7 + $0x20] sm:$0xff]
    %v220 = vld [vmem:[#allocation7 + $0x28] sm:$0xff]
    %v221 = vld [vmem:[#allocation7 + $0x30] sm:$0xff]
    %v222 = vld [vmem:[#allocation7 + $0x38] sm:$0xff]
    %v223 = vld [vmem:[#allocation7 + $0x40] sm:$0xff]
    %v224 = vld [vmem:[#allocation7 + $0x48] sm:$0xff]
    %v225 = vld [vmem:[#allocation7 + $0x50] sm:$0xff]
    %v226 = vld [vmem:[#allocation7 + $0x58] sm:$0xff]
    %v227 = vld [vmem:[#allocation7 + $0x60] sm:$0xff]
    %v228 = vld [vmem:[#allocation7 + $0x68] sm:$0xff]
    %v229 = vld [vmem:[#allocation7 + $0x70] sm:$0xff]
    %v230 = vld [vmem:[#allocation7 + $0x78] sm:$0xff]
    %v231 = vld [vmem:[%s4] sm:$0x3]
    %v233 = vlaneseq
    %v234 = vshrl.u32 %v233, 7
    %v235 = vsub.s32 0, %v234
    %v236 = vrot.slane %v231, %v235
    %v237 = vlaneseq
    %v238 = vshrl.u32 %v237, 7
    %v239 = vsub.s32 1, %v238
    %v240 = vrot.slane %v231, %v239
    %v259 = vunpack.c.l.b16 %v215
    %v260 = vunpack.c.h.b16 %v215
    %v261 = vunpack.c.l.b16 %v216
    %v262 = vunpack.c.h.b16 %v216
    %v263 = vunpack.c.l.b16 %v217
    %v264 = vunpack.c.h.b16 %v217
    %v265 = vunpack.c.l.b16 %v218
    %v266 = vunpack.c.h.b16 %v218
    %v267 = vunpack.c.l.b16 %v219
    %v268 = vunpack.c.h.b16 %v219
    %v269 = vunpack.c.l.b16 %v220
    %v270 = vunpack.c.h.b16 %v220
    %v271 = vunpack.c.l.b16 %v221
    %v272 = vunpack.c.h.b16 %v221
    %v273 = vunpack.c.l.b16 %v222
    %v274 = vunpack.c.h.b16 %v222
    %v275 = vunpack.c.l.b16 %v223
    %v276 = vunpack.c.h.b16 %v223
    %v277 = vunpack.c.l.b16 %v224
    %v278 = vunpack.c.h.b16 %v224
    %v279 = vunpack.c.l.b16 %v225
    %v280 = vunpack.c.h.b16 %v225
    %v281 = vunpack.c.l.b16 %v226
    %v282 = vunpack.c.h.b16 %v226
    %v283 = vunpack.c.l.b16 %v227
    %v284 = vunpack.c.h.b16 %v227
    %v285 = vunpack.c.l.b16 %v228
    %v286 = vunpack.c.h.b16 %v228
    %v287 = vunpack.c.l.b16 %v229
    %v288 = vunpack.c.h.b16 %v229
    %v289 = vunpack.c.l.b16 %v230
    %v290 = vunpack.c.h.b16 %v230
    %v291 = vpack.c.b16 %v261, %v259
    %v292 = vpack.c.b16 %v262, %v260
    %v293 = vpack.c.b16 %v265, %v263
    %v294 = vpack.c.b16 %v266, %v264
    %v295 = vpack.c.b16 %v269, %v267
    %v296 = vpack.c.b16 %v270, %v268
    %v297 = vpack.c.b16 %v273, %v271
    %v298 = vpack.c.b16 %v274, %v272
    %v299 = vpack.c.b16 %v277, %v275
    %v300 = vpack.c.b16 %v278, %v276
    %v301 = vpack.c.b16 %v281, %v279
    %v302 = vpack.c.b16 %v282, %v280
    %v303 = vpack.c.b16 %v285, %v283
    %v304 = vpack.c.b16 %v286, %v284
    %v305 = vpack.c.b16 %v289, %v287
    %v306 = vpack.c.b16 %v290, %v288
    %323 = vmatprep.subr.bf16.mxu0 %v292
    %324 = vmatpush1.bf16.msra.mxu0 %v291
    %325 = vmatprep.subr.bf16.mxu0 %v294
    %326 = vmatpush1.bf16.msra.mxu0 %v293
    %327 = vmatprep.subr.bf16.mxu0 %v296
    %328 = vmatpush1.bf16.msra.mxu0 %v295
    %329 = vmatprep.subr.bf16.mxu0 %v298
    %330 = vmatpush1.bf16.msra.mxu0 %v297
    %331 = vmatprep.subr.bf16.mxu0 %v300
    %332 = vmatpush1.bf16.msra.mxu0 %v299
    %333 = vmatprep.subr.bf16.mxu0 %v302
    %334 = vmatpush1.bf16.msra.mxu0 %v301
    %335 = vmatprep.subr.bf16.mxu0 %v304
    %336 = vmatpush1.bf16.msra.mxu0 %v303
    %337 = vmatprep.subr.bf16.mxu0 %v306
    %338 = vmatpush1.bf16.msra.mxu0 %v305
    %339 = vmatprep.subr.bf16.mxu0 0
    %340 = vmatpush1.bf16.msra.mxu0 0
    %341 = vmatprep.subr.bf16.mxu0 0
    %342 = vmatpush1.bf16.msra.mxu0 0
    %343 = vmatprep.subr.bf16.mxu0 0
    %344 = vmatpush1.bf16.msra.mxu0 0
    %345 = vmatprep.subr.bf16.mxu0 0
    %346 = vmatpush1.bf16.msra.mxu0 0
    %347 = vmatprep.subr.bf16.mxu0 0
    %348 = vmatpush1.bf16.msra.mxu0 0
    %349 = vmatprep.subr.bf16.mxu0 0
    %350 = vmatpush1.bf16.msra.mxu0 0
    %351 = vmatprep.subr.bf16.mxu0 0
    %352 = vmatpush1.bf16.msra.mxu0 0
    %353 = vmatprep.subr.bf16.mxu0 0
    %354 = vmatpush1.bf16.msra.mxu0 0
    %355 = vmatprep.mubr.bf16.mxu0 0
    %356 = vmatmul.mubr.bf16.gmra.mrb[0].mxu0 %v214
    %v357 = vpop.f32.mrb[0].mxu0
    %v358 = vadd.f32 %v236, %v357
    %v359 = vpop.f32.mrb[0].mxu0
    %v360 = vadd.f32 %v240, %v359
    %v361 = vpop.f32.mrb[0].mxu0
    %v362 = vpop.f32.mrb[0].mxu0
    %363 = vdwg.mxu0
    %v364 = vmax.f32 %v358, 0.0
    %v365 = vmax.f32 %v360, 0.0
    %v366 = vpack.c.bf16 %v364, %v364
    %v367 = vpack.c.bf16 %v365, %v365
    %v368 = vld [vmem:[#allocation8] sm:$0xff]
    %v369 = vld [vmem:[#allocation8 + $0x8] sm:$0xff]
    %v370 = vld [vmem:[#allocation8 + $0x10] sm:$0xff]
    %v371 = vld [vmem:[#allocation8 + $0x18] sm:$0xff]
    %v372 = vld [vmem:[#allocation8 + $0x20] sm:$0xff]
    %v373 = vld [vmem:[#allocation8 + $0x28] sm:$0xff]
    %v374 = vld [vmem:[#allocation8 + $0x30] sm:$0xff]
    %v375 = vld [vmem:[#allocation8 + $0x38] sm:$0xff]
    %v376 = vld [vmem:[#allocation8 + $0x40] sm:$0xff]
    %v377 = vld [vmem:[#allocation8 + $0x48] sm:$0xff]
    %v378 = vld [vmem:[#allocation8 + $0x50] sm:$0xff]
    %v379 = vld [vmem:[#allocation8 + $0x58] sm:$0xff]
    %v380 = vld [vmem:[#allocation8 + $0x60] sm:$0xff]
    %v381 = vld [vmem:[#allocation8 + $0x68] sm:$0xff]
    %v382 = vld [vmem:[#allocation8 + $0x70] sm:$0xff]
    %v383 = vld [vmem:[#allocation8 + $0x78] sm:$0xff]
    %v384 = vld [vmem:[#allocation8 + $0x80] sm:$0xff]
    %v385 = vld [vmem:[#allocation8 + $0x88] sm:$0xff]
    %v386 = vld [vmem:[#allocation8 + $0x90] sm:$0xff]
    %v387 = vld [vmem:[#allocation8 + $0x98] sm:$0xff]
    %v388 = vld [vmem:[#allocation8 + $0xa0] sm:$0xff]
    %v389 = vld [vmem:[#allocation8 + $0xa8] sm:$0xff]
    %v390 = vld [vmem:[#allocation8 + $0xb0] sm:$0xff]
    %v391 = vld [vmem:[#allocation8 + $0xb8] sm:$0xff]
    %v392 = vld [vmem:[#allocation8 + $0xc0] sm:$0xff]
    %v393 = vld [vmem:[#allocation8 + $0xc8] sm:$0xff]
    %v394 = vld [vmem:[#allocation8 + $0xd0] sm:$0xff]
    %v395 = vld [vmem:[#allocation8 + $0xd8] sm:$0xff]
    %v396 = vld [vmem:[#allocation8 + $0xe0] sm:$0xff]
    %v397 = vld [vmem:[#allocation8 + $0xe8] sm:$0xff]
    %v398 = vld [vmem:[#allocation8 + $0xf0] sm:$0xff]
    %v399 = vld [vmem:[#allocation8 + $0xf8] sm:$0xff]
    %v400 = vld [vmem:[#allocation8 + $0x100] sm:$0xff]
    %v401 = vld [vmem:[#allocation8 + $0x108] sm:$0xff]
    %v402 = vld [vmem:[#allocation8 + $0x110] sm:$0xff]
    %v403 = vld [vmem:[#allocation8 + $0x118] sm:$0xff]
    %v404 = vld [vmem:[#allocation8 + $0x120] sm:$0xff]
    %v405 = vld [vmem:[#allocation8 + $0x128] sm:$0xff]
    %v406 = vld [vmem:[#allocation8 + $0x130] sm:$0xff]
    %v407 = vld [vmem:[#allocation8 + $0x138] sm:$0xff]
    %v408 = vld [vmem:[#allocation8 + $0x140] sm:$0xff]
    %v409 = vld [vmem:[#allocation8 + $0x148] sm:$0xff]
    %v410 = vld [vmem:[#allocation8 + $0x150] sm:$0xff]
    %v411 = vld [vmem:[#allocation8 + $0x158] sm:$0xff]
    %v412 = vld [vmem:[#allocation8 + $0x160] sm:$0xff]
    %v413 = vld [vmem:[#allocation8 + $0x168] sm:$0xff]
    %v414 = vld [vmem:[#allocation8 + $0x170] sm:$0xff]
    %v415 = vld [vmem:[#allocation8 + $0x178] sm:$0xff]
    %v416 = vld [vmem:[#allocation8 + $0x180] sm:$0xff]
    %v417 = vld [vmem:[#allocation8 + $0x188] sm:$0xff]
    %v418 = vld [vmem:[#allocation8 + $0x190] sm:$0xff]
    %v419 = vld [vmem:[#allocation8 + $0x198] sm:$0xff]
    %v420 = vld [vmem:[#allocation8 + $0x1a0] sm:$0xff]
    %v421 = vld [vmem:[#allocation8 + $0x1a8] sm:$0xff]
    %v422 = vld [vmem:[#allocation8 + $0x1b0] sm:$0xff]
    %v423 = vld [vmem:[#allocation8 + $0x1b8] sm:$0xff]
    %v424 = vld [vmem:[#allocation8 + $0x1c0] sm:$0xff]
    %v425 = vld [vmem:[#allocation8 + $0x1c8] sm:$0xff]
    %v426 = vld [vmem:[#allocation8 + $0x1d0] sm:$0xff]
    %v427 = vld [vmem:[#allocation8 + $0x1d8] sm:$0xff]
    %v428 = vld [vmem:[#allocation8 + $0x1e0] sm:$0xff]
    %v429 = vld [vmem:[#allocation8 + $0x1e8] sm:$0xff]
    %v430 = vld [vmem:[#allocation8 + $0x1f0] sm:$0xff]
    %v431 = vld [vmem:[#allocation8 + $0x1f8] sm:$0xff]
    %v432 = vld [vmem:[%s6] sm:$0xf]
    %v434 = vlaneseq
    %v435 = vshrl.u32 %v434, 7
    %v436 = vsub.s32 0, %v435
    %v437 = vrot.slane %v432, %v436
    %v438 = vlaneseq
    %v439 = vshrl.u32 %v438, 7
    %v440 = vsub.s32 1, %v439
    %v441 = vrot.slane %v432, %v440
    %v442 = vlaneseq
    %v443 = vshrl.u32 %v442, 7
    %v444 = vsub.s32 2, %v443
    %v445 = vrot.slane %v432, %v444
    %v446 = vlaneseq
    %v447 = vshrl.u32 %v446, 7
    %v448 = vsub.s32 3, %v447
    %v449 = vrot.slane %v432, %v448
    %v518 = vunpack.c.l.b16 %v368
    %v519 = vunpack.c.h.b16 %v368
    %v520 = vunpack.c.l.b16 %v369
    %v521 = vunpack.c.h.b16 %v369
    %v522 = vunpack.c.l.b16 %v370
    %v523 = vunpack.c.h.b16 %v370
    %v524 = vunpack.c.l.b16 %v371
    %v525 = vunpack.c.h.b16 %v371
    %v526 = vunpack.c.l.b16 %v372
    %v527 = vunpack.c.h.b16 %v372
    %v528 = vunpack.c.l.b16 %v373
    %v529 = vunpack.c.h.b16 %v373
    %v530 = vunpack.c.l.b16 %v374
    %v531 = vunpack.c.h.b16 %v374
    %v532 = vunpack.c.l.b16 %v375
    %v533 = vunpack.c.h.b16 %v375
    %v534 = vunpack.c.l.b16 %v376
    %v535 = vunpack.c.h.b16 %v376
    %v536 = vunpack.c.l.b16 %v377
    %v537 = vunpack.c.h.b16 %v377
    %v538 = vunpack.c.l.b16 %v378
    %v539 = vunpack.c.h.b16 %v378
    %v540 = vunpack.c.l.b16 %v379
    %v541 = vunpack.c.h.b16 %v379
    %v542 = vunpack.c.l.b16 %v380
    %v543 = vunpack.c.h.b16 %v380
    %v544 = vunpack.c.l.b16 %v381
    %v545 = vunpack.c.h.b16 %v381
    %v546 = vunpack.c.l.b16 %v382
    %v547 = vunpack.c.h.b16 %v382
    %v548 = vunpack.c.l.b16 %v383
    %v549 = vunpack.c.h.b16 %v383
    %v550 = vunpack.c.l.b16 %v384
    %v551 = vunpack.c.h.b16 %v384
    %v552 = vunpack.c.l.b16 %v385
    %v553 = vunpack.c.h.b16 %v385
    %v554 = vunpack.c.l.b16 %v386
    %v555 = vunpack.c.h.b16 %v386
    %v556 = vunpack.c.l.b16 %v387
    %v557 = vunpack.c.h.b16 %v387
    %v558 = vunpack.c.l.b16 %v388
    %v559 = vunpack.c.h.b16 %v388
    %v560 = vunpack.c.l.b16 %v389
    %v561 = vunpack.c.h.b16 %v389
    %v562 = vunpack.c.l.b16 %v390
    %v563 = vunpack.c.h.b16 %v390
    %v564 = vunpack.c.l.b16 %v391
    %v565 = vunpack.c.h.b16 %v391
    %v566 = vunpack.c.l.b16 %v392
    %v567 = vunpack.c.h.b16 %v392
    %v568 = vunpack.c.l.b16 %v393
    %v569 = vunpack.c.h.b16 %v393
    %v570 = vunpack.c.l.b16 %v394
    %v571 = vunpack.c.h.b16 %v394
    %v572 = vunpack.c.l.b16 %v395
    %v573 = vunpack.c.h.b16 %v395
    %v574 = vunpack.c.l.b16 %v396
    %v575 = vunpack.c.h.b16 %v396
    %v576 = vunpack.c.l.b16 %v397
    %v577 = vunpack.c.h.b16 %v397
    %v578 = vunpack.c.l.b16 %v398
    %v579 = vunpack.c.h.b16 %v398
    %v580 = vunpack.c.l.b16 %v399
    %v581 = vunpack.c.h.b16 %v399
    %v582 = vunpack.c.l.b16 %v400
    %v583 = vunpack.c.h.b16 %v400
    %v584 = vunpack.c.l.b16 %v401
    %v585 = vunpack.c.h.b16 %v401
    %v586 = vunpack.c.l.b16 %v402
    %v587 = vunpack.c.h.b16 %v402
    %v588 = vunpack.c.l.b16 %v403
    %v589 = vunpack.c.h.b16 %v403
    %v590 = vunpack.c.l.b16 %v404
    %v591 = vunpack.c.h.b16 %v404
    %v592 = vunpack.c.l.b16 %v405
    %v593 = vunpack.c.h.b16 %v405
    %v594 = vunpack.c.l.b16 %v406
    %v595 = vunpack.c.h.b16 %v406
    %v596 = vunpack.c.l.b16 %v407
    %v597 = vunpack.c.h.b16 %v407
    %v598 = vunpack.c.l.b16 %v408
    %v599 = vunpack.c.h.b16 %v408
    %v600 = vunpack.c.l.b16 %v409
    %v601 = vunpack.c.h.b16 %v409
    %v602 = vunpack.c.l.b16 %v410
    %v603 = vunpack.c.h.b16 %v410
    %v604 = vunpack.c.l.b16 %v411
    %v605 = vunpack.c.h.b16 %v411
    %v606 = vunpack.c.l.b16 %v412
    %v607 = vunpack.c.h.b16 %v412
    %v608 = vunpack.c.l.b16 %v413
    %v609 = vunpack.c.h.b16 %v413
    %v610 = vunpack.c.l.b16 %v414
    %v611 = vunpack.c.h.b16 %v414
    %v612 = vunpack.c.l.b16 %v415
    %v613 = vunpack.c.h.b16 %v415
    %v614 = vunpack.c.l.b16 %v416
    %v615 = vunpack.c.h.b16 %v416
    %v616 = vunpack.c.l.b16 %v417
    %v617 = vunpack.c.h.b16 %v417
    %v618 = vunpack.c.l.b16 %v418
    %v619 = vunpack.c.h.b16 %v418
    %v620 = vunpack.c.l.b16 %v419
    %v621 = vunpack.c.h.b16 %v419
    %v622 = vunpack.c.l.b16 %v420
    %v623 = vunpack.c.h.b16 %v420
    %v624 = vunpack.c.l.b16 %v421
    %v625 = vunpack.c.h.b16 %v421
    %v626 = vunpack.c.l.b16 %v422
    %v627 = vunpack.c.h.b16 %v422
    %v628 = vunpack.c.l.b16 %v423
    %v629 = vunpack.c.h.b16 %v423
    %v630 = vunpack.c.l.b16 %v424
    %v631 = vunpack.c.h.b16 %v424
    %v632 = vunpack.c.l.b16 %v425
    %v633 = vunpack.c.h.b16 %v425
    %v634 = vunpack.c.l.b16 %v426
    %v635 = vunpack.c.h.b16 %v426
    %v636 = vunpack.c.l.b16 %v427
    %v637 = vunpack.c.h.b16 %v427
    %v638 = vunpack.c.l.b16 %v428
    %v639 = vunpack.c.h.b16 %v428
    %v640 = vunpack.c.l.b16 %v429
    %v641 = vunpack.c.h.b16 %v429
    %v642 = vunpack.c.l.b16 %v430
    %v643 = vunpack.c.h.b16 %v430
    %v644 = vunpack.c.l.b16 %v431
    %v645 = vunpack.c.h.b16 %v431
    %v646 = vpack.c.b16 %v522, %v518
    %v647 = vpack.c.b16 %v523, %v519
    %v648 = vpack.c.b16 %v524, %v520
    %v649 = vpack.c.b16 %v525, %v521
    %v650 = vpack.c.b16 %v530, %v526
    %v651 = vpack.c.b16 %v531, %v527
    %v652 = vpack.c.b16 %v532, %v528
    %v653 = vpack.c.b16 %v533, %v529
    %v654 = vpack.c.b16 %v538, %v534
    %v655 = vpack.c.b16 %v539, %v535
    %v656 = vpack.c.b16 %v540, %v536
    %v657 = vpack.c.b16 %v541, %v537
    %v658 = vpack.c.b16 %v546, %v542
    %v659 = vpack.c.b16 %v547, %v543
    %v660 = vpack.c.b16 %v548, %v544
    %v661 = vpack.c.b16 %v549, %v545
    %v662 = vpack.c.b16 %v554, %v550
    %v663 = vpack.c.b16 %v555, %v551
    %v664 = vpack.c.b16 %v556, %v552
    %v665 = vpack.c.b16 %v557, %v553
    %v666 = vpack.c.b16 %v562, %v558
    %v667 = vpack.c.b16 %v563, %v559
    %v668 = vpack.c.b16 %v564, %v560
    %v669 = vpack.c.b16 %v565, %v561
    %v670 = vpack.c.b16 %v570, %v566
    %v671 = vpack.c.b16 %v571, %v567
    %v672 = vpack.c.b16 %v572, %v568
    %v673 = vpack.c.b16 %v573, %v569
    %v674 = vpack.c.b16 %v578, %v574
    %v675 = vpack.c.b16 %v579, %v575
    %v676 = vpack.c.b16 %v580, %v576
    %v677 = vpack.c.b16 %v581, %v577
    %v678 = vpack.c.b16 %v586, %v582
    %v679 = vpack.c.b16 %v587, %v583
    %v680 = vpack.c.b16 %v588, %v584
    %v681 = vpack.c.b16 %v589, %v585
    %v682 = vpack.c.b16 %v594, %v590
    %v683 = vpack.c.b16 %v595, %v591
    %v684 = vpack.c.b16 %v596, %v592
    %v685 = vpack.c.b16 %v597, %v593
    %v686 = vpack.c.b16 %v602, %v598
    %v687 = vpack.c.b16 %v603, %v599
    %v688 = vpack.c.b16 %v604, %v600
    %v689 = vpack.c.b16 %v605, %v601
    %v690 = vpack.c.b16 %v610, %v606
    %v691 = vpack.c.b16 %v611, %v607
    %v692 = vpack.c.b16 %v612, %v608
    %v693 = vpack.c.b16 %v613, %v609
    %v694 = vpack.c.b16 %v618, %v614
    %v695 = vpack.c.b16 %v619, %v615
    %v696 = vpack.c.b16 %v620, %v616
    %v697 = vpack.c.b16 %v621, %v617
    %v698 = vpack.c.b16 %v626, %v622
    %v699 = vpack.c.b16 %v627, %v623
    %v700 = vpack.c.b16 %v628, %v624
    %v701 = vpack.c.b16 %v629, %v625
    %v702 = vpack.c.b16 %v634, %v630
    %v703 = vpack.c.b16 %v635, %v631
    %v704 = vpack.c.b16 %v636, %v632
    %v705 = vpack.c.b16 %v637, %v633
    %v706 = vpack.c.b16 %v642, %v638
    %v707 = vpack.c.b16 %v643, %v639
    %v708 = vpack.c.b16 %v644, %v640
    %v709 = vpack.c.b16 %v645, %v641
    %774 = vmatprep.subr.bf16.mxu0 %v647
    %775 = vmatpush1.bf16.msra.mxu0 %v646
    %776 = vmatprep.subr.bf16.mxu0 %v651
    %777 = vmatpush1.bf16.msra.mxu0 %v650
    %778 = vmatprep.subr.bf16.mxu0 %v655
    %779 = vmatpush1.bf16.msra.mxu0 %v654
    %780 = vmatprep.subr.bf16.mxu0 %v659
    %781 = vmatpush1.bf16.msra.mxu0 %v658
    %782 = vmatprep.subr.bf16.mxu0 %v663
    %783 = vmatpush1.bf16.msra.mxu0 %v662
    %784 = vmatprep.subr.bf16.mxu0 %v667
    %785 = vmatpush1.bf16.msra.mxu0 %v666
    %786 = vmatprep.subr.bf16.mxu0 %v671
    %787 = vmatpush1.bf16.msra.mxu0 %v670
    %788 = vmatprep.subr.bf16.mxu0 %v675
    %789 = vmatpush1.bf16.msra.mxu0 %v674
    %790 = vmatprep.subr.bf16.mxu0 %v679
    %791 = vmatpush1.bf16.msra.mxu0 %v678
    %792 = vmatprep.subr.bf16.mxu0 %v683
    %793 = vmatpush1.bf16.msra.mxu0 %v682
    %794 = vmatprep.subr.bf16.mxu0 %v687
    %795 = vmatpush1.bf16.msra.mxu0 %v686
    %796 = vmatprep.subr.bf16.mxu0 %v691
    %797 = vmatpush1.bf16.msra.mxu0 %v690
    %798 = vmatprep.subr.bf16.mxu0 %v695
    %799 = vmatpush1.bf16.msra.mxu0 %v694
    %800 = vmatprep.subr.bf16.mxu0 %v699
    %801 = vmatpush1.bf16.msra.mxu0 %v698
    %802 = vmatprep.subr.bf16.mxu0 %v703
    %803 = vmatpush1.bf16.msra.mxu0 %v702
    %804 = vmatprep.subr.bf16.mxu0 %v707
    %805 = vmatpush1.bf16.msra.mxu0 %v706
    %806 = vmatprep.mubr.bf16.mxu0 %v367
    %807 = vmatmul.mubr.bf16.gmra.mrb[0].mxu0 %v366
    %v808 = vpop.f32.mrb[0].mxu0
    %v809 = vadd.f32 %v437, %v808
    %v810 = vpop.f32.mrb[0].mxu0
    %v811 = vadd.f32 %v441, %v810
    %v812 = vpop.f32.mrb[0].mxu0
    %v813 = vpop.f32.mrb[0].mxu0
    %814 = vdwg.mxu0
    %815 = vmatprep.subr.bf16.mxu0 %v649
    %816 = vmatpush1.bf16.msra.mxu0 %v648
    %817 = vmatprep.subr.bf16.mxu0 %v653
    %818 = vmatpush1.bf16.msra.mxu0 %v652
    %819 = vmatprep.subr.bf16.mxu0 %v657
    %820 = vmatpush1.bf16.msra.mxu0 %v656
    %821 = vmatprep.subr.bf16.mxu0 %v661
    %822 = vmatpush1.bf16.msra.mxu0 %v660
    %823 = vmatprep.subr.bf16.mxu0 %v665
    %824 = vmatpush1.bf16.msra.mxu0 %v664
    %825 = vmatprep.subr.bf16.mxu0 %v669
    %826 = vmatpush1.bf16.msra.mxu0 %v668
    %827 = vmatprep.subr.bf16.mxu0 %v673
    %828 = vmatpush1.bf16.msra.mxu0 %v672
    %829 = vmatprep.subr.bf16.mxu0 %v677
    %830 = vmatpush1.bf16.msra.mxu0 %v676
    %831 = vmatprep.subr.bf16.mxu0 %v681
    %832 = vmatpush1.bf16.msra.mxu0 %v680
    %833 = vmatprep.subr.bf16.mxu0 %v685
    %834 = vmatpush1.bf16.msra.mxu0 %v684
    %835 = vmatprep.subr.bf16.mxu0 %v689
    %836 = vmatpush1.bf16.msra.mxu0 %v688
    %837 = vmatprep.subr.bf16.mxu0 %v693
    %838 = vmatpush1.bf16.msra.mxu0 %v692
    %839 = vmatprep.subr.bf16.mxu0 %v697
    %840 = vmatpush1.bf16.msra.mxu0 %v696
    %841 = vmatprep.subr.bf16.mxu0 %v701
    %842 = vmatpush1.bf16.msra.mxu0 %v700
    %843 = vmatprep.subr.bf16.mxu0 %v705
    %844 = vmatpush1.bf16.msra.mxu0 %v704
    %845 = vmatprep.subr.bf16.mxu0 %v709
    %846 = vmatpush1.bf16.msra.mxu0 %v708
    %847 = vmatprep.mubr.bf16.mxu0 %v367
    %848 = vmatmul.mubr.bf16.gmra.mrb[0].mxu0 %v366
    %v849 = vpop.f32.mrb[0].mxu0
    %v850 = vadd.f32 %v445, %v849
    %v851 = vpop.f32.mrb[0].mxu0
    %v852 = vadd.f32 %v449, %v851
    %v853 = vpop.f32.mrb[0].mxu0
    %v854 = vpop.f32.mrb[0].mxu0
    %855 = vdwg.mxu0
    %v856 = vmax.f32 %v809, 0.0
    %v857 = vmax.f32 %v811, 0.0
    %v858 = vmax.f32 %v850, 0.0
    %v859 = vmax.f32 %v852, 0.0
    %v860 = vpack.c.bf16 %v856, %v856
    %v861 = vpack.c.bf16 %v857, %v857
    %v862 = vpack.c.bf16 %v858, %v858
    %v863 = vpack.c.bf16 %v859, %v859
    %v864 = vld [vmem:[#allocation10] sm:$0xff]
    %v865 = vld [vmem:[#allocation10 + $0x8] sm:$0xff]
    %v866 = vld [vmem:[#allocation10 + $0x10] sm:$0xff]
    %v867 = vld [vmem:[#allocation10 + $0x18] sm:$0xf]
    %v868 = vld [vmem:[#allocation10 + $0x1c] sm:$0xff]
    %v869 = vld [vmem:[#allocation10 + $0x24] sm:$0xff]
    %v870 = vld [vmem:[#allocation10 + $0x2c] sm:$0xff]
    %v871 = vld [vmem:[#allocation10 + $0x34] sm:$0xf]
    %v872 = vld [vmem:[#allocation10 + $0x38] sm:$0xff]
    %v873 = vld [vmem:[#allocation10 + $0x40] sm:$0xff]
    %v874 = vld [vmem:[#allocation10 + $0x48] sm:$0xff]
    %v875 = vld [vmem:[#allocation10 + $0x50] sm:$0xf]
    %v876 = vld [vmem:[#allocation10 + $0x54] sm:$0xff]
    %v877 = vld [vmem:[#allocation10 + $0x5c] sm:$0xff]
    %v878 = vld [vmem:[#allocation10 + $0x64] sm:$0xff]
    %v879 = vld [vmem:[#allocation10 + $0x6c] sm:$0xf]
    %v880 = vld [vmem:[#allocation10 + $0x70] sm:$0xff]
    %v881 = vld [vmem:[#allocation10 + $0x78] sm:$0xff]
    %v882 = vld [vmem:[#allocation10 + $0x80] sm:$0xff]
    %v883 = vld [vmem:[#allocation10 + $0x88] sm:$0xf]
    %v884 = vld [vmem:[#allocation10 + $0x8c] sm:$0xff]
    %v885 = vld [vmem:[#allocation10 + $0x94] sm:$0xff]
    %v886 = vld [vmem:[#allocation10 + $0x9c] sm:$0xff]
    %v887 = vld [vmem:[#allocation10 + $0xa4] sm:$0xf]
    %v888 = vld [vmem:[#allocation10 + $0xa8] sm:$0xff]
    %v889 = vld [vmem:[#allocation10 + $0xb0] sm:$0xff]
    %v890 = vld [vmem:[#allocation10 + $0xb8] sm:$0xff]
    %v891 = vld [vmem:[#allocation10 + $0xc0] sm:$0xf]
    %v892 = vld [vmem:[#allocation10 + $0xc4] sm:$0xff]
    %v893 = vld [vmem:[#allocation10 + $0xcc] sm:$0xff]
    %v894 = vld [vmem:[#allocation10 + $0xd4] sm:$0xff]
    %v895 = vld [vmem:[#allocation10 + $0xdc] sm:$0xf]
    %v896 = vld [vmem:[#allocation10 + $0xe0] sm:$0xff]
    %v897 = vld [vmem:[#allocation10 + $0xe8] sm:$0xff]
    %v898 = vld [vmem:[#allocation10 + $0xf0] sm:$0xff]
    %v899 = vld [vmem:[#allocation10 + $0xf8] sm:$0xf]
    %v900 = vld [vmem:[#allocation10 + $0xfc] sm:$0xff]
    %v901 = vld [vmem:[#allocation10 + $0x104] sm:$0xff]
    %v902 = vld [vmem:[#allocation10 + $0x10c] sm:$0xff]
    %v903 = vld [vmem:[#allocation10 + $0x114] sm:$0xf]
    %v904 = vld [vmem:[#allocation10 + $0x118] sm:$0xff]
    %v905 = vld [vmem:[#allocation10 + $0x120] sm:$0xff]
    %v906 = vld [vmem:[#allocation10 + $0x128] sm:$0xff]
    %v907 = vld [vmem:[#allocation10 + $0x130] sm:$0xf]
    %v908 = vld [vmem:[#allocation10 + $0x134] sm:$0xff]
    %v909 = vld [vmem:[#allocation10 + $0x13c] sm:$0xff]
    %v910 = vld [vmem:[#allocation10 + $0x144] sm:$0xff]
    %v911 = vld [vmem:[#allocation10 + $0x14c] sm:$0xf]
    %v912 = vld [vmem:[#allocation10 + $0x150] sm:$0xff]
    %v913 = vld [vmem:[#allocation10 + $0x158] sm:$0xff]
    %v914 = vld [vmem:[#allocation10 + $0x160] sm:$0xff]
    %v915 = vld [vmem:[#allocation10 + $0x168] sm:$0xf]
    %v916 = vld [vmem:[#allocation10 + $0x16c] sm:$0xff]
    %v917 = vld [vmem:[#allocation10 + $0x174] sm:$0xff]
    %v918 = vld [vmem:[#allocation10 + $0x17c] sm:$0xff]
    %v919 = vld [vmem:[#allocation10 + $0x184] sm:$0xf]
    %v920 = vld [vmem:[#allocation10 + $0x188] sm:$0xff]
    %v921 = vld [vmem:[#allocation10 + $0x190] sm:$0xff]
    %v922 = vld [vmem:[#allocation10 + $0x198] sm:$0xff]
    %v923 = vld [vmem:[#allocation10 + $0x1a0] sm:$0xf]
    %v924 = vld [vmem:[#allocation10 + $0x1a4] sm:$0xff]
    %v925 = vld [vmem:[#allocation10 + $0x1ac] sm:$0xff]
    %v926 = vld [vmem:[#allocation10 + $0x1b4] sm:$0xff]
    %v927 = vld [vmem:[#allocation10 + $0x1bc] sm:$0xf]
    %v928 = vld [vmem:[#allocation10 + $0x1c0] sm:$0xff]
    %v929 = vld [vmem:[#allocation10 + $0x1c8] sm:$0xff]
    %v930 = vld [vmem:[#allocation10 + $0x1d0] sm:$0xff]
    %v931 = vld [vmem:[#allocation10 + $0x1d8] sm:$0xf]
    %v932 = vld [vmem:[#allocation10 + $0x1dc] sm:$0xff]
    %v933 = vld [vmem:[#allocation10 + $0x1e4] sm:$0xff]
    %v934 = vld [vmem:[#allocation10 + $0x1ec] sm:$0xff]
    %v935 = vld [vmem:[#allocation10 + $0x1f4] sm:$0xf]
    %v936 = vld [vmem:[#allocation10 + $0x1f8] sm:$0xff]
    %v937 = vld [vmem:[#allocation10 + $0x200] sm:$0xff]
    %v938 = vld [vmem:[#allocation10 + $0x208] sm:$0xff]
    %v939 = vld [vmem:[#allocation10 + $0x210] sm:$0xf]
    %v940 = vld [vmem:[#allocation10 + $0x214] sm:$0xff]
    %v941 = vld [vmem:[#allocation10 + $0x21c] sm:$0xff]
    %v942 = vld [vmem:[#allocation10 + $0x224] sm:$0xff]
    %v943 = vld [vmem:[#allocation10 + $0x22c] sm:$0xf]
    %v944 = vld [vmem:[#allocation10 + $0x230] sm:$0xff]
    %v945 = vld [vmem:[#allocation10 + $0x238] sm:$0xff]
    %v946 = vld [vmem:[#allocation10 + $0x240] sm:$0xff]
    %v947 = vld [vmem:[#allocation10 + $0x248] sm:$0xf]
    %v948 = vld [vmem:[#allocation10 + $0x24c] sm:$0xff]
    %v949 = vld [vmem:[#allocation10 + $0x254] sm:$0xff]
    %v950 = vld [vmem:[#allocation10 + $0x25c] sm:$0xff]
    %v951 = vld [vmem:[#allocation10 + $0x264] sm:$0xf]
    %v952 = vld [vmem:[#allocation10 + $0x268] sm:$0xff]
    %v953 = vld [vmem:[#allocation10 + $0x270] sm:$0xff]
    %v954 = vld [vmem:[#allocation10 + $0x278] sm:$0xff]
    %v955 = vld [vmem:[#allocation10 + $0x280] sm:$0xf]
    %v956 = vld [vmem:[#allocation10 + $0x284] sm:$0xff]
    %v957 = vld [vmem:[#allocation10 + $0x28c] sm:$0xff]
    %v958 = vld [vmem:[#allocation10 + $0x294] sm:$0xff]
    %v959 = vld [vmem:[#allocation10 + $0x29c] sm:$0xf]
    %v960 = vld [vmem:[#allocation10 + $0x2a0] sm:$0xff]
    %v961 = vld [vmem:[#allocation10 + $0x2a8] sm:$0xff]
    %v962 = vld [vmem:[#allocation10 + $0x2b0] sm:$0xff]
    %v963 = vld [vmem:[#allocation10 + $0x2b8] sm:$0xf]
    %v964 = vld [vmem:[#allocation10 + $0x2bc] sm:$0xff]
    %v965 = vld [vmem:[#allocation10 + $0x2c4] sm:$0xff]
    %v966 = vld [vmem:[#allocation10 + $0x2cc] sm:$0xff]
    %v967 = vld [vmem:[#allocation10 + $0x2d4] sm:$0xf]
    %v968 = vld [vmem:[#allocation10 + $0x2d8] sm:$0xff]
    %v969 = vld [vmem:[#allocation10 + $0x2e0] sm:$0xff]
    %v970 = vld [vmem:[#allocation10 + $0x2e8] sm:$0xff]
    %v971 = vld [vmem:[#allocation10 + $0x2f0] sm:$0xf]
    %v972 = vld [vmem:[#allocation10 + $0x2f4] sm:$0xff]
    %v973 = vld [vmem:[#allocation10 + $0x2fc] sm:$0xff]
    %v974 = vld [vmem:[#allocation10 + $0x304] sm:$0xff]
    %v975 = vld [vmem:[#allocation10 + $0x30c] sm:$0xf]
    %v976 = vld [vmem:[#allocation10 + $0x310] sm:$0xff]
    %v977 = vld [vmem:[#allocation10 + $0x318] sm:$0xff]
    %v978 = vld [vmem:[#allocation10 + $0x320] sm:$0xff]
    %v979 = vld [vmem:[#allocation10 + $0x328] sm:$0xf]
    %v980 = vld [vmem:[#allocation10 + $0x32c] sm:$0xff]
    %v981 = vld [vmem:[#allocation10 + $0x334] sm:$0xff]
    %v982 = vld [vmem:[#allocation10 + $0x33c] sm:$0xff]
    %v983 = vld [vmem:[#allocation10 + $0x344] sm:$0xf]
    %v984 = vld [vmem:[#allocation10 + $0x348] sm:$0xff]
    %v985 = vld [vmem:[#allocation10 + $0x350] sm:$0xff]
    %v986 = vld [vmem:[#allocation10 + $0x358] sm:$0xff]
    %v987 = vld [vmem:[#allocation10 + $0x360] sm:$0xf]
    %v988 = vld [vmem:[#allocation10 + $0x364] sm:$0xff]
    %v989 = vld [vmem:[#allocation10 + $0x36c] sm:$0xff]
    %v990 = vld [vmem:[#allocation10 + $0x374] sm:$0xff]
    %v991 = vld [vmem:[#allocation10 + $0x37c] sm:$0xf]
    %v992 = vld [vmem:[#allocation10 + $0x380] sm:$0xff]
    %v993 = vld [vmem:[#allocation10 + $0x388] sm:$0xff]
    %v994 = vld [vmem:[#allocation10 + $0x390] sm:$0xff]
    %v995 = vld [vmem:[#allocation10 + $0x398] sm:$0xf]
    %v996 = vld [vmem:[#allocation10 + $0x39c] sm:$0xff]
    %v997 = vld [vmem:[#allocation10 + $0x3a4] sm:$0xff]
    %v998 = vld [vmem:[#allocation10 + $0x3ac] sm:$0xff]
    %v999 = vld [vmem:[#allocation10 + $0x3b4] sm:$0xf]
    %v1000 = vld [vmem:[#allocation10 + $0x3b8] sm:$0xff]
    %v1001 = vld [vmem:[#allocation10 + $0x3c0] sm:$0xff]
    %v1002 = vld [vmem:[#allocation10 + $0x3c8] sm:$0xff]
    %v1003 = vld [vmem:[#allocation10 + $0x3d0] sm:$0xf]
    %v1004 = vld [vmem:[#allocation10 + $0x3d4] sm:$0xff]
    %v1005 = vld [vmem:[#allocation10 + $0x3dc] sm:$0xff]
    %v1006 = vld [vmem:[#allocation10 + $0x3e4] sm:$0xff]
    %v1007 = vld [vmem:[#allocation10 + $0x3ec] sm:$0xf]
    %v1008 = vld [vmem:[#allocation10 + $0x3f0] sm:$0xff]
    %v1009 = vld [vmem:[#allocation10 + $0x3f8] sm:$0xff]
    %v1010 = vld [vmem:[#allocation10 + $0x400] sm:$0xff]
    %v1011 = vld [vmem:[#allocation10 + $0x408] sm:$0xf]
    %v1012 = vld [vmem:[#allocation10 + $0x40c] sm:$0xff]
    %v1013 = vld [vmem:[#allocation10 + $0x414] sm:$0xff]
    %v1014 = vld [vmem:[#allocation10 + $0x41c] sm:$0xff]
    %v1015 = vld [vmem:[#allocation10 + $0x424] sm:$0xf]
    %v1016 = vld [vmem:[#allocation10 + $0x428] sm:$0xff]
    %v1017 = vld [vmem:[#allocation10 + $0x430] sm:$0xff]
    %v1018 = vld [vmem:[#allocation10 + $0x438] sm:$0xff]
    %v1019 = vld [vmem:[#allocation10 + $0x440] sm:$0xf]
    %v1020 = vld [vmem:[#allocation10 + $0x444] sm:$0xff]
    %v1021 = vld [vmem:[#allocation10 + $0x44c] sm:$0xff]
    %v1022 = vld [vmem:[#allocation10 + $0x454] sm:$0xff]
    %v1023 = vld [vmem:[#allocation10 + $0x45c] sm:$0xf]
    %v1024 = vld [vmem:[#allocation10 + $0x460] sm:$0xff]
    %v1025 = vld [vmem:[#allocation10 + $0x468] sm:$0xff]
    %v1026 = vld [vmem:[#allocation10 + $0x470] sm:$0xff]
    %v1027 = vld [vmem:[#allocation10 + $0x478] sm:$0xf]
    %v1028 = vld [vmem:[#allocation10 + $0x47c] sm:$0xff]
    %v1029 = vld [vmem:[#allocation10 + $0x484] sm:$0xff]
    %v1030 = vld [vmem:[#allocation10 + $0x48c] sm:$0xff]
    %v1031 = vld [vmem:[#allocation10 + $0x494] sm:$0xf]
    %v1032 = vld [vmem:[#allocation10 + $0x498] sm:$0xff]
    %v1033 = vld [vmem:[#allocation10 + $0x4a0] sm:$0xff]
    %v1034 = vld [vmem:[#allocation10 + $0x4a8] sm:$0xff]
    %v1035 = vld [vmem:[#allocation10 + $0x4b0] sm:$0xf]
    %v1036 = vld [vmem:[#allocation10 + $0x4b4] sm:$0xff]
    %v1037 = vld [vmem:[#allocation10 + $0x4bc] sm:$0xff]
    %v1038 = vld [vmem:[#allocation10 + $0x4c4] sm:$0xff]
    %v1039 = vld [vmem:[#allocation10 + $0x4cc] sm:$0xf]
    %v1040 = vld [vmem:[#allocation10 + $0x4d0] sm:$0xff]
    %v1041 = vld [vmem:[#allocation10 + $0x4d8] sm:$0xff]
    %v1042 = vld [vmem:[#allocation10 + $0x4e0] sm:$0xff]
    %v1043 = vld [vmem:[#allocation10 + $0x4e8] sm:$0xf]
    %v1044 = vld [vmem:[#allocation10 + $0x4ec] sm:$0xff]
    %v1045 = vld [vmem:[#allocation10 + $0x4f4] sm:$0xff]
    %v1046 = vld [vmem:[#allocation10 + $0x4fc] sm:$0xff]
    %v1047 = vld [vmem:[#allocation10 + $0x504] sm:$0xf]
    %v1048 = vld [vmem:[#allocation10 + $0x508] sm:$0xff]
    %v1049 = vld [vmem:[#allocation10 + $0x510] sm:$0xff]
    %v1050 = vld [vmem:[#allocation10 + $0x518] sm:$0xff]
    %v1051 = vld [vmem:[#allocation10 + $0x520] sm:$0xf]
    %v1052 = vld [vmem:[#allocation10 + $0x524] sm:$0xff]
    %v1053 = vld [vmem:[#allocation10 + $0x52c] sm:$0xff]
    %v1054 = vld [vmem:[#allocation10 + $0x534] sm:$0xff]
    %v1055 = vld [vmem:[#allocation10 + $0x53c] sm:$0xf]
    %v1056 = vld [vmem:[#allocation10 + $0x540] sm:$0xff]
    %v1057 = vld [vmem:[#allocation10 + $0x548] sm:$0xff]
    %v1058 = vld [vmem:[#allocation10 + $0x550] sm:$0xff]
    %v1059 = vld [vmem:[#allocation10 + $0x558] sm:$0xf]
    %v1060 = vld [vmem:[#allocation10 + $0x55c] sm:$0xff]
    %v1061 = vld [vmem:[#allocation10 + $0x564] sm:$0xff]
    %v1062 = vld [vmem:[#allocation10 + $0x56c] sm:$0xff]
    %v1063 = vld [vmem:[#allocation10 + $0x574] sm:$0xf]
    %v1064 = vld [vmem:[#allocation10 + $0x578] sm:$0xff]
    %v1065 = vld [vmem:[#allocation10 + $0x580] sm:$0xff]
    %v1066 = vld [vmem:[#allocation10 + $0x588] sm:$0xff]
    %v1067 = vld [vmem:[#allocation10 + $0x590] sm:$0xf]
    %v1068 = vld [vmem:[#allocation10 + $0x594] sm:$0xff]
    %v1069 = vld [vmem:[#allocation10 + $0x59c] sm:$0xff]
    %v1070 = vld [vmem:[#allocation10 + $0x5a4] sm:$0xff]
    %v1071 = vld [vmem:[#allocation10 + $0x5ac] sm:$0xf]
    %v1072 = vld [vmem:[#allocation10 + $0x5b0] sm:$0xff]
    %v1073 = vld [vmem:[#allocation10 + $0x5b8] sm:$0xff]
    %v1074 = vld [vmem:[#allocation10 + $0x5c0] sm:$0xff]
    %v1075 = vld [vmem:[#allocation10 + $0x5c8] sm:$0xf]
    %v1076 = vld [vmem:[#allocation10 + $0x5cc] sm:$0xff]
    %v1077 = vld [vmem:[#allocation10 + $0x5d4] sm:$0xff]
    %v1078 = vld [vmem:[#allocation10 + $0x5dc] sm:$0xff]
    %v1079 = vld [vmem:[#allocation10 + $0x5e4] sm:$0xf]
    %v1080 = vld [vmem:[#allocation10 + $0x5e8] sm:$0xff]
    %v1081 = vld [vmem:[#allocation10 + $0x5f0] sm:$0xff]
    %v1082 = vld [vmem:[#allocation10 + $0x5f8] sm:$0xff]
    %v1083 = vld [vmem:[#allocation10 + $0x600] sm:$0xf]
    %v1084 = vld [vmem:[#allocation10 + $0x604] sm:$0xff]
    %v1085 = vld [vmem:[#allocation10 + $0x60c] sm:$0xff]
    %v1086 = vld [vmem:[#allocation10 + $0x614] sm:$0xff]
    %v1087 = vld [vmem:[#allocation10 + $0x61c] sm:$0xf]
    %v1088 = vld [vmem:[#allocation10 + $0x620] sm:$0xff]
    %v1089 = vld [vmem:[#allocation10 + $0x628] sm:$0xff]
    %v1090 = vld [vmem:[#allocation10 + $0x630] sm:$0xff]
    %v1091 = vld [vmem:[#allocation10 + $0x638] sm:$0xf]
    %v1092 = vld [vmem:[#allocation10 + $0x63c] sm:$0xff]
    %v1093 = vld [vmem:[#allocation10 + $0x644] sm:$0xff]
    %v1094 = vld [vmem:[#allocation10 + $0x64c] sm:$0xff]
    %v1095 = vld [vmem:[#allocation10 + $0x654] sm:$0xf]
    %v1096 = vld [vmem:[#allocation10 + $0x658] sm:$0xff]
    %v1097 = vld [vmem:[#allocation10 + $0x660] sm:$0xff]
    %v1098 = vld [vmem:[#allocation10 + $0x668] sm:$0xff]
    %v1099 = vld [vmem:[#allocation10 + $0x670] sm:$0xf]
    %v1100 = vld [vmem:[#allocation10 + $0x674] sm:$0xff]
    %v1101 = vld [vmem:[#allocation10 + $0x67c] sm:$0xff]
    %v1102 = vld [vmem:[#allocation10 + $0x684] sm:$0xff]
    %v1103 = vld [vmem:[#allocation10 + $0x68c] sm:$0xf]
    %v1104 = vld [vmem:[#allocation10 + $0x690] sm:$0xff]
    %v1105 = vld [vmem:[#allocation10 + $0x698] sm:$0xff]
    %v1106 = vld [vmem:[#allocation10 + $0x6a0] sm:$0xff]
    %v1107 = vld [vmem:[#allocation10 + $0x6a8] sm:$0xf]
    %v1108 = vld [vmem:[#allocation10 + $0x6ac] sm:$0xff]
    %v1109 = vld [vmem:[#allocation10 + $0x6b4] sm:$0xff]
    %v1110 = vld [vmem:[#allocation10 + $0x6bc] sm:$0xff]
    %v1111 = vld [vmem:[#allocation10 + $0x6c4] sm:$0xf]
    %v1112 = vld [vmem:[#allocation10 + $0x6c8] sm:$0xff]
    %v1113 = vld [vmem:[#allocation10 + $0x6d0] sm:$0xff]
    %v1114 = vld [vmem:[#allocation10 + $0x6d8] sm:$0xff]
    %v1115 = vld [vmem:[#allocation10 + $0x6e0] sm:$0xf]
    %v1116 = vld [vmem:[#allocation10 + $0x6e4] sm:$0xff]
    %v1117 = vld [vmem:[#allocation10 + $0x6ec] sm:$0xff]
    %v1118 = vld [vmem:[#allocation10 + $0x6f4] sm:$0xff]
    %v1119 = vld [vmem:[#allocation10 + $0x6fc] sm:$0xf]
    %v1376 = vunpack.c.l.b16 %v864
    %v1377 = vunpack.c.h.b16 %v864
    %v1378 = vunpack.c.l.b16 %v865
    %v1379 = vunpack.c.h.b16 %v865
    %v1380 = vunpack.c.l.b16 %v866
    %v1381 = vunpack.c.h.b16 %v866
    %v1382 = vunpack.c.l.b16 %v867
    %v1383 = vunpack.c.l.b16 %v868
    %v1384 = vunpack.c.h.b16 %v868
    %v1385 = vunpack.c.l.b16 %v869
    %v1386 = vunpack.c.h.b16 %v869
    %v1387 = vunpack.c.l.b16 %v870
    %v1388 = vunpack.c.h.b16 %v870
    %v1389 = vunpack.c.l.b16 %v871
    %v1390 = vunpack.c.l.b16 %v872
    %v1391 = vunpack.c.h.b16 %v872
    %v1392 = vunpack.c.l.b16 %v873
    %v1393 = vunpack.c.h.b16 %v873
    %v1394 = vunpack.c.l.b16 %v874
    %v1395 = vunpack.c.h.b16 %v874
    %v1396 = vunpack.c.l.b16 %v875
    %v1397 = vunpack.c.l.b16 %v876
    %v1398 = vunpack.c.h.b16 %v876
    %v1399 = vunpack.c.l.b16 %v877
    %v1400 = vunpack.c.h.b16 %v877
    %v1401 = vunpack.c.l.b16 %v878
    %v1402 = vunpack.c.h.b16 %v878
    %v1403 = vunpack.c.l.b16 %v879
    %v1404 = vunpack.c.l.b16 %v880
    %v1405 = vunpack.c.h.b16 %v880
    %v1406 = vunpack.c.l.b16 %v881
    %v1407 = vunpack.c.h.b16 %v881
    %v1408 = vunpack.c.l.b16 %v882
    %v1409 = vunpack.c.h.b16 %v882
    %v1410 = vunpack.c.l.b16 %v883
    %v1411 = vunpack.c.l.b16 %v884
    %v1412 = vunpack.c.h.b16 %v884
    %v1413 = vunpack.c.l.b16 %v885
    %v1414 = vunpack.c.h.b16 %v885
    %v1415 = vunpack.c.l.b16 %v886
    %v1416 = vunpack.c.h.b16 %v886
    %v1417 = vunpack.c.l.b16 %v887
    %v1418 = vunpack.c.l.b16 %v888
    %v1419 = vunpack.c.h.b16 %v888
    %v1420 = vunpack.c.l.b16 %v889
    %v1421 = vunpack.c.h.b16 %v889
    %v1422 = vunpack.c.l.b16 %v890
    %v1423 = vunpack.c.h.b16 %v890
    %v1424 = vunpack.c.l.b16 %v891
    %v1425 = vunpack.c.l.b16 %v892
    %v1426 = vunpack.c.h.b16 %v892
    %v1427 = vunpack.c.l.b16 %v893
    %v1428 = vunpack.c.h.b16 %v893
    %v1429 = vunpack.c.l.b16 %v894
    %v1430 = vunpack.c.h.b16 %v894
    %v1431 = vunpack.c.l.b16 %v895
    %v1432 = vunpack.c.l.b16 %v896
    %v1433 = vunpack.c.h.b16 %v896
    %v1434 = vunpack.c.l.b16 %v897
    %v1435 = vunpack.c.h.b16 %v897
    %v1436 = vunpack.c.l.b16 %v898
    %v1437 = vunpack.c.h.b16 %v898
    %v1438 = vunpack.c.l.b16 %v899
    %v1439 = vunpack.c.l.b16 %v900
    %v1440 = vunpack.c.h.b16 %v900
    %v1441 = vunpack.c.l.b16 %v901
    %v1442 = vunpack.c.h.b16 %v901
    %v1443 = vunpack.c.l.b16 %v902
    %v1444 = vunpack.c.h.b16 %v902
    %v1445 = vunpack.c.l.b16 %v903
    %v1446 = vunpack.c.l.b16 %v904
    %v1447 = vunpack.c.h.b16 %v904
    %v1448 = vunpack.c.l.b16 %v905
    %v1449 = vunpack.c.h.b16 %v905
    %v1450 = vunpack.c.l.b16 %v906
    %v1451 = vunpack.c.h.b16 %v906
    %v1452 = vunpack.c.l.b16 %v907
    %v1453 = vunpack.c.l.b16 %v908
    %v1454 = vunpack.c.h.b16 %v908
    %v1455 = vunpack.c.l.b16 %v909
    %v1456 = vunpack.c.h.b16 %v909
    %v1457 = vunpack.c.l.b16 %v910
    %v1458 = vunpack.c.h.b16 %v910
    %v1459 = vunpack.c.l.b16 %v911
    %v1460 = vunpack.c.l.b16 %v912
    %v1461 = vunpack.c.h.b16 %v912
    %v1462 = vunpack.c.l.b16 %v913
    %v1463 = vunpack.c.h.b16 %v913
    %v1464 = vunpack.c.l.b16 %v914
    %v1465 = vunpack.c.h.b16 %v914
    %v1466 = vunpack.c.l.b16 %v915
    %v1467 = vunpack.c.l.b16 %v916
    %v1468 = vunpack.c.h.b16 %v916
    %v1469 = vunpack.c.l.b16 %v917
    %v1470 = vunpack.c.h.b16 %v917
    %v1471 = vunpack.c.l.b16 %v918
    %v1472 = vunpack.c.h.b16 %v918
    %v1473 = vunpack.c.l.b16 %v919
    %v1474 = vunpack.c.l.b16 %v920
    %v1475 = vunpack.c.h.b16 %v920
    %v1476 = vunpack.c.l.b16 %v921
    %v1477 = vunpack.c.h.b16 %v921
    %v1478 = vunpack.c.l.b16 %v922
    %v1479 = vunpack.c.h.b16 %v922
    %v1480 = vunpack.c.l.b16 %v923
    %v1481 = vunpack.c.l.b16 %v924
    %v1482 = vunpack.c.h.b16 %v924
    %v1483 = vunpack.c.l.b16 %v925
    %v1484 = vunpack.c.h.b16 %v925
    %v1485 = vunpack.c.l.b16 %v926
    %v1486 = vunpack.c.h.b16 %v926
    %v1487 = vunpack.c.l.b16 %v927
    %v1488 = vunpack.c.l.b16 %v928
    %v1489 = vunpack.c.h.b16 %v928
    %v1490 = vunpack.c.l.b16 %v929
    %v1491 = vunpack.c.h.b16 %v929
    %v1492 = vunpack.c.l.b16 %v930
    %v1493 = vunpack.c.h.b16 %v930
    %v1494 = vunpack.c.l.b16 %v931
    %v1495 = vunpack.c.l.b16 %v932
    %v1496 = vunpack.c.h.b16 %v932
    %v1497 = vunpack.c.l.b16 %v933
    %v1498 = vunpack.c.h.b16 %v933
    %v1499 = vunpack.c.l.b16 %v934
    %v1500 = vunpack.c.h.b16 %v934
    %v1501 = vunpack.c.l.b16 %v935
    %v1502 = vunpack.c.l.b16 %v936
    %v1503 = vunpack.c.h.b16 %v936
    %v1504 = vunpack.c.l.b16 %v937
    %v1505 = vunpack.c.h.b16 %v937
    %v1506 = vunpack.c.l.b16 %v938
    %v1507 = vunpack.c.h.b16 %v938
    %v1508 = vunpack.c.l.b16 %v939
    %v1509 = vunpack.c.l.b16 %v940
    %v1510 = vunpack.c.h.b16 %v940
    %v1511 = vunpack.c.l.b16 %v941
    %v1512 = vunpack.c.h.b16 %v941
    %v1513 = vunpack.c.l.b16 %v942
    %v1514 = vunpack.c.h.b16 %v942
    %v1515 = vunpack.c.l.b16 %v943
    %v1516 = vunpack.c.l.b16 %v944
    %v1517 = vunpack.c.h.b16 %v944
    %v1518 = vunpack.c.l.b16 %v945
    %v1519 = vunpack.c.h.b16 %v945
    %v1520 = vunpack.c.l.b16 %v946
    %v1521 = vunpack.c.h.b16 %v946
    %v1522 = vunpack.c.l.b16 %v947
    %v1523 = vunpack.c.l.b16 %v948
    %v1524 = vunpack.c.h.b16 %v948
    %v1525 = vunpack.c.l.b16 %v949
    %v1526 = vunpack.c.h.b16 %v949
    %v1527 = vunpack.c.l.b16 %v950
    %v1528 = vunpack.c.h.b16 %v950
    %v1529 = vunpack.c.l.b16 %v951
    %v1530 = vunpack.c.l.b16 %v952
    %v1531 = vunpack.c.h.b16 %v952
    %v1532 = vunpack.c.l.b16 %v953
    %v1533 = vunpack.c.h.b16 %v953
    %v1534 = vunpack.c.l.b16 %v954
    %v1535 = vunpack.c.h.b16 %v954
    %v1536 = vunpack.c.l.b16 %v955
    %v1537 = vunpack.c.l.b16 %v956
    %v1538 = vunpack.c.h.b16 %v956
    %v1539 = vunpack.c.l.b16 %v957
    %v1540 = vunpack.c.h.b16 %v957
    %v1541 = vunpack.c.l.b16 %v958
    %v1542 = vunpack.c.h.b16 %v958
    %v1543 = vunpack.c.l.b16 %v959
    %v1544 = vunpack.c.l.b16 %v960
    %v1545 = vunpack.c.h.b16 %v960
    %v1546 = vunpack.c.l.b16 %v961
    %v1547 = vunpack.c.h.b16 %v961
    %v1548 = vunpack.c.l.b16 %v962
    %v1549 = vunpack.c.h.b16 %v962
    %v1550 = vunpack.c.l.b16 %v963
    %v1551 = vunpack.c.l.b16 %v964
    %v1552 = vunpack.c.h.b16 %v964
    %v1553 = vunpack.c.l.b16 %v965
    %v1554 = vunpack.c.h.b16 %v965
    %v1555 = vunpack.c.l.b16 %v966
    %v1556 = vunpack.c.h.b16 %v966
    %v1557 = vunpack.c.l.b16 %v967
    %v1558 = vunpack.c.l.b16 %v968
    %v1559 = vunpack.c.h.b16 %v968
    %v1560 = vunpack.c.l.b16 %v969
    %v1561 = vunpack.c.h.b16 %v969
    %v1562 = vunpack.c.l.b16 %v970
    %v1563 = vunpack.c.h.b16 %v970
    %v1564 = vunpack.c.l.b16 %v971
    %v1565 = vunpack.c.l.b16 %v972
    %v1566 = vunpack.c.h.b16 %v972
    %v1567 = vunpack.c.l.b16 %v973
    %v1568 = vunpack.c.h.b16 %v973
    %v1569 = vunpack.c.l.b16 %v974
    %v1570 = vunpack.c.h.b16 %v974
    %v1571 = vunpack.c.l.b16 %v975
    %v1572 = vunpack.c.l.b16 %v976
    %v1573 = vunpack.c.h.b16 %v976
    %v1574 = vunpack.c.l.b16 %v977
    %v1575 = vunpack.c.h.b16 %v977
    %v1576 = vunpack.c.l.b16 %v978
    %v1577 = vunpack.c.h.b16 %v978
    %v1578 = vunpack.c.l.b16 %v979
    %v1579 = vunpack.c.l.b16 %v980
    %v1580 = vunpack.c.h.b16 %v980
    %v1581 = vunpack.c.l.b16 %v981
    %v1582 = vunpack.c.h.b16 %v981
    %v1583 = vunpack.c.l.b16 %v982
    %v1584 = vunpack.c.h.b16 %v982
    %v1585 = vunpack.c.l.b16 %v983
    %v1586 = vunpack.c.l.b16 %v984
    %v1587 = vunpack.c.h.b16 %v984
    %v1588 = vunpack.c.l.b16 %v985
    %v1589 = vunpack.c.h.b16 %v985
    %v1590 = vunpack.c.l.b16 %v986
    %v1591 = vunpack.c.h.b16 %v986
    %v1592 = vunpack.c.l.b16 %v987
    %v1593 = vunpack.c.l.b16 %v988
    %v1594 = vunpack.c.h.b16 %v988
    %v1595 = vunpack.c.l.b16 %v989
    %v1596 = vunpack.c.h.b16 %v989
    %v1597 = vunpack.c.l.b16 %v990
    %v1598 = vunpack.c.h.b16 %v990
    %v1599 = vunpack.c.l.b16 %v991
    %v1600 = vunpack.c.l.b16 %v992
    %v1601 = vunpack.c.h.b16 %v992
    %v1602 = vunpack.c.l.b16 %v993
    %v1603 = vunpack.c.h.b16 %v993
    %v1604 = vunpack.c.l.b16 %v994
    %v1605 = vunpack.c.h.b16 %v994
    %v1606 = vunpack.c.l.b16 %v995
    %v1607 = vunpack.c.l.b16 %v996
    %v1608 = vunpack.c.h.b16 %v996
    %v1609 = vunpack.c.l.b16 %v997
    %v1610 = vunpack.c.h.b16 %v997
    %v1611 = vunpack.c.l.b16 %v998
    %v1612 = vunpack.c.h.b16 %v998
    %v1613 = vunpack.c.l.b16 %v999
    %v1614 = vunpack.c.l.b16 %v1000
    %v1615 = vunpack.c.h.b16 %v1000
    %v1616 = vunpack.c.l.b16 %v1001
    %v1617 = vunpack.c.h.b16 %v1001
    %v1618 = vunpack.c.l.b16 %v1002
    %v1619 = vunpack.c.h.b16 %v1002
    %v1620 = vunpack.c.l.b16 %v1003
    %v1621 = vunpack.c.l.b16 %v1004
    %v1622 = vunpack.c.h.b16 %v1004
    %v1623 = vunpack.c.l.b16 %v1005
    %v1624 = vunpack.c.h.b16 %v1005
    %v1625 = vunpack.c.l.b16 %v1006
    %v1626 = vunpack.c.h.b16 %v1006
    %v1627 = vunpack.c.l.b16 %v1007
    %v1628 = vunpack.c.l.b16 %v1008
    %v1629 = vunpack.c.h.b16 %v1008
    %v1630 = vunpack.c.l.b16 %v1009
    %v1631 = vunpack.c.h.b16 %v1009
    %v1632 = vunpack.c.l.b16 %v1010
    %v1633 = vunpack.c.h.b16 %v1010
    %v1634 = vunpack.c.l.b16 %v1011
    %v1635 = vunpack.c.l.b16 %v1012
    %v1636 = vunpack.c.h.b16 %v1012
    %v1637 = vunpack.c.l.b16 %v1013
    %v1638 = vunpack.c.h.b16 %v1013
    %v1639 = vunpack.c.l.b16 %v1014
    %v1640 = vunpack.c.h.b16 %v1014
    %v1641 = vunpack.c.l.b16 %v1015
    %v1642 = vunpack.c.l.b16 %v1016
    %v1643 = vunpack.c.h.b16 %v1016
    %v1644 = vunpack.c.l.b16 %v1017
    %v1645 = vunpack.c.h.b16 %v1017
    %v1646 = vunpack.c.l.b16 %v1018
    %v1647 = vunpack.c.h.b16 %v1018
    %v1648 = vunpack.c.l.b16 %v1019
    %v1649 = vunpack.c.l.b16 %v1020
    %v1650 = vunpack.c.h.b16 %v1020
    %v1651 = vunpack.c.l.b16 %v1021
    %v1652 = vunpack.c.h.b16 %v1021
    %v1653 = vunpack.c.l.b16 %v1022
    %v1654 = vunpack.c.h.b16 %v1022
    %v1655 = vunpack.c.l.b16 %v1023
    %v1656 = vunpack.c.l.b16 %v1024
    %v1657 = vunpack.c.h.b16 %v1024
    %v1658 = vunpack.c.l.b16 %v1025
    %v1659 = vunpack.c.h.b16 %v1025
    %v1660 = vunpack.c.l.b16 %v1026
    %v1661 = vunpack.c.h.b16 %v1026
    %v1662 = vunpack.c.l.b16 %v1027
    %v1663 = vunpack.c.l.b16 %v1028
    %v1664 = vunpack.c.h.b16 %v1028
    %v1665 = vunpack.c.l.b16 %v1029
    %v1666 = vunpack.c.h.b16 %v1029
    %v1667 = vunpack.c.l.b16 %v1030
    %v1668 = vunpack.c.h.b16 %v1030
    %v1669 = vunpack.c.l.b16 %v1031
    %v1670 = vunpack.c.l.b16 %v1032
    %v1671 = vunpack.c.h.b16 %v1032
    %v1672 = vunpack.c.l.b16 %v1033
    %v1673 = vunpack.c.h.b16 %v1033
    %v1674 = vunpack.c.l.b16 %v1034
    %v1675 = vunpack.c.h.b16 %v1034
    %v1676 = vunpack.c.l.b16 %v1035
    %v1677 = vunpack.c.l.b16 %v1036
    %v1678 = vunpack.c.h.b16 %v1036
    %v1679 = vunpack.c.l.b16 %v1037
    %v1680 = vunpack.c.h.b16 %v1037
    %v1681 = vunpack.c.l.b16 %v1038
    %v1682 = vunpack.c.h.b16 %v1038
    %v1683 = vunpack.c.l.b16 %v1039
    %v1684 = vunpack.c.l.b16 %v1040
    %v1685 = vunpack.c.h.b16 %v1040
    %v1686 = vunpack.c.l.b16 %v1041
    %v1687 = vunpack.c.h.b16 %v1041
    %v1688 = vunpack.c.l.b16 %v1042
    %v1689 = vunpack.c.h.b16 %v1042
    %v1690 = vunpack.c.l.b16 %v1043
    %v1691 = vunpack.c.l.b16 %v1044
    %v1692 = vunpack.c.h.b16 %v1044
    %v1693 = vunpack.c.l.b16 %v1045
    %v1694 = vunpack.c.h.b16 %v1045
    %v1695 = vunpack.c.l.b16 %v1046
    %v1696 = vunpack.c.h.b16 %v1046
    %v1697 = vunpack.c.l.b16 %v1047
    %v1698 = vunpack.c.l.b16 %v1048
    %v1699 = vunpack.c.h.b16 %v1048
    %v1700 = vunpack.c.l.b16 %v1049
    %v1701 = vunpack.c.h.b16 %v1049
    %v1702 = vunpack.c.l.b16 %v1050
    %v1703 = vunpack.c.h.b16 %v1050
    %v1704 = vunpack.c.l.b16 %v1051
    %v1705 = vunpack.c.l.b16 %v1052
    %v1706 = vunpack.c.h.b16 %v1052
    %v1707 = vunpack.c.l.b16 %v1053
    %v1708 = vunpack.c.h.b16 %v1053
    %v1709 = vunpack.c.l.b16 %v1054
    %v1710 = vunpack.c.h.b16 %v1054
    %v1711 = vunpack.c.l.b16 %v1055
    %v1712 = vunpack.c.l.b16 %v1056
    %v1713 = vunpack.c.h.b16 %v1056
    %v1714 = vunpack.c.l.b16 %v1057
    %v1715 = vunpack.c.h.b16 %v1057
    %v1716 = vunpack.c.l.b16 %v1058
    %v1717 = vunpack.c.h.b16 %v1058
    %v1718 = vunpack.c.l.b16 %v1059
    %v1719 = vunpack.c.l.b16 %v1060
    %v1720 = vunpack.c.h.b16 %v1060
    %v1721 = vunpack.c.l.b16 %v1061
    %v1722 = vunpack.c.h.b16 %v1061
    %v1723 = vunpack.c.l.b16 %v1062
    %v1724 = vunpack.c.h.b16 %v1062
    %v1725 = vunpack.c.l.b16 %v1063
    %v1726 = vunpack.c.l.b16 %v1064
    %v1727 = vunpack.c.h.b16 %v1064
    %v1728 = vunpack.c.l.b16 %v1065
    %v1729 = vunpack.c.h.b16 %v1065
    %v1730 = vunpack.c.l.b16 %v1066
    %v1731 = vunpack.c.h.b16 %v1066
    %v1732 = vunpack.c.l.b16 %v1067
    %v1733 = vunpack.c.l.b16 %v1068
    %v1734 = vunpack.c.h.b16 %v1068
    %v1735 = vunpack.c.l.b16 %v1069
    %v1736 = vunpack.c.h.b16 %v1069
    %v1737 = vunpack.c.l.b16 %v1070
    %v1738 = vunpack.c.h.b16 %v1070
    %v1739 = vunpack.c.l.b16 %v1071
    %v1740 = vunpack.c.l.b16 %v1072
    %v1741 = vunpack.c.h.b16 %v1072
    %v1742 = vunpack.c.l.b16 %v1073
    %v1743 = vunpack.c.h.b16 %v1073
    %v1744 = vunpack.c.l.b16 %v1074
    %v1745 = vunpack.c.h.b16 %v1074
    %v1746 = vunpack.c.l.b16 %v1075
    %v1747 = vunpack.c.l.b16 %v1076
    %v1748 = vunpack.c.h.b16 %v1076
    %v1749 = vunpack.c.l.b16 %v1077
    %v1750 = vunpack.c.h.b16 %v1077
    %v1751 = vunpack.c.l.b16 %v1078
    %v1752 = vunpack.c.h.b16 %v1078
    %v1753 = vunpack.c.l.b16 %v1079
    %v1754 = vunpack.c.l.b16 %v1080
    %v1755 = vunpack.c.h.b16 %v1080
    %v1756 = vunpack.c.l.b16 %v1081
    %v1757 = vunpack.c.h.b16 %v1081
    %v1758 = vunpack.c.l.b16 %v1082
    %v1759 = vunpack.c.h.b16 %v1082
    %v1760 = vunpack.c.l.b16 %v1083
    %v1761 = vunpack.c.l.b16 %v1084
    %v1762 = vunpack.c.h.b16 %v1084
    %v1763 = vunpack.c.l.b16 %v1085
    %v1764 = vunpack.c.h.b16 %v1085
    %v1765 = vunpack.c.l.b16 %v1086
    %v1766 = vunpack.c.h.b16 %v1086
    %v1767 = vunpack.c.l.b16 %v1087
    %v1768 = vunpack.c.l.b16 %v1088
    %v1769 = vunpack.c.h.b16 %v1088
    %v1770 = vunpack.c.l.b16 %v1089
    %v1771 = vunpack.c.h.b16 %v1089
    %v1772 = vunpack.c.l.b16 %v1090
    %v1773 = vunpack.c.h.b16 %v1090
    %v1774 = vunpack.c.l.b16 %v1091
    %v1775 = vunpack.c.l.b16 %v1092
    %v1776 = vunpack.c.h.b16 %v1092
    %v1777 = vunpack.c.l.b16 %v1093
    %v1778 = vunpack.c.h.b16 %v1093
    %v1779 = vunpack.c.l.b16 %v1094
    %v1780 = vunpack.c.h.b16 %v1094
    %v1781 = vunpack.c.l.b16 %v1095
    %v1782 = vunpack.c.l.b16 %v1096
    %v1783 = vunpack.c.h.b16 %v1096
    %v1784 = vunpack.c.l.b16 %v1097
    %v1785 = vunpack.c.h.b16 %v1097
    %v1786 = vunpack.c.l.b16 %v1098
    %v1787 = vunpack.c.h.b16 %v1098
    %v1788 = vunpack.c.l.b16 %v1099
    %v1789 = vunpack.c.l.b16 %v1100
    %v1790 = vunpack.c.h.b16 %v1100
    %v1791 = vunpack.c.l.b16 %v1101
    %v1792 = vunpack.c.h.b16 %v1101
    %v1793 = vunpack.c.l.b16 %v1102
    %v1794 = vunpack.c.h.b16 %v1102
    %v1795 = vunpack.c.l.b16 %v1103
    %v1796 = vunpack.c.l.b16 %v1104
    %v1797 = vunpack.c.h.b16 %v1104
    %v1798 = vunpack.c.l.b16 %v1105
    %v1799 = vunpack.c.h.b16 %v1105
    %v1800 = vunpack.c.l.b16 %v1106
    %v1801 = vunpack.c.h.b16 %v1106
    %v1802 = vunpack.c.l.b16 %v1107
    %v1803 = vunpack.c.l.b16 %v1108
    %v1804 = vunpack.c.h.b16 %v1108
    %v1805 = vunpack.c.l.b16 %v1109
    %v1806 = vunpack.c.h.b16 %v1109
    %v1807 = vunpack.c.l.b16 %v1110
    %v1808 = vunpack.c.h.b16 %v1110
    %v1809 = vunpack.c.l.b16 %v1111
    %v1810 = vunpack.c.l.b16 %v1112
    %v1811 = vunpack.c.h.b16 %v1112
    %v1812 = vunpack.c.l.b16 %v1113
    %v1813 = vunpack.c.h.b16 %v1113
    %v1814 = vunpack.c.l.b16 %v1114
    %v1815 = vunpack.c.h.b16 %v1114
    %v1816 = vunpack.c.l.b16 %v1115
    %v1817 = vunpack.c.l.b16 %v1116
    %v1818 = vunpack.c.h.b16 %v1116
    %v1819 = vunpack.c.l.b16 %v1117
    %v1820 = vunpack.c.h.b16 %v1117
    %v1821 = vunpack.c.l.b16 %v1118
    %v1822 = vunpack.c.h.b16 %v1118
    %v1823 = vunpack.c.l.b16 %v1119
    %v1824 = vpack.c.b16 %v1383, %v1376
    %v1825 = vpack.c.b16 %v1384, %v1377
    %v1826 = vpack.c.b16 %v1385, %v1378
    %v1827 = vpack.c.b16 %v1386, %v1379
    %v1828 = vpack.c.b16 %v1387, %v1380
    %v1829 = vpack.c.b16 %v1388, %v1381
    %v1830 = vpack.c.b16 %v1389, %v1382
    %v1831 = vpack.c.b16 %v1397, %v1390
    %v1832 = vpack.c.b16 %v1398, %v1391
    %v1833 = vpack.c.b16 %v1399, %v1392
    %v1834 = vpack.c.b16 %v1400, %v1393
    %v1835 = vpack.c.b16 %v1401, %v1394
    %v1836 = vpack.c.b16 %v1402, %v1395
    %v1837 = vpack.c.b16 %v1403, %v1396
    %v1838 = vpack.c.b16 %v1411, %v1404
    %v1839 = vpack.c.b16 %v1412, %v1405
    %v1840 = vpack.c.b16 %v1413, %v1406
    %v1841 = vpack.c.b16 %v1414, %v1407
    %v1842 = vpack.c.b16 %v1415, %v1408
    %v1843 = vpack.c.b16 %v1416, %v1409
    %v1844 = vpack.c.b16 %v1417, %v1410
    %v1845 = vpack.c.b16 %v1425, %v1418
    %v1846 = vpack.c.b16 %v1426, %v1419
    %v1847 = vpack.c.b16 %v1427, %v1420
    %v1848 = vpack.c.b16 %v1428, %v1421
    %v1849 = vpack.c.b16 %v1429, %v1422
    %v1850 = vpack.c.b16 %v1430, %v1423
    %v1851 = vpack.c.b16 %v1431, %v1424
    %v1852 = vpack.c.b16 %v1439, %v1432
    %v1853 = vpack.c.b16 %v1440, %v1433
    %v1854 = vpack.c.b16 %v1441, %v1434
    %v1855 = vpack.c.b16 %v1442, %v1435
    %v1856 = vpack.c.b16 %v1443, %v1436
    %v1857 = vpack.c.b16 %v1444, %v1437
    %v1858 = vpack.c.b16 %v1445, %v1438
    %v1859 = vpack.c.b16 %v1453, %v1446
    %v1860 = vpack.c.b16 %v1454, %v1447
    %v1861 = vpack.c.b16 %v1455, %v1448
    %v1862 = vpack.c.b16 %v1456, %v1449
    %v1863 = vpack.c.b16 %v1457, %v1450
    %v1864 = vpack.c.b16 %v1458, %v1451
    %v1865 = vpack.c.b16 %v1459, %v1452
    %v1866 = vpack.c.b16 %v1467, %v1460
    %v1867 = vpack.c.b16 %v1468, %v1461
    %v1868 = vpack.c.b16 %v1469, %v1462
    %v1869 = vpack.c.b16 %v1470, %v1463
    %v1870 = vpack.c.b16 %v1471, %v1464
    %v1871 = vpack.c.b16 %v1472, %v1465
    %v1872 = vpack.c.b16 %v1473, %v1466
    %v1873 = vpack.c.b16 %v1481, %v1474
    %v1874 = vpack.c.b16 %v1482, %v1475
    %v1875 = vpack.c.b16 %v1483, %v1476
    %v1876 = vpack.c.b16 %v1484, %v1477
    %v1877 = vpack.c.b16 %v1485, %v1478
    %v1878 = vpack.c.b16 %v1486, %v1479
    %v1879 = vpack.c.b16 %v1487, %v1480
    %v1880 = vpack.c.b16 %v1495, %v1488
    %v1881 = vpack.c.b16 %v1496, %v1489
    %v1882 = vpack.c.b16 %v1497, %v1490
    %v1883 = vpack.c.b16 %v1498, %v1491
    %v1884 = vpack.c.b16 %v1499, %v1492
    %v1885 = vpack.c.b16 %v1500, %v1493
    %v1886 = vpack.c.b16 %v1501, %v1494
    %v1887 = vpack.c.b16 %v1509, %v1502
    %v1888 = vpack.c.b16 %v1510, %v1503
    %v1889 = vpack.c.b16 %v1511, %v1504
    %v1890 = vpack.c.b16 %v1512, %v1505
    %v1891 = vpack.c.b16 %v1513, %v1506
    %v1892 = vpack.c.b16 %v1514, %v1507
    %v1893 = vpack.c.b16 %v1515, %v1508
    %v1894 = vpack.c.b16 %v1523, %v1516
    %v1895 = vpack.c.b16 %v1524, %v1517
    %v1896 = vpack.c.b16 %v1525, %v1518
    %v1897 = vpack.c.b16 %v1526, %v1519
    %v1898 = vpack.c.b16 %v1527, %v1520
    %v1899 = vpack.c.b16 %v1528, %v1521
    %v1900 = vpack.c.b16 %v1529, %v1522
    %v1901 = vpack.c.b16 %v1537, %v1530
    %v1902 = vpack.c.b16 %v1538, %v1531
    %v1903 = vpack.c.b16 %v1539, %v1532
    %v1904 = vpack.c.b16 %v1540, %v1533
    %v1905 = vpack.c.b16 %v1541, %v1534
    %v1906 = vpack.c.b16 %v1542, %v1535
    %v1907 = vpack.c.b16 %v1543, %v1536
    %v1908 = vpack.c.b16 %v1551, %v1544
    %v1909 = vpack.c.b16 %v1552, %v1545
    %v1910 = vpack.c.b16 %v1553, %v1546
    %v1911 = vpack.c.b16 %v1554, %v1547
    %v1912 = vpack.c.b16 %v1555, %v1548
    %v1913 = vpack.c.b16 %v1556, %v1549
    %v1914 = vpack.c.b16 %v1557, %v1550
    %v1915 = vpack.c.b16 %v1565, %v1558
    %v1916 = vpack.c.b16 %v1566, %v1559
    %v1917 = vpack.c.b16 %v1567, %v1560
    %v1918 = vpack.c.b16 %v1568, %v1561
    %v1919 = vpack.c.b16 %v1569, %v1562
    %v1920 = vpack.c.b16 %v1570, %v1563
    %v1921 = vpack.c.b16 %v1571, %v1564
    %v1922 = vpack.c.b16 %v1579, %v1572
    %v1923 = vpack.c.b16 %v1580, %v1573
    %v1924 = vpack.c.b16 %v1581, %v1574
    %v1925 = vpack.c.b16 %v1582, %v1575
    %v1926 = vpack.c.b16 %v1583, %v1576
    %v1927 = vpack.c.b16 %v1584, %v1577
    %v1928 = vpack.c.b16 %v1585, %v1578
    %v1929 = vpack.c.b16 %v1593, %v1586
    %v1930 = vpack.c.b16 %v1594, %v1587
    %v1931 = vpack.c.b16 %v1595, %v1588
    %v1932 = vpack.c.b16 %v1596, %v1589
    %v1933 = vpack.c.b16 %v1597, %v1590
    %v1934 = vpack.c.b16 %v1598, %v1591
    %v1935 = vpack.c.b16 %v1599, %v1592
    %v1936 = vpack.c.b16 %v1607, %v1600
    %v1937 = vpack.c.b16 %v1608, %v1601
    %v1938 = vpack.c.b16 %v1609, %v1602
    %v1939 = vpack.c.b16 %v1610, %v1603
    %v1940 = vpack.c.b16 %v1611, %v1604
    %v1941 = vpack.c.b16 %v1612, %v1605
    %v1942 = vpack.c.b16 %v1613, %v1606
    %v1943 = vpack.c.b16 %v1621, %v1614
    %v1944 = vpack.c.b16 %v1622, %v1615
    %v1945 = vpack.c.b16 %v1623, %v1616
    %v1946 = vpack.c.b16 %v1624, %v1617
    %v1947 = vpack.c.b16 %v1625, %v1618
    %v1948 = vpack.c.b16 %v1626, %v1619
    %v1949 = vpack.c.b16 %v1627, %v1620
    %v1950 = vpack.c.b16 %v1635, %v1628
    %v1951 = vpack.c.b16 %v1636, %v1629
    %v1952 = vpack.c.b16 %v1637, %v1630
    %v1953 = vpack.c.b16 %v1638, %v1631
    %v1954 = vpack.c.b16 %v1639, %v1632
    %v1955 = vpack.c.b16 %v1640, %v1633
    %v1956 = vpack.c.b16 %v1641, %v1634
    %v1957 = vpack.c.b16 %v1649, %v1642
    %v1958 = vpack.c.b16 %v1650, %v1643
    %v1959 = vpack.c.b16 %v1651, %v1644
    %v1960 = vpack.c.b16 %v1652, %v1645
    %v1961 = vpack.c.b16 %v1653, %v1646
    %v1962 = vpack.c.b16 %v1654, %v1647
    %v1963 = vpack.c.b16 %v1655, %v1648
    %v1964 = vpack.c.b16 %v1663, %v1656
    %v1965 = vpack.c.b16 %v1664, %v1657
    %v1966 = vpack.c.b16 %v1665, %v1658
    %v1967 = vpack.c.b16 %v1666, %v1659
    %v1968 = vpack.c.b16 %v1667, %v1660
    %v1969 = vpack.c.b16 %v1668, %v1661
    %v1970 = vpack.c.b16 %v1669, %v1662
    %v1971 = vpack.c.b16 %v1677, %v1670
    %v1972 = vpack.c.b16 %v1678, %v1671
    %v1973 = vpack.c.b16 %v1679, %v1672
    %v1974 = vpack.c.b16 %v1680, %v1673
    %v1975 = vpack.c.b16 %v1681, %v1674
    %v1976 = vpack.c.b16 %v1682, %v1675
    %v1977 = vpack.c.b16 %v1683, %v1676
    %v1978 = vpack.c.b16 %v1691, %v1684
    %v1979 = vpack.c.b16 %v1692, %v1685
    %v1980 = vpack.c.b16 %v1693, %v1686
    %v1981 = vpack.c.b16 %v1694, %v1687
    %v1982 = vpack.c.b16 %v1695, %v1688
    %v1983 = vpack.c.b16 %v1696, %v1689
    %v1984 = vpack.c.b16 %v1697, %v1690
    %v1985 = vpack.c.b16 %v1705, %v1698
    %v1986 = vpack.c.b16 %v1706, %v1699
    %v1987 = vpack.c.b16 %v1707, %v1700
    %v1988 = vpack.c.b16 %v1708, %v1701
    %v1989 = vpack.c.b16 %v1709, %v1702
    %v1990 = vpack.c.b16 %v1710, %v1703
    %v1991 = vpack.c.b16 %v1711, %v1704
    %v1992 = vpack.c.b16 %v1719, %v1712
    %v1993 = vpack.c.b16 %v1720, %v1713
    %v1994 = vpack.c.b16 %v1721, %v1714
    %v1995 = vpack.c.b16 %v1722, %v1715
    %v1996 = vpack.c.b16 %v1723, %v1716
    %v1997 = vpack.c.b16 %v1724, %v1717
    %v1998 = vpack.c.b16 %v1725, %v1718
    %v1999 = vpack.c.b16 %v1733, %v1726
    %v2000 = vpack.c.b16 %v1734, %v1727
    %v2001 = vpack.c.b16 %v1735, %v1728
    %v2002 = vpack.c.b16 %v1736, %v1729
    %v2003 = vpack.c.b16 %v1737, %v1730
    %v2004 = vpack.c.b16 %v1738, %v1731
    %v2005 = vpack.c.b16 %v1739, %v1732
    %v2006 = vpack.c.b16 %v1747, %v1740
    %v2007 = vpack.c.b16 %v1748, %v1741
    %v2008 = vpack.c.b16 %v1749, %v1742
    %v2009 = vpack.c.b16 %v1750, %v1743
    %v2010 = vpack.c.b16 %v1751, %v1744
    %v2011 = vpack.c.b16 %v1752, %v1745
    %v2012 = vpack.c.b16 %v1753, %v1746
    %v2013 = vpack.c.b16 %v1761, %v1754
    %v2014 = vpack.c.b16 %v1762, %v1755
    %v2015 = vpack.c.b16 %v1763, %v1756
    %v2016 = vpack.c.b16 %v1764, %v1757
    %v2017 = vpack.c.b16 %v1765, %v1758
    %v2018 = vpack.c.b16 %v1766, %v1759
    %v2019 = vpack.c.b16 %v1767, %v1760
    %v2020 = vpack.c.b16 %v1775, %v1768
    %v2021 = vpack.c.b16 %v1776, %v1769
    %v2022 = vpack.c.b16 %v1777, %v1770
    %v2023 = vpack.c.b16 %v1778, %v1771
    %v2024 = vpack.c.b16 %v1779, %v1772
    %v2025 = vpack.c.b16 %v1780, %v1773
    %v2026 = vpack.c.b16 %v1781, %v1774
    %v2027 = vpack.c.b16 %v1789, %v1782
    %v2028 = vpack.c.b16 %v1790, %v1783
    %v2029 = vpack.c.b16 %v1791, %v1784
    %v2030 = vpack.c.b16 %v1792, %v1785
    %v2031 = vpack.c.b16 %v1793, %v1786
    %v2032 = vpack.c.b16 %v1794, %v1787
    %v2033 = vpack.c.b16 %v1795, %v1788
    %v2034 = vpack.c.b16 %v1803, %v1796
    %v2035 = vpack.c.b16 %v1804, %v1797
    %v2036 = vpack.c.b16 %v1805, %v1798
    %v2037 = vpack.c.b16 %v1806, %v1799
    %v2038 = vpack.c.b16 %v1807, %v1800
    %v2039 = vpack.c.b16 %v1808, %v1801
    %v2040 = vpack.c.b16 %v1809, %v1802
    %v2041 = vpack.c.b16 %v1817, %v1810
    %v2042 = vpack.c.b16 %v1818, %v1811
    %v2043 = vpack.c.b16 %v1819, %v1812
    %v2044 = vpack.c.b16 %v1820, %v1813
    %v2045 = vpack.c.b16 %v1821, %v1814
    %v2046 = vpack.c.b16 %v1822, %v1815
    %v2047 = vpack.c.b16 %v1823, %v1816
    %2272 = vmatprep.subr.bf16.mxu0 %v1825
    %2273 = vmatpush1.bf16.msra.mxu0 %v1824
    %2274 = vmatprep.subr.bf16.mxu0 %v1832
    %2275 = vmatpush1.bf16.msra.mxu0 %v1831
    %2276 = vmatprep.subr.bf16.mxu0 %v1839
    %2277 = vmatpush1.bf16.msra.mxu0 %v1838
    %2278 = vmatprep.subr.bf16.mxu0 %v1846
    %2279 = vmatpush1.bf16.msra.mxu0 %v1845
    %2280 = vmatprep.subr.bf16.mxu0 %v1853
    %2281 = vmatpush1.bf16.msra.mxu0 %v1852
    %2282 = vmatprep.subr.bf16.mxu0 %v1860
    %2283 = vmatpush1.bf16.msra.mxu0 %v1859
    %2284 = vmatprep.subr.bf16.mxu0 %v1867
    %2285 = vmatpush1.bf16.msra.mxu0 %v1866
    %2286 = vmatprep.subr.bf16.mxu0 %v1874
    %2287 = vmatpush1.bf16.msra.mxu0 %v1873
    %2288 = vmatprep.subr.bf16.mxu0 %v1881
    %2289 = vmatpush1.bf16.msra.mxu0 %v1880
    %2290 = vmatprep.subr.bf16.mxu0 %v1888
    %2291 = vmatpush1.bf16.msra.mxu0 %v1887
    %2292 = vmatprep.subr.bf16.mxu0 %v1895
    %2293 = vmatpush1.bf16.msra.mxu0 %v1894
    %2294 = vmatprep.subr.bf16.mxu0 %v1902
    %2295 = vmatpush1.bf16.msra.mxu0 %v1901
    %2296 = vmatprep.subr.bf16.mxu0 %v1909
    %2297 = vmatpush1.bf16.msra.mxu0 %v1908
    %2298 = vmatprep.subr.bf16.mxu0 %v1916
    %2299 = vmatpush1.bf16.msra.mxu0 %v1915
    %2300 = vmatprep.subr.bf16.mxu0 %v1923
    %2301 = vmatpush1.bf16.msra.mxu0 %v1922
    %2302 = vmatprep.subr.bf16.mxu0 %v1930
    %2303 = vmatpush1.bf16.msra.mxu0 %v1929
    %2304 = vmatprep.mubr.bf16.mxu0 %v861
    %2305 = vmatmul.mubr.bf16.gmra.mrb[0].mxu0 %v860
    %v2306 = vpop.f32.mrb[0].mxu0
    %v2307 = vadd.f32 0.0, %v2306
    %v2308 = vpop.f32.mrb[0].mxu0
    %v2309 = vadd.f32 0.0, %v2308
    %v2310 = vpop.f32.mrb[0].mxu0
    %v2311 = vpop.f32.mrb[0].mxu0
    %2312 = vdwg.mxu0
    %2313 = vmatprep.subr.bf16.mxu0 %v1937
    %2314 = vmatpush1.bf16.msra.mxu0 %v1936
    %2315 = vmatprep.subr.bf16.mxu0 %v1944
    %2316 = vmatpush1.bf16.msra.mxu0 %v1943
    %2317 = vmatprep.subr.bf16.mxu0 %v1951
    %2318 = vmatpush1.bf16.msra.mxu0 %v1950
    %2319 = vmatprep.subr.bf16.mxu0 %v1958
    %2320 = vmatpush1.bf16.msra.mxu0 %v1957
    %2321 = vmatprep.subr.bf16.mxu0 %v1965
    %2322 = vmatpush1.bf16.msra.mxu0 %v1964
    %2323 = vmatprep.subr.bf16.mxu0 %v1972
    %2324 = vmatpush1.bf16.msra.mxu0 %v1971
    %2325 = vmatprep.subr.bf16.mxu0 %v1979
    %2326 = vmatpush1.bf16.msra.mxu0 %v1978
    %2327 = vmatprep.subr.bf16.mxu0 %v1986
    %2328 = vmatpush1.bf16.msra.mxu0 %v1985
    %2329 = vmatprep.subr.bf16.mxu0 %v1993
    %2330 = vmatpush1.bf16.msra.mxu0 %v1992
    %2331 = vmatprep.subr.bf16.mxu0 %v2000
    %2332 = vmatpush1.bf16.msra.mxu0 %v1999
    %2333 = vmatprep.subr.bf16.mxu0 %v2007
    %2334 = vmatpush1.bf16.msra.mxu0 %v2006
    %2335 = vmatprep.subr.bf16.mxu0 %v2014
    %2336 = vmatpush1.bf16.msra.mxu0 %v2013
    %2337 = vmatprep.subr.bf16.mxu0 %v2021
    %2338 = vmatpush1.bf16.msra.mxu0 %v2020
    %2339 = vmatprep.subr.bf16.mxu0 %v2028
    %2340 = vmatpush1.bf16.msra.mxu0 %v2027
    %2341 = vmatprep.subr.bf16.mxu0 %v2035
    %2342 = vmatpush1.bf16.msra.mxu0 %v2034
    %2343 = vmatprep.subr.bf16.mxu0 %v2042
    %2344 = vmatpush1.bf16.msra.mxu0 %v2041
    %2345 = vmatprep.mubr.bf16.mxu0 %v863
    %2346 = vmatmul.mubr.bf16.gmra.mrb[0].mxu0 %v862
    %v2347 = vpop.f32.mrb[0].mxu0
    %v2348 = vadd.f32 %v2307, %v2347
    %v2349 = vpop.f32.mrb[0].mxu0
    %v2350 = vadd.f32 %v2309, %v2349
    %v2351 = vpop.f32.mrb[0].mxu0
    %v2352 = vpop.f32.mrb[0].mxu0
    %2353 = vdwg.mxu0
    %2354 = vmatprep.subr.bf16.mxu0 %v1827
    %2355 = vmatpush1.bf16.msra.mxu0 %v1826
    %2356 = vmatprep.subr.bf16.mxu0 %v1834
    %2357 = vmatpush1.bf16.msra.mxu0 %v1833
    %2358 = vmatprep.subr.bf16.mxu0 %v1841
    %2359 = vmatpush1.bf16.msra.mxu0 %v1840
    %2360 = vmatprep.subr.bf16.mxu0 %v1848
    %2361 = vmatpush1.bf16.msra.mxu0 %v1847
    %2362 = vmatprep.subr.bf16.mxu0 %v1855
    %2363 = vmatpush1.bf16.msra.mxu0 %v1854
    %2364 = vmatprep.subr.bf16.mxu0 %v1862
    %2365 = vmatpush1.bf16.msra.mxu0 %v1861
    %2366 = vmatprep.subr.bf16.mxu0 %v1869
    %2367 = vmatpush1.bf16.msra.mxu0 %v1868
    %2368 = vmatprep.subr.bf16.mxu0 %v1876
    %2369 = vmatpush1.bf16.msra.mxu0 %v1875
    %2370 = vmatprep.subr.bf16.mxu0 %v1883
    %2371 = vmatpush1.bf16.msra.mxu0 %v1882
    %2372 = vmatprep.subr.bf16.mxu0 %v1890
    %2373 = vmatpush1.bf16.msra.mxu0 %v1889
    %2374 = vmatprep.subr.bf16.mxu0 %v1897
    %2375 = vmatpush1.bf16.msra.mxu0 %v1896
    %2376 = vmatprep.subr.bf16.mxu0 %v1904
    %2377 = vmatpush1.bf16.msra.mxu0 %v1903
    %2378 = vmatprep.subr.bf16.mxu0 %v1911
    %2379 = vmatpush1.bf16.msra.mxu0 %v1910
    %2380 = vmatprep.subr.bf16.mxu0 %v1918
    %2381 = vmatpush1.bf16.msra.mxu0 %v1917
    %2382 = vmatprep.subr.bf16.mxu0 %v1925
    %2383 = vmatpush1.bf16.msra.mxu0 %v1924
    %2384 = vmatprep.subr.bf16.mxu0 %v1932
    %2385 = vmatpush1.bf16.msra.mxu0 %v1931
    %2386 = vmatprep.mubr.bf16.mxu0 %v861
    %2387 = vmatmul.mubr.bf16.gmra.mrb[0].mxu0 %v860
    %v2388 = vpop.f32.mrb[0].mxu0
    %v2389 = vadd.f32 0.0, %v2388
    %v2390 = vpop.f32.mrb[0].mxu0
    %v2391 = vadd.f32 0.0, %v2390
    %v2392 = vpop.f32.mrb[0].mxu0
    %v2393 = vpop.f32.mrb[0].mxu0
    %2394 = vdwg.mxu0
    %2395 = vmatprep.subr.bf16.mxu0 %v1939
    %2396 = vmatpush1.bf16.msra.mxu0 %v1938
    %2397 = vmatprep.subr.bf16.mxu0 %v1946
    %2398 = vmatpush1.bf16.msra.mxu0 %v1945
    %2399 = vmatprep.subr.bf16.mxu0 %v1953
    %2400 = vmatpush1.bf16.msra.mxu0 %v1952
    %2401 = vmatprep.subr.bf16.mxu0 %v1960
    %2402 = vmatpush1.bf16.msra.mxu0 %v1959
    %2403 = vmatprep.subr.bf16.mxu0 %v1967
    %2404 = vmatpush1.bf16.msra.mxu0 %v1966
    %2405 = vmatprep.subr.bf16.mxu0 %v1974
    %2406 = vmatpush1.bf16.msra.mxu0 %v1973
    %2407 = vmatprep.subr.bf16.mxu0 %v1981
    %2408 = vmatpush1.bf16.msra.mxu0 %v1980
    %2409 = vmatprep.subr.bf16.mxu0 %v1988
    %2410 = vmatpush1.bf16.msra.mxu0 %v1987
    %2411 = vmatprep.subr.bf16.mxu0 %v1995
    %2412 = vmatpush1.bf16.msra.mxu0 %v1994
    %2413 = vmatprep.subr.bf16.mxu0 %v2002
    %2414 = vmatpush1.bf16.msra.mxu0 %v2001
    %2415 = vmatprep.subr.bf16.mxu0 %v2009
    %2416 = vmatpush1.bf16.msra.mxu0 %v2008
    %2417 = vmatprep.subr.bf16.mxu0 %v2016
    %2418 = vmatpush1.bf16.msra.mxu0 %v2015
    %2419 = vmatprep.subr.bf16.mxu0 %v2023
    %2420 = vmatpush1.bf16.msra.mxu0 %v2022
    %2421 = vmatprep.subr.bf16.mxu0 %v2030
    %2422 = vmatpush1.bf16.msra.mxu0 %v2029
    %2423 = vmatprep.subr.bf16.mxu0 %v2037
    %2424 = vmatpush1.bf16.msra.mxu0 %v2036
    %2425 = vmatprep.subr.bf16.mxu0 %v2044
    %2426 = vmatpush1.bf16.msra.mxu0 %v2043
    %2427 = vmatprep.mubr.bf16.mxu0 %v863
    %2428 = vmatmul.mubr.bf16.gmra.mrb[0].mxu0 %v862
    %v2429 = vpop.f32.mrb[0].mxu0
    %v2430 = vadd.f32 %v2389, %v2429
    %v2431 = vpop.f32.mrb[0].mxu0
    %v2432 = vadd.f32 %v2391, %v2431
    %v2433 = vpop.f32.mrb[0].mxu0
    %v2434 = vpop.f32.mrb[0].mxu0
    %2435 = vdwg.mxu0
    %2436 = vmatprep.subr.bf16.mxu0 %v1829
    %2437 = vmatpush1.bf16.msra.mxu0 %v1828
    %2438 = vmatprep.subr.bf16.mxu0 %v1836
    %2439 = vmatpush1.bf16.msra.mxu0 %v1835
    %2440 = vmatprep.subr.bf16.mxu0 %v1843
    %2441 = vmatpush1.bf16.msra.mxu0 %v1842
    %2442 = vmatprep.subr.bf16.mxu0 %v1850
    %2443 = vmatpush1.bf16.msra.mxu0 %v1849
    %2444 = vmatprep.subr.bf16.mxu0 %v1857
    %2445 = vmatpush1.bf16.msra.mxu0 %v1856
    %2446 = vmatprep.subr.bf16.mxu0 %v1864
    %2447 = vmatpush1.bf16.msra.mxu0 %v1863
    %2448 = vmatprep.subr.bf16.mxu0 %v1871
    %2449 = vmatpush1.bf16.msra.mxu0 %v1870
    %2450 = vmatprep.subr.bf16.mxu0 %v1878
    %2451 = vmatpush1.bf16.msra.mxu0 %v1877
    %2452 = vmatprep.subr.bf16.mxu0 %v1885
    %2453 = vmatpush1.bf16.msra.mxu0 %v1884
    %2454 = vmatprep.subr.bf16.mxu0 %v1892
    %2455 = vmatpush1.bf16.msra.mxu0 %v1891
    %2456 = vmatprep.subr.bf16.mxu0 %v1899
    %2457 = vmatpush1.bf16.msra.mxu0 %v1898
    %2458 = vmatprep.subr.bf16.mxu0 %v1906
    %2459 = vmatpush1.bf16.msra.mxu0 %v1905
    %2460 = vmatprep.subr.bf16.mxu0 %v1913
    %2461 = vmatpush1.bf16.msra.mxu0 %v1912
    %2462 = vmatprep.subr.bf16.mxu0 %v1920
    %2463 = vmatpush1.bf16.msra.mxu0 %v1919
    %2464 = vmatprep.subr.bf16.mxu0 %v1927
    %2465 = vmatpush1.bf16.msra.mxu0 %v1926
    %2466 = vmatprep.subr.bf16.mxu0 %v1934
    %2467 = vmatpush1.bf16.msra.mxu0 %v1933
    %2468 = vmatprep.mubr.bf16.mxu0 %v861
    %2469 = vmatmul.mubr.bf16.gmra.mrb[0].mxu0 %v860
    %v2470 = vpop.f32.mrb[0].mxu0
    %v2471 = vadd.f32 0.0, %v2470
    %v2472 = vpop.f32.mrb[0].mxu0
    %v2473 = vadd.f32 0.0, %v2472
    %v2474 = vpop.f32.mrb[0].mxu0
    %v2475 = vpop.f32.mrb[0].mxu0
    %2476 = vdwg.mxu0
    %2477 = vmatprep.subr.bf16.mxu0 %v1941
    %2478 = vmatpush1.bf16.msra.mxu0 %v1940
    %2479 = vmatprep.subr.bf16.mxu0 %v1948
    %2480 = vmatpush1.bf16.msra.mxu0 %v1947
    %2481 = vmatprep.subr.bf16.mxu0 %v1955
    %2482 = vmatpush1.bf16.msra.mxu0 %v1954
    %2483 = vmatprep.subr.bf16.mxu0 %v1962
    %2484 = vmatpush1.bf16.msra.mxu0 %v1961
    %2485 = vmatprep.subr.bf16.mxu0 %v1969
    %2486 = vmatpush1.bf16.msra.mxu0 %v1968
    %2487 = vmatprep.subr.bf16.mxu0 %v1976
    %2488 = vmatpush1.bf16.msra.mxu0 %v1975
    %2489 = vmatprep.subr.bf16.mxu0 %v1983
    %2490 = vmatpush1.bf16.msra.mxu0 %v1982
    %2491 = vmatprep.subr.bf16.mxu0 %v1990
    %2492 = vmatpush1.bf16.msra.mxu0 %v1989
    %2493 = vmatprep.subr.bf16.mxu0 %v1997
    %2494 = vmatpush1.bf16.msra.mxu0 %v1996
    %2495 = vmatprep.subr.bf16.mxu0 %v2004
    %2496 = vmatpush1.bf16.msra.mxu0 %v2003
    %2497 = vmatprep.subr.bf16.mxu0 %v2011
    %2498 = vmatpush1.bf16.msra.mxu0 %v2010
    %2499 = vmatprep.subr.bf16.mxu0 %v2018
    %2500 = vmatpush1.bf16.msra.mxu0 %v2017
    %2501 = vmatprep.subr.bf16.mxu0 %v2025
    %2502 = vmatpush1.bf16.msra.mxu0 %v2024
    %2503 = vmatprep.subr.bf16.mxu0 %v2032
    %2504 = vmatpush1.bf16.msra.mxu0 %v2031
    %2505 = vmatprep.subr.bf16.mxu0 %v2039
    %2506 = vmatpush1.bf16.msra.mxu0 %v2038
    %2507 = vmatprep.subr.bf16.mxu0 %v2046
    %2508 = vmatpush1.bf16.msra.mxu0 %v2045
    %2509 = vmatprep.mubr.bf16.mxu0 %v863
    %2510 = vmatmul.mubr.bf16.gmra.mrb[0].mxu0 %v862
    %v2511 = vpop.f32.mrb[0].mxu0
    %v2512 = vadd.f32 %v2471, %v2511
    %v2513 = vpop.f32.mrb[0].mxu0
    %v2514 = vadd.f32 %v2473, %v2513
    %v2515 = vpop.f32.mrb[0].mxu0
    %v2516 = vpop.f32.mrb[0].mxu0
    %2517 = vdwg.mxu0
    %2518 = vmatprep.subr.bf16.mxu0 0
    %2519 = vmatpush1.bf16.msra.mxu0 %v1830
    %2520 = vmatprep.subr.bf16.mxu0 0
    %2521 = vmatpush1.bf16.msra.mxu0 %v1837
    %2522 = vmatprep.subr.bf16.mxu0 0
    %2523 = vmatpush1.bf16.msra.mxu0 %v1844
    %2524 = vmatprep.subr.bf16.mxu0 0
    %2525 = vmatpush1.bf16.msra.mxu0 %v1851
    %2526 = vmatprep.subr.bf16.mxu0 0
    %2527 = vmatpush1.bf16.msra.mxu0 %v1858
    %2528 = vmatprep.subr.bf16.mxu0 0
    %2529 = vmatpush1.bf16.msra.mxu0 %v1865
    %2530 = vmatprep.subr.bf16.mxu0 0
    %2531 = vmatpush1.bf16.msra.mxu0 %v1872
    %2532 = vmatprep.subr.bf16.mxu0 0
    %2533 = vmatpush1.bf16.msra.mxu0 %v1879
    %2534 = vmatprep.subr.bf16.mxu0 0
    %2535 = vmatpush1.bf16.msra.mxu0 %v1886
    %2536 = vmatprep.subr.bf16.mxu0 0
    %2537 = vmatpush1.bf16.msra.mxu0 %v1893
    %2538 = vmatprep.subr.bf16.mxu0 0
    %2539 = vmatpush1.bf16.msra.mxu0 %v1900
    %2540 = vmatprep.subr.bf16.mxu0 0
    %2541 = vmatpush1.bf16.msra.mxu0 %v1907
    %2542 = vmatprep.subr.bf16.mxu0 0
    %2543 = vmatpush1.bf16.msra.mxu0 %v1914
    %2544 = vmatprep.subr.bf16.mxu0 0
    %2545 = vmatpush1.bf16.msra.mxu0 %v1921
    %2546 = vmatprep.subr.bf16.mxu0 0
    %2547 = vmatpush1.bf16.msra.mxu0 %v1928
    %2548 = vmatprep.subr.bf16.mxu0 0
    %2549 = vmatpush1.bf16.msra.mxu0 %v1935
    %2550 = vmatprep.mubr.bf16.mxu0 %v861
    %2551 = vmatmul.mubr.bf16.gmra.mrb[0].mxu0 %v860
    %v2552 = vpop.f32.mrb[0].mxu0
    %v2553 = vadd.f32 0.0, %v2552
    %v2554 = vpop.f32.mrb[0].mxu0
    %v2555 = vpop.f32.mrb[0].mxu0
    %v2556 = vpop.f32.mrb[0].mxu0
    %2557 = vdwg.mxu0
    %2558 = vmatprep.subr.bf16.mxu0 0
    %2559 = vmatpush1.bf16.msra.mxu0 %v1942
    %2560 = vmatprep.subr.bf16.mxu0 0
    %2561 = vmatpush1.bf16.msra.mxu0 %v1949
    %2562 = vmatprep.subr.bf16.mxu0 0
    %2563 = vmatpush1.bf16.msra.mxu0 %v1956
    %2564 = vmatprep.subr.bf16.mxu0 0
    %2565 = vmatpush1.bf16.msra.mxu0 %v1963
    %2566 = vmatprep.subr.bf16.mxu0 0
    %2567 = vmatpush1.bf16.msra.mxu0 %v1970
    %2568 = vmatprep.subr.bf16.mxu0 0
    %2569 = vmatpush1.bf16.msra.mxu0 %v1977
    %2570 = vmatprep.subr.bf16.mxu0 0
    %2571 = vmatpush1.bf16.msra.mxu0 %v1984
    %2572 = vmatprep.subr.bf16.mxu0 0
    %2573 = vmatpush1.bf16.msra.mxu0 %v1991
    %2574 = vmatprep.subr.bf16.mxu0 0
    %2575 = vmatpush1.bf16.msra.mxu0 %v1998
    %2576 = vmatprep.subr.bf16.mxu0 0
    %2577 = vmatpush1.bf16.msra.mxu0 %v2005
    %2578 = vmatprep.subr.bf16.mxu0 0
    %2579 = vmatpush1.bf16.msra.mxu0 %v2012
    %2580 = vmatprep.subr.bf16.mxu0 0
    %2581 = vmatpush1.bf16.msra.mxu0 %v2019
    %2582 = vmatprep.subr.bf16.mxu0 0
    %2583 = vmatpush1.bf16.msra.mxu0 %v2026
    %2584 = vmatprep.subr.bf16.mxu0 0
    %2585 = vmatpush1.bf16.msra.mxu0 %v2033
    %2586 = vmatprep.subr.bf16.mxu0 0
    %2587 = vmatpush1.bf16.msra.mxu0 %v2040
    %2588 = vmatprep.subr.bf16.mxu0 0
    %2589 = vmatpush1.bf16.msra.mxu0 %v2047
    %2590 = vmatprep.mubr.bf16.mxu0 %v863
    %2591 = vmatmul.mubr.bf16.gmra.mrb[0].mxu0 %v862
    %v2592 = vpop.f32.mrb[0].mxu0
    %v2593 = vadd.f32 %v2553, %v2592
    %v2594 = vpop.f32.mrb[0].mxu0
    %v2595 = vpop.f32.mrb[0].mxu0
    %v2596 = vpop.f32.mrb[0].mxu0
    %2597 = vdwg.mxu0
    %v2598 = vld [vmem:[%s8] sm:$0x7f]
    %v2600 = vlaneseq
    %v2601 = vshrl.u32 %v2600, 7
    %v2602 = vsub.s32 0, %v2601
    %v2603 = vrot.slane %v2598, %v2602
    %v2604 = vlaneseq
    %v2605 = vshrl.u32 %v2604, 7
    %v2606 = vsub.s32 1, %v2605
    %v2607 = vrot.slane %v2598, %v2606
    %v2608 = vlaneseq
    %v2609 = vshrl.u32 %v2608, 7
    %v2610 = vsub.s32 2, %v2609
    %v2611 = vrot.slane %v2598, %v2610
    %v2612 = vlaneseq
    %v2613 = vshrl.u32 %v2612, 7
    %v2614 = vsub.s32 3, %v2613
    %v2615 = vrot.slane %v2598, %v2614
    %v2616 = vlaneseq
    %v2617 = vshrl.u32 %v2616, 7
    %v2618 = vsub.s32 4, %v2617
    %v2619 = vrot.slane %v2598, %v2618
    %v2620 = vlaneseq
    %v2621 = vshrl.u32 %v2620, 7
    %v2622 = vsub.s32 5, %v2621
    %v2623 = vrot.slane %v2598, %v2622
    %v2624 = vlaneseq
    %v2625 = vshrl.u32 %v2624, 7
    %v2626 = vsub.s32 6, %v2625
    %v2627 = vrot.slane %v2598, %v2626
    %v2635 = vadd.f32 %v2348, %v2603
    %v2636 = vadd.f32 %v2350, %v2607
    %v2637 = vadd.f32 %v2430, %v2611
    %v2638 = vadd.f32 %v2432, %v2615
    %v2639 = vadd.f32 %v2512, %v2619
    %v2640 = vadd.f32 %v2514, %v2623
    %v2641 = vadd.f32 %v2593, %v2627
    %v2642 = vtanh.pop %v2635
    %v2643 = vtanh.pop %v2636
    %v2644 = vtanh.pop %v2637
    %v2645 = vtanh.pop %v2638
    %v2646 = vtanh.pop %v2639
    %v2647 = vtanh.pop %v2640
    %v2648 = vtanh.pop %v2641
    %2649 = vst [vmem:[#allocation11] sm:$0xff] %v2642
    %2650 = vst [vmem:[#allocation11 + $0x8] sm:$0xff] %v2643
    %2651 = vst [vmem:[#allocation11 + $0x10] sm:$0xff] %v2644
    %2652 = vst [vmem:[#allocation11 + $0x18] sm:$0xff] %v2645
    %2653 = vst [vmem:[#allocation11 + $0x20] sm:$0xff] %v2646
    %2654 = vst [vmem:[#allocation11 + $0x28] sm:$0xff] %v2647
    %vm2655 = vcmask 130048
    %2656 = vst.msk [vmem:[#allocation11 + $0x30] sm:$0xff] %vm2655, %v2648
    // Predicated region
    $region58: #{tpu_custom_call.1} parent=1 // pred_check
      _
    $region59: #{tpu_custom_call.1} parent=1 // pred_check_branch
      %2658 = sbr.rel (0) target = $region61
    $region60: #{tpu_custom_call.1} parent=1 // pred_region
      %s2660 = ssub.s32 896, 896
      %2661 = vsyncadd [#allocation4], %s2660
      %s2663 = sshll.u32 [#allocation11], 4
      %s2664 = int_to_ptr.vmem [resolvable:$true] %s2663
      %2666 = dma.vmem_to_hbm [thread:$0]  %s2664, 896, %s9, [#allocation4]
    $region61: #{tpu_custom_call.1} parent=1 // pred_fallthru
      _
    // Predicated region
    $region62: #{tpu_custom_call.1} parent=1 // pred_check
      _
    $region63: #{tpu_custom_call.1} parent=1 // pred_check_branch
      %2668 = sbr.rel (0) target = $region65
    $region64: #{tpu_custom_call.1} parent=1 // pred_region
      %2669 = dma.done [#allocation4], 896
    $region65: #{tpu_custom_call.1} parent=1 // pred_fallthru
      _
    %2670 = vsyncpa [#allocation3], 1
    %2671 = vsyncpa [#allocation6], 1
    %2672 = vsyncpa [#allocation9], 1
    %2673 = vsyncpa [#allocation4], 1

// kernel: tpu_custom_call.1
$region0: #{tpu_custom_call.1}
  #allocation0 [shape = 'u32[]', space=smem, size = 0x4, offset = 0x4, fixed_abs, tag = 'smem constant byte address 0x4 - core index']
  #allocation1 [shape = 'u32[144,128]{1,0:T(1,128)}', space=vmem, size = 0x12000, scoped, tag = 'internal scratch']
  %s0 = inlined_call_operand.hbm [shape: f32[8,128], index: 0, kind: input, shape index: {}]
  %s1 = inlined_call_operand.hbm [shape: bf16[128,128], index: 1, kind: input, shape index: {}]
  %s2 = inlined_call_operand.vmem [shape: f32[1,128], index: 2, kind: input, shape index: {}]
  %s3 = inlined_call_operand.hbm [shape: bf16[128,256], index: 3, kind: input, shape index: {}]
  %s4 = inlined_call_operand.vmem [shape: f32[1,256], index: 4, kind: input, shape index: {}]
  %s5 = inlined_call_operand.hbm [shape: bf16[256,512], index: 5, kind: input, shape index: {}]
  %s6 = inlined_call_operand.vmem [shape: f32[1,512], index: 6, kind: input, shape index: {}]
  %s7 = inlined_call_operand.hbm [shape: bf16[512,896], index: 7, kind: input, shape index: {}]
  %s8 = inlined_call_operand.vmem [shape: f32[1,784], index: 8, kind: input, shape index: {}]
  %s9 = inlined_call_operand.hbm [shape: f32[8,784], index: 9, kind: output, shape index: {}]
  %s10 = sld [smem:[#allocation0]]
  $region66: #{tpu_custom_call.1} parent=0
    _
  %s12 = ssub.s32 1, %s10
  %s13 = scalar_select 0, %s12, %s10
  $region1: #{tpu_custom_call.1} parent=0
    #allocation2 [shape = 'u8[4096]{0}', space=vmem, size = 0x1000, scoped, tag = 'input window, operand 0, single buffered']
    #allocation3 [shape = 's32[1]{0}', space=sflag, size = 0x4, scoped, tag = 'scoped memory for tpu_custom_call.1']
    #allocation4 [shape = 's32[1]{0}', space=sflag, size = 0x4, scoped, tag = 'scoped memory for tpu_custom_call.1']
    #allocation5 [shape = 'u8[32768]{0}', space=vmem, size = 0x8000, scoped, tag = 'input window, operand 1, single buffered']
    #allocation6 [shape = 's32[1]{0}', space=sflag, size = 0x4, scoped, tag = 'scoped memory for tpu_custom_call.1']
    #allocation7 [shape = 'u8[65536]{0}', space=vmem, size = 0x10000, scoped, tag = 'input window, operand 3, single buffered']
    #allocation8 [shape = 'u8[262144]{0}', space=vmem, size = 0x40000, scoped, tag = 'input window, operand 5, single buffered']
    #allocation9 [shape = 's32[1]{0}', space=sflag, size = 0x4, scoped, tag = 'scoped memory for tpu_custom_call.1']
    #allocation10 [shape = 'u8[917504]{0}', space=vmem, size = 0xe0000, scoped, tag = 'input window, operand 7, single buffered']
    #allocation11 [shape = 'u8[28672]{0}', space=vmem, size = 0x7000, scoped, tag = 'output window, operand 0, single buffered']
    %14 = vsyncpa [#allocation3], 0
    %15 = vsyncpa [#allocation6], 0
    %16 = vsyncpa [#allocation9], 0
    %17 = vsyncpa [#allocation4], 0
    // Predicated region
    $region2: #{tpu_custom_call.1} parent=1 // pred_check
      _
    $region3: #{tpu_custom_call.1} parent=1 // pred_check_branch
      %19 = sbr.rel (0) target = $region5
    $region4: #{tpu_custom_call.1} parent=1 // pred_region
      %s21 = ssub.s32 128, 128
      %22 = vsyncadd [#allocation3], %s21
      %s24 = sshll.u32 [#allocation2], 4
      %s25 = int_to_ptr.vmem [resolvable:$true] %s24
      %27 = dma.hbm_to_vmem [thread:$0]  %s0, 128, %s25, [#allocation3]
    $region5: #{tpu_custom_call.1} parent=1 // pred_fallthru
      _
    // Predicated region
    $region6: #{tpu_custom_call.1} parent=1 // pred_check
      _
    $region7: #{tpu_custom_call.1} parent=1 // pred_check_branch
      %29 = sbr.rel (0) target = $region9
    $region8: #{tpu_custom_call.1} parent=1 // pred_region
      %s31 = ssub.s32 1024, 1024
      %32 = vsyncadd [#allocation6], %s31
      %s33 = sshll.u32 [#allocation5], 4
      %s34 = int_to_ptr.vmem [resolvable:$true] %s33
      %39 = dma.hbm_to_vmem [thread:$0]  %s1, 1024, %s34, [#allocation6], 64, 64, 4
    $region9: #{tpu_custom_call.1} parent=1 // pred_fallthru
      _
    // Predicated region
    $region10: #{tpu_custom_call.1} parent=1 // pred_check
      _
    $region11: #{tpu_custom_call.1} parent=1 // pred_check_branch
      %41 = sbr.rel (0) target = $region13
    $region12: #{tpu_custom_call.1} parent=1 // pred_region
      _
    $region13: #{tpu_custom_call.1} parent=1 // pred_fallthru
      _
    // Predicated region
    $region14: #{tpu_custom_call.1} parent=1 // pred_check
      _
    $region15: #{tpu_custom_call.1} parent=1 // pred_check_branch
      %43 = sbr.rel (0) target = $region17
    $region16: #{tpu_custom_call.1} parent=1 // pred_region
      %s45 = ssub.s32 2048, 2048
      %46 = vsyncadd [#allocation6], %s45
      %s47 = sshll.u32 [#allocation7], 4
      %s48 = int_to_ptr.vmem [resolvable:$true] %s47
      %53 = dma.hbm_to_vmem [thread:$0]  %s3, 2048, %s48, [#allocation6], 128, 128, 8
    $region17: #{tpu_custom_call.1} parent=1 // pred_fallthru
      _
    // Predicated region
    $region18: #{tpu_custom_call.1} parent=1 // pred_check
      _
    $region19: #{tpu_custom_call.1} parent=1 // pred_check_branch
      %55 = sbr.rel (0) target = $region21
    $region20: #{tpu_custom_call.1} parent=1 // pred_region
      _
    $region21: #{tpu_custom_call.1} parent=1 // pred_fallthru
      _
    // Predicated region
    $region22: #{tpu_custom_call.1} parent=1 // pred_check
      _
    $region23: #{tpu_custom_call.1} parent=1 // pred_check_branch
      %57 = sbr.rel (0) target = $region25
    $region24: #{tpu_custom_call.1} parent=1 // pred_region
      %s59 = ssub.s32 8192, 8192
      %60 = vsyncadd [#allocation9], %s59
      %s61 = sshll.u32 [#allocation8], 4
      %s62 = int_to_ptr.vmem [resolvable:$true] %s61
      %67 = dma.hbm_to_vmem [thread:$0]  %s5, 8192, %s62, [#allocation9], 256, 256, 16
    $region25: #{tpu_custom_call.1} parent=1 // pred_fallthru
      _
    // Predicated region
    $region26: #{tpu_custom_call.1} parent=1 // pred_check
      _
    $region27: #{tpu_custom_call.1} parent=1 // pred_check_branch
      %69 = sbr.rel (0) target = $region29
    $region28: #{tpu_custom_call.1} parent=1 // pred_region
      _
    $region29: #{tpu_custom_call.1} parent=1 // pred_fallthru
      _
    // Predicated region
    $region30: #{tpu_custom_call.1} parent=1 // pred_check
      _
    $region31: #{tpu_custom_call.1} parent=1 // pred_check_branch
      %71 = sbr.rel (0) target = $region33
    $region32: #{tpu_custom_call.1} parent=1 // pred_region
      %s73 = ssub.s32 28672, 28672
      %74 = vsyncadd [#allocation9], %s73
      %s75 = sshll.u32 [#allocation10], 4
      %s76 = int_to_ptr.vmem [resolvable:$true] %s75
      %81 = dma.hbm_to_vmem [thread:$0]  %s7, 28672, %s76, [#allocation9], 448, 448, 28
    $region33: #{tpu_custom_call.1} parent=1 // pred_fallthru
      _
    // Predicated region
    $region34: #{tpu_custom_call.1} parent=1 // pred_check
      _
    $region35: #{tpu_custom_call.1} parent=1 // pred_check_branch
      %83 = sbr.rel (0) target = $region37
    $region36: #{tpu_custom_call.1} parent=1 // pred_region
      _
    $region37: #{tpu_custom_call.1} parent=1 // pred_fallthru
      _
    // Predicated region
    $region38: #{tpu_custom_call.1} parent=1 // pred_check
      _
    $region39: #{tpu_custom_call.1} parent=1 // pred_check_branch
      %85 = sbr.rel (0) target = $region41
    $region40: #{tpu_custom_call.1} parent=1 // pred_region
      %86 = dma.done [#allocation3], 128
    $region41: #{tpu_custom_call.1} parent=1 // pred_fallthru
      _
    // Predicated region
    $region42: #{tpu_custom_call.1} parent=1 // pred_check
      _
    $region43: #{tpu_custom_call.1} parent=1 // pred_check_branch
      %88 = sbr.rel (0) target = $region45
    $region44: #{tpu_custom_call.1} parent=1 // pred_region
      %89 = dma.done [#allocation6], 1024
    $region45: #{tpu_custom_call.1} parent=1 // pred_fallthru
      _
    // Predicated region
    $region46: #{tpu_custom_call.1} parent=1 // pred_check
      _
    $region47: #{tpu_custom_call.1} parent=1 // pred_check_branch
      %91 = sbr.rel (0) target = $region49
    $region48: #{tpu_custom_call.1} parent=1 // pred_region
      %92 = dma.done [#allocation6], 2048
    $region49: #{tpu_custom_call.1} parent=1 // pred_fallthru
      _
    // Predicated region
    $region50: #{tpu_custom_call.1} parent=1 // pred_check
      _
    $region51: #{tpu_custom_call.1} parent=1 // pred_check_branch
      %94 = sbr.rel (0) target = $region53
    $region52: #{tpu_custom_call.1} parent=1 // pred_region
      %95 = dma.done [#allocation9], 8192
    $region53: #{tpu_custom_call.1} parent=1 // pred_fallthru
      _
    // Predicated region
    $region54: #{tpu_custom_call.1} parent=1 // pred_check
      _
    $region55: #{tpu_custom_call.1} parent=1 // pred_check_branch
      %97 = sbr.rel (0) target = $region57
    $region56: #{tpu_custom_call.1} parent=1 // pred_region
      %98 = dma.done [#allocation9], 28672
    $region57: #{tpu_custom_call.1} parent=1 // pred_fallthru
      _
    %v100 = vld [vmem:[#allocation2] sm:$0xff]
    %v101 = vpack.c.bf16 %v100, %v100
    %v102 = vld [vmem:[#allocation5] sm:$0xf]
    %v103 = vld [vmem:[#allocation5 + $0x4] sm:$0xf]
    %v104 = vld [vmem:[#allocation5 + $0x8] sm:$0xf]
    %v105 = vld [vmem:[#allocation5 + $0xc] sm:$0xf]
    %v106 = vld [vmem:[#allocation5 + $0x10] sm:$0xf]
    %v107 = vld [vmem:[#allocation5 + $0x14] sm:$0xf]
    %v108 = vld [vmem:[#allocation5 + $0x18] sm:$0xf]
    %v109 = vld [vmem:[#allocation5 + $0x1c] sm:$0xf]
    %v110 = vld [vmem:[#allocation5 + $0x20] sm:$0xf]
    %v111 = vld [vmem:[#allocation5 + $0x24] sm:$0xf]
    %v112 = vld [vmem:[#allocation5 + $0x28] sm:$0xf]
    %v113 = vld [vmem:[#allocation5 + $0x2c] sm:$0xf]
    %v114 = vld [vmem:[#allocation5 + $0x30] sm:$0xf]
    %v115 = vld [vmem:[#allocation5 + $0x34] sm:$0xf]
    %v116 = vld [vmem:[#allocation5 + $0x38] sm:$0xf]
    %v117 = vld [vmem:[#allocation5 + $0x3c] sm:$0xf]
    %v118 = vld [vmem:[%s2] sm:$0x1]
    %v120 = vlaneseq
    %v121 = vshrl.u32 %v120, 7
    %v122 = vsub.s32 0, %v121
    %v123 = vrot.slane %v118, %v122
    %v141 = vunpack.c.l.b16 %v102
    %v142 = vunpack.c.l.b16 %v103
    %v143 = vunpack.c.l.b16 %v104
    %v144 = vunpack.c.l.b16 %v105
    %v145 = vunpack.c.l.b16 %v106
    %v146 = vunpack.c.l.b16 %v107
    %v147 = vunpack.c.l.b16 %v108
    %v148 = vunpack.c.l.b16 %v109
    %v149 = vunpack.c.l.b16 %v110
    %v150 = vunpack.c.l.b16 %v111
    %v151 = vunpack.c.l.b16 %v112
    %v152 = vunpack.c.l.b16 %v113
    %v153 = vunpack.c.l.b16 %v114
    %v154 = vunpack.c.l.b16 %v115
    %v155 = vunpack.c.l.b16 %v116
    %v156 = vunpack.c.l.b16 %v117
    %v157 = vpack.c.b16 %v142, %v141
    %v158 = vpack.c.b16 %v144, %v143
    %v159 = vpack.c.b16 %v146, %v145
    %v160 = vpack.c.b16 %v148, %v147
    %v161 = vpack.c.b16 %v150, %v149
    %v162 = vpack.c.b16 %v152, %v151
    %v163 = vpack.c.b16 %v154, %v153
    %v164 = vpack.c.b16 %v156, %v155
    %173 = vmatprep.subr.bf16.mxu0 0
    %174 = vmatpush1.bf16.msra.mxu0 %v157
    %175 = vmatprep.subr.bf16.mxu0 0
    %176 = vmatpush1.bf16.msra.mxu0 %v158
    %177 = vmatprep.subr.bf16.mxu0 0
    %178 = vmatpush1.bf16.msra.mxu0 %v159
    %179 = vmatprep.subr.bf16.mxu0 0
    %180 = vmatpush1.bf16.msra.mxu0 %v160
    %181 = vmatprep.subr.bf16.mxu0 0
    %182 = vmatpush1.bf16.msra.mxu0 %v161
    %183 = vmatprep.subr.bf16.mxu0 0
    %184 = vmatpush1.bf16.msra.mxu0 %v162
    %185 = vmatprep.subr.bf16.mxu0 0
    %186 = vmatpush1.bf16.msra.mxu0 %v163
    %187 = vmatprep.subr.bf16.mxu0 0
    %188 = vmatpush1.bf16.msra.mxu0 %v164
    %189 = vmatprep.subr.bf16.mxu0 0
    %190 = vmatpush1.bf16.msra.mxu0 0
    %191 = vmatprep.subr.bf16.mxu0 0
    %192 = vmatpush1.bf16.msra.mxu0 0
    %193 = vmatprep.subr.bf16.mxu0 0
    %194 = vmatpush1.bf16.msra.mxu0 0
    %195 = vmatprep.subr.bf16.mxu0 0
    %196 = vmatpush1.bf16.msra.mxu0 0
    %197 = vmatprep.subr.bf16.mxu0 0
    %198 = vmatpush1.bf16.msra.mxu0 0
    %199 = vmatprep.subr.bf16.mxu0 0
    %200 = vmatpush1.bf16.msra.mxu0 0
    %201 = vmatprep.subr.bf16.mxu0 0
    %202 = vmatpush1.bf16.msra.mxu0 0
    %203 = vmatprep.subr.bf16.mxu0 0
    %204 = vmatpush1.bf16.msra.mxu0 0
    %205 = vmatprep.mubr.bf16.mxu0 0
    %206 = vmatmul.mubr.bf16.gmra.mrb[0].mxu0 %v101
    %v207 = vpop.f32.mrb[0].mxu0
    %v208 = vadd.f32 %v123, %v207
    %v209 = vpop.f32.mrb[0].mxu0
    %v210 = vpop.f32.mrb[0].mxu0
    %v211 = vpop.f32.mrb[0].mxu0
    %212 = vdwg.mxu0
    %v213 = vmax.f32 %v208, 0.0
    %v214 = vpack.c.bf16 %v213, %v213
    %v215 = vld [vmem:[#allocation7] sm:$0xff]
    %v216 = vld [vmem:[#allocation7 + $0x8] sm:$0xff]
    %v217 = vld [vmem:[#allocation7 + $0x10] sm:$0xff]
    %v218 = vld [vmem:[#allocation7 + $0x18] sm:$0xff]
    %v219 = vld [vmem:[#allocation7 + $0x20] sm:$0xff]
    %v220 = vld [vmem:[#allocation7 + $0x28] sm:$0xff]
    %v221 = vld [vmem:[#allocation7 + $0x30] sm:$0xff]
    %v222 = vld [vmem:[#allocation7 + $0x38] sm:$0xff]
    %v223 = vld [vmem:[#allocation7 + $0x40] sm:$0xff]
    %v224 = vld [vmem:[#allocation7 + $0x48] sm:$0xff]
    %v225 = vld [vmem:[#allocation7 + $0x50] sm:$0xff]
    %v226 = vld [vmem:[#allocation7 + $0x58] sm:$0xff]
    %v227 = vld [vmem:[#allocation7 + $0x60] sm:$0xff]
    %v228 = vld [vmem:[#allocation7 + $0x68] sm:$0xff]
    %v229 = vld [vmem:[#allocation7 + $0x70] sm:$0xff]
    %v230 = vld [vmem:[#allocation7 + $0x78] sm:$0xff]
    %v231 = vld [vmem:[%s4] sm:$0x3]
    %v233 = vlaneseq
    %v234 = vshrl.u32 %v233, 7
    %v235 = vsub.s32 0, %v234
    %v236 = vrot.slane %v231, %v235
    %v237 = vlaneseq
    %v238 = vshrl.u32 %v237, 7
    %v239 = vsub.s32 1, %v238
    %v240 = vrot.slane %v231, %v239
    %v259 = vunpack.c.l.b16 %v215
    %v260 = vunpack.c.h.b16 %v215
    %v261 = vunpack.c.l.b16 %v216
    %v262 = vunpack.c.h.b16 %v216
    %v263 = vunpack.c.l.b16 %v217
    %v264 = vunpack.c.h.b16 %v217
    %v265 = vunpack.c.l.b16 %v218
    %v266 = vunpack.c.h.b16 %v218
    %v267 = vunpack.c.l.b16 %v219
    %v268 = vunpack.c.h.b16 %v219
    %v269 = vunpack.c.l.b16 %v220
    %v270 = vunpack.c.h.b16 %v220
    %v271 = vunpack.c.l.b16 %v221
    %v272 = vunpack.c.h.b16 %v221
    %v273 = vunpack.c.l.b16 %v222
    %v274 = vunpack.c.h.b16 %v222
    %v275 = vunpack.c.l.b16 %v223
    %v276 = vunpack.c.h.b16 %v223
    %v277 = vunpack.c.l.b16 %v224
    %v278 = vunpack.c.h.b16 %v224
    %v279 = vunpack.c.l.b16 %v225
    %v280 = vunpack.c.h.b16 %v225
    %v281 = vunpack.c.l.b16 %v226
    %v282 = vunpack.c.h.b16 %v226
    %v283 = vunpack.c.l.b16 %v227
    %v284 = vunpack.c.h.b16 %v227
    %v285 = vunpack.c.l.b16 %v228
    %v286 = vunpack.c.h.b16 %v228
    %v287 = vunpack.c.l.b16 %v229
    %v288 = vunpack.c.h.b16 %v229
    %v289 = vunpack.c.l.b16 %v230
    %v290 = vunpack.c.h.b16 %v230
    %v291 = vpack.c.b16 %v261, %v259
    %v292 = vpack.c.b16 %v262, %v260
    %v293 = vpack.c.b16 %v265, %v263
    %v294 = vpack.c.b16 %v266, %v264
    %v295 = vpack.c.b16 %v269, %v267
    %v296 = vpack.c.b16 %v270, %v268
    %v297 = vpack.c.b16 %v273, %v271
    %v298 = vpack.c.b16 %v274, %v272
    %v299 = vpack.c.b16 %v277, %v275
    %v300 = vpack.c.b16 %v278, %v276
    %v301 = vpack.c.b16 %v281, %v279
    %v302 = vpack.c.b16 %v282, %v280
    %v303 = vpack.c.b16 %v285, %v283
    %v304 = vpack.c.b16 %v286, %v284
    %v305 = vpack.c.b16 %v289, %v287
    %v306 = vpack.c.b16 %v290, %v288
    %323 = vmatprep.subr.bf16.mxu0 %v292
    %324 = vmatpush1.bf16.msra.mxu0 %v291
    %325 = vmatprep.subr.bf16.mxu0 %v294
    %326 = vmatpush1.bf16.msra.mxu0 %v293
    %327 = vmatprep.subr.bf16.mxu0 %v296
    %328 = vmatpush1.bf16.msra.mxu0 %v295
    %329 = vmatprep.subr.bf16.mxu0 %v298
    %330 = vmatpush1.bf16.msra.mxu0 %v297
    %331 = vmatprep.subr.bf16.mxu0 %v300
    %332 = vmatpush1.bf16.msra.mxu0 %v299
    %333 = vmatprep.subr.bf16.mxu0 %v302
    %334 = vmatpush1.bf16.msra.mxu0 %v301
    %335 = vmatprep.subr.bf16.mxu0 %v304
    %336 = vmatpush1.bf16.msra.mxu0 %v303
    %337 = vmatprep.subr.bf16.mxu0 %v306
    %338 = vmatpush1.bf16.msra.mxu0 %v305
    %339 = vmatprep.subr.bf16.mxu0 0
    %340 = vmatpush1.bf16.msra.mxu0 0
    %341 = vmatprep.subr.bf16.mxu0 0
    %342 = vmatpush1.bf16.msra.mxu0 0
    %343 = vmatprep.subr.bf16.mxu0 0
    %344 = vmatpush1.bf16.msra.mxu0 0
    %345 = vmatprep.subr.bf16.mxu0 0
    %346 = vmatpush1.bf16.msra.mxu0 0
    %347 = vmatprep.subr.bf16.mxu0 0
    %348 = vmatpush1.bf16.msra.mxu0 0
    %349 = vmatprep.subr.bf16.mxu0 0
    %350 = vmatpush1.bf16.msra.mxu0 0
    %351 = vmatprep.subr.bf16.mxu0 0
    %352 = vmatpush1.bf16.msra.mxu0 0
    %353 = vmatprep.subr.bf16.mxu0 0
    %354 = vmatpush1.bf16.msra.mxu0 0
    %355 = vmatprep.mubr.bf16.mxu0 0
    %356 = vmatmul.mubr.bf16.gmra.mrb[0].mxu0 %v214
    %v357 = vpop.f32.mrb[0].mxu0
    %v358 = vadd.f32 %v236, %v357
    %v359 = vpop.f32.mrb[0].mxu0
    %v360 = vadd.f32 %v240, %v359
    %v361 = vpop.f32.mrb[0].mxu0
    %v362 = vpop.f32.mrb[0].mxu0
    %363 = vdwg.mxu0
    %v364 = vmax.f32 %v358, 0.0
    %v365 = vmax.f32 %v360, 0.0
    %v366 = vpack.c.bf16 %v364, %v364
    %v367 = vpack.c.bf16 %v365, %v365
    %v368 = vld [vmem:[#allocation8] sm:$0xff]
    %v369 = vld [vmem:[#allocation8 + $0x8] sm:$0xff]
    %v370 = vld [vmem:[#allocation8 + $0x10] sm:$0xff]
    %v371 = vld [vmem:[#allocation8 + $0x18] sm:$0xff]
    %v372 = vld [vmem:[#allocation8 + $0x20] sm:$0xff]
    %v373 = vld [vmem:[#allocation8 + $0x28] sm:$0xff]
    %v374 = vld [vmem:[#allocation8 + $0x30] sm:$0xff]
    %v375 = vld [vmem:[#allocation8 + $0x38] sm:$0xff]
    %v376 = vld [vmem:[#allocation8 + $0x40] sm:$0xff]
    %v377 = vld [vmem:[#allocation8 + $0x48] sm:$0xff]
    %v378 = vld [vmem:[#allocation8 + $0x50] sm:$0xff]
    %v379 = vld [vmem:[#allocation8 + $0x58] sm:$0xff]
    %v380 = vld [vmem:[#allocation8 + $0x60] sm:$0xff]
    %v381 = vld [vmem:[#allocation8 + $0x68] sm:$0xff]
    %v382 = vld [vmem:[#allocation8 + $0x70] sm:$0xff]
    %v383 = vld [vmem:[#allocation8 + $0x78] sm:$0xff]
    %v384 = vld [vmem:[#allocation8 + $0x80] sm:$0xff]
    %v385 = vld [vmem:[#allocation8 + $0x88] sm:$0xff]
    %v386 = vld [vmem:[#allocation8 + $0x90] sm:$0xff]
    %v387 = vld [vmem:[#allocation8 + $0x98] sm:$0xff]
    %v388 = vld [vmem:[#allocation8 + $0xa0] sm:$0xff]
    %v389 = vld [vmem:[#allocation8 + $0xa8] sm:$0xff]
    %v390 = vld [vmem:[#allocation8 + $0xb0] sm:$0xff]
    %v391 = vld [vmem:[#allocation8 + $0xb8] sm:$0xff]
    %v392 = vld [vmem:[#allocation8 + $0xc0] sm:$0xff]
    %v393 = vld [vmem:[#allocation8 + $0xc8] sm:$0xff]
    %v394 = vld [vmem:[#allocation8 + $0xd0] sm:$0xff]
    %v395 = vld [vmem:[#allocation8 + $0xd8] sm:$0xff]
    %v396 = vld [vmem:[#allocation8 + $0xe0] sm:$0xff]
    %v397 = vld [vmem:[#allocation8 + $0xe8] sm:$0xff]
    %v398 = vld [vmem:[#allocation8 + $0xf0] sm:$0xff]
    %v399 = vld [vmem:[#allocation8 + $0xf8] sm:$0xff]
    %v400 = vld [vmem:[#allocation8 + $0x100] sm:$0xff]
    %v401 = vld [vmem:[#allocation8 + $0x108] sm:$0xff]
    %v402 = vld [vmem:[#allocation8 + $0x110] sm:$0xff]
    %v403 = vld [vmem:[#allocation8 + $0x118] sm:$0xff]
    %v404 = vld [vmem:[#allocation8 + $0x120] sm:$0xff]
    %v405 = vld [vmem:[#allocation8 + $0x128] sm:$0xff]
    %v406 = vld [vmem:[#allocation8 + $0x130] sm:$0xff]
    %v407 = vld [vmem:[#allocation8 + $0x138] sm:$0xff]
    %v408 = vld [vmem:[#allocation8 + $0x140] sm:$0xff]
    %v409 = vld [vmem:[#allocation8 + $0x148] sm:$0xff]
    %v410 = vld [vmem:[#allocation8 + $0x150] sm:$0xff]
    %v411 = vld [vmem:[#allocation8 + $0x158] sm:$0xff]
    %v412 = vld [vmem:[#allocation8 + $0x160] sm:$0xff]
    %v413 = vld [vmem:[#allocation8 + $0x168] sm:$0xff]
    %v414 = vld [vmem:[#allocation8 + $0x170] sm:$0xff]
    %v415 = vld [vmem:[#allocation8 + $0x178] sm:$0xff]
    %v416 = vld [vmem:[#allocation8 + $0x180] sm:$0xff]
    %v417 = vld [vmem:[#allocation8 + $0x188] sm:$0xff]
    %v418 = vld [vmem:[#allocation8 + $0x190] sm:$0xff]
    %v419 = vld [vmem:[#allocation8 + $0x198] sm:$0xff]
    %v420 = vld [vmem:[#allocation8 + $0x1a0] sm:$0xff]
    %v421 = vld [vmem:[#allocation8 + $0x1a8] sm:$0xff]
    %v422 = vld [vmem:[#allocation8 + $0x1b0] sm:$0xff]
    %v423 = vld [vmem:[#allocation8 + $0x1b8] sm:$0xff]
    %v424 = vld [vmem:[#allocation8 + $0x1c0] sm:$0xff]
    %v425 = vld [vmem:[#allocation8 + $0x1c8] sm:$0xff]
    %v426 = vld [vmem:[#allocation8 + $0x1d0] sm:$0xff]
    %v427 = vld [vmem:[#allocation8 + $0x1d8] sm:$0xff]
    %v428 = vld [vmem:[#allocation8 + $0x1e0] sm:$0xff]
    %v429 = vld [vmem:[#allocation8 + $0x1e8] sm:$0xff]
    %v430 = vld [vmem:[#allocation8 + $0x1f0] sm:$0xff]
    %v431 = vld [vmem:[#allocation8 + $0x1f8] sm:$0xff]
    %v432 = vld [vmem:[%s6] sm:$0xf]
    %v434 = vlaneseq
    %v435 = vshrl.u32 %v434, 7
    %v436 = vsub.s32 0, %v435
    %v437 = vrot.slane %v432, %v436
    %v438 = vlaneseq
    %v439 = vshrl.u32 %v438, 7
    %v440 = vsub.s32 1, %v439
    %v441 = vrot.slane %v432, %v440
    %v442 = vlaneseq
    %v443 = vshrl.u32 %v442, 7
    %v444 = vsub.s32 2, %v443
    %v445 = vrot.slane %v432, %v444
    %v446 = vlaneseq
    %v447 = vshrl.u32 %v446, 7
    %v448 = vsub.s32 3, %v447
    %v449 = vrot.slane %v432, %v448
    %v518 = vunpack.c.l.b16 %v368
    %v519 = vunpack.c.h.b16 %v368
    %v520 = vunpack.c.l.b16 %v369
    %v521 = vunpack.c.h.b16 %v369
    %v522 = vunpack.c.l.b16 %v370
    %v523 = vunpack.c.h.b16 %v370
    %v524 = vunpack.c.l.b16 %v371
    %v525 = vunpack.c.h.b16 %v371
    %v526 = vunpack.c.l.b16 %v372
    %v527 = vunpack.c.h.b16 %v372
    %v528 = vunpack.c.l.b16 %v373
    %v529 = vunpack.c.h.b16 %v373
    %v530 = vunpack.c.l.b16 %v374
    %v531 = vunpack.c.h.b16 %v374
    %v532 = vunpack.c.l.b16 %v375
    %v533 = vunpack.c.h.b16 %v375
    %v534 = vunpack.c.l.b16 %v376
    %v535 = vunpack.c.h.b16 %v376
    %v536 = vunpack.c.l.b16 %v377
    %v537 = vunpack.c.h.b16 %v377
    %v538 = vunpack.c.l.b16 %v378
    %v539 = vunpack.c.h.b16 %v378
    %v540 = vunpack.c.l.b16 %v379
    %v541 = vunpack.c.h.b16 %v379
    %v542 = vunpack.c.l.b16 %v380
    %v543 = vunpack.c.h.b16 %v380
    %v544 = vunpack.c.l.b16 %v381
    %v545 = vunpack.c.h.b16 %v381
    %v546 = vunpack.c.l.b16 %v382
    %v547 = vunpack.c.h.b16 %v382
    %v548 = vunpack.c.l.b16 %v383
    %v549 = vunpack.c.h.b16 %v383
    %v550 = vunpack.c.l.b16 %v384
    %v551 = vunpack.c.h.b16 %v384
    %v552 = vunpack.c.l.b16 %v385
    %v553 = vunpack.c.h.b16 %v385
    %v554 = vunpack.c.l.b16 %v386
    %v555 = vunpack.c.h.b16 %v386
    %v556 = vunpack.c.l.b16 %v387
    %v557 = vunpack.c.h.b16 %v387
    %v558 = vunpack.c.l.b16 %v388
    %v559 = vunpack.c.h.b16 %v388
    %v560 = vunpack.c.l.b16 %v389
    %v561 = vunpack.c.h.b16 %v389
    %v562 = vunpack.c.l.b16 %v390
    %v563 = vunpack.c.h.b16 %v390
    %v564 = vunpack.c.l.b16 %v391
    %v565 = vunpack.c.h.b16 %v391
    %v566 = vunpack.c.l.b16 %v392
    %v567 = vunpack.c.h.b16 %v392
    %v568 = vunpack.c.l.b16 %v393
    %v569 = vunpack.c.h.b16 %v393
    %v570 = vunpack.c.l.b16 %v394
    %v571 = vunpack.c.h.b16 %v394
    %v572 = vunpack.c.l.b16 %v395
    %v573 = vunpack.c.h.b16 %v395
    %v574 = vunpack.c.l.b16 %v396
    %v575 = vunpack.c.h.b16 %v396
    %v576 = vunpack.c.l.b16 %v397
    %v577 = vunpack.c.h.b16 %v397
    %v578 = vunpack.c.l.b16 %v398
    %v579 = vunpack.c.h.b16 %v398
    %v580 = vunpack.c.l.b16 %v399
    %v581 = vunpack.c.h.b16 %v399
    %v582 = vunpack.c.l.b16 %v400
    %v583 = vunpack.c.h.b16 %v400
    %v584 = vunpack.c.l.b16 %v401
    %v585 = vunpack.c.h.b16 %v401
    %v586 = vunpack.c.l.b16 %v402
    %v587 = vunpack.c.h.b16 %v402
    %v588 = vunpack.c.l.b16 %v403
    %v589 = vunpack.c.h.b16 %v403
    %v590 = vunpack.c.l.b16 %v404
    %v591 = vunpack.c.h.b16 %v404
    %v592 = vunpack.c.l.b16 %v405
    %v593 = vunpack.c.h.b16 %v405
    %v594 = vunpack.c.l.b16 %v406
    %v595 = vunpack.c.h.b16 %v406
    %v596 = vunpack.c.l.b16 %v407
    %v597 = vunpack.c.h.b16 %v407
    %v598 = vunpack.c.l.b16 %v408
    %v599 = vunpack.c.h.b16 %v408
    %v600 = vunpack.c.l.b16 %v409
    %v601 = vunpack.c.h.b16 %v409
    %v602 = vunpack.c.l.b16 %v410
    %v603 = vunpack.c.h.b16 %v410
    %v604 = vunpack.c.l.b16 %v411
    %v605 = vunpack.c.h.b16 %v411
    %v606 = vunpack.c.l.b16 %v412
    %v607 = vunpack.c.h.b16 %v412
    %v608 = vunpack.c.l.b16 %v413
    %v609 = vunpack.c.h.b16 %v413
    %v610 = vunpack.c.l.b16 %v414
    %v611 = vunpack.c.h.b16 %v414
    %v612 = vunpack.c.l.b16 %v415
    %v613 = vunpack.c.h.b16 %v415
    %v614 = vunpack.c.l.b16 %v416
    %v615 = vunpack.c.h.b16 %v416
    %v616 = vunpack.c.l.b16 %v417
    %v617 = vunpack.c.h.b16 %v417
    %v618 = vunpack.c.l.b16 %v418
    %v619 = vunpack.c.h.b16 %v418
    %v620 = vunpack.c.l.b16 %v419
    %v621 = vunpack.c.h.b16 %v419
    %v622 = vunpack.c.l.b16 %v420
    %v623 = vunpack.c.h.b16 %v420
    %v624 = vunpack.c.l.b16 %v421
    %v625 = vunpack.c.h.b16 %v421
    %v626 = vunpack.c.l.b16 %v422
    %v627 = vunpack.c.h.b16 %v422
    %v628 = vunpack.c.l.b16 %v423
    %v629 = vunpack.c.h.b16 %v423
    %v630 = vunpack.c.l.b16 %v424
    %v631 = vunpack.c.h.b16 %v424
    %v632 = vunpack.c.l.b16 %v425
    %v633 = vunpack.c.h.b16 %v425
    %v634 = vunpack.c.l.b16 %v426
    %v635 = vunpack.c.h.b16 %v426
    %v636 = vunpack.c.l.b16 %v427
    %v637 = vunpack.c.h.b16 %v427
    %v638 = vunpack.c.l.b16 %v428
    %v639 = vunpack.c.h.b16 %v428
    %v640 = vunpack.c.l.b16 %v429
    %v641 = vunpack.c.h.b16 %v429
    %v642 = vunpack.c.l.b16 %v430
    %v643 = vunpack.c.h.b16 %v430
    %v644 = vunpack.c.l.b16 %v431
    %v645 = vunpack.c.h.b16 %v431
    %v646 = vpack.c.b16 %v522, %v518
    %v647 = vpack.c.b16 %v523, %v519
    %v648 = vpack.c.b16 %v524, %v520
    %v649 = vpack.c.b16 %v525, %v521
    %v650 = vpack.c.b16 %v530, %v526
    %v651 = vpack.c.b16 %v531, %v527
    %v652 = vpack.c.b16 %v532, %v528
    %v653 = vpack.c.b16 %v533, %v529
    %v654 = vpack.c.b16 %v538, %v534
    %v655 = vpack.c.b16 %v539, %v535
    %v656 = vpack.c.b16 %v540, %v536
    %v657 = vpack.c.b16 %v541, %v537
    %v658 = vpack.c.b16 %v546, %v542
    %v659 = vpack.c.b16 %v547, %v543
    %v660 = vpack.c.b16 %v548, %v544
    %v661 = vpack.c.b16 %v549, %v545
    %v662 = vpack.c.b16 %v554, %v550
    %v663 = vpack.c.b16 %v555, %v551
    %v664 = vpack.c.b16 %v556, %v552
    %v665 = vpack.c.b16 %v557, %v553
    %v666 = vpack.c.b16 %v562, %v558
    %v667 = vpack.c.b16 %v563, %v559
    %v668 = vpack.c.b16 %v564, %v560
    %v669 = vpack.c.b16 %v565, %v561
    %v670 = vpack.c.b16 %v570, %v566
    %v671 = vpack.c.b16 %v571, %v567
    %v672 = vpack.c.b16 %v572, %v568
    %v673 = vpack.c.b16 %v573, %v569
    %v674 = vpack.c.b16 %v578, %v574
    %v675 = vpack.c.b16 %v579, %v575
    %v676 = vpack.c.b16 %v580, %v576
    %v677 = vpack.c.b16 %v581, %v577
    %v678 = vpack.c.b16 %v586, %v582
    %v679 = vpack.c.b16 %v587, %v583
    %v680 = vpack.c.b16 %v588, %v584
    %v681 = vpack.c.b16 %v589, %v585
    %v682 = vpack.c.b16 %v594, %v590
    %v683 = vpack.c.b16 %v595, %v591
    %v684 = vpack.c.b16 %v596, %v592
    %v685 = vpack.c.b16 %v597, %v593
    %v686 = vpack.c.b16 %v602, %v598
    %v687 = vpack.c.b16 %v603, %v599
    %v688 = vpack.c.b16 %v604, %v600
    %v689 = vpack.c.b16 %v605, %v601
    %v690 = vpack.c.b16 %v610, %v606
    %v691 = vpack.c.b16 %v611, %v607
    %v692 = vpack.c.b16 %v612, %v608
    %v693 = vpack.c.b16 %v613, %v609
    %v694 = vpack.c.b16 %v618, %v614
    %v695 = vpack.c.b16 %v619, %v615
    %v696 = vpack.c.b16 %v620, %v616
    %v697 = vpack.c.b16 %v621, %v617
    %v698 = vpack.c.b16 %v626, %v622
    %v699 = vpack.c.b16 %v627, %v623
    %v700 = vpack.c.b16 %v628, %v624
    %v701 = vpack.c.b16 %v629, %v625
    %v702 = vpack.c.b16 %v634, %v630
    %v703 = vpack.c.b16 %v635, %v631
    %v704 = vpack.c.b16 %v636, %v632
    %v705 = vpack.c.b16 %v637, %v633
    %v706 = vpack.c.b16 %v642, %v638
    %v707 = vpack.c.b16 %v643, %v639
    %v708 = vpack.c.b16 %v644, %v640
    %v709 = vpack.c.b16 %v645, %v641
    %774 = vmatprep.subr.bf16.mxu0 %v647
    %775 = vmatpush1.bf16.msra.mxu0 %v646
    %776 = vmatprep.subr.bf16.mxu0 %v651
    %777 = vmatpush1.bf16.msra.mxu0 %v650
    %778 = vmatprep.subr.bf16.mxu0 %v655
    %779 = vmatpush1.bf16.msra.mxu0 %v654
    %780 = vmatprep.subr.bf16.mxu0 %v659
    %781 = vmatpush1.bf16.msra.mxu0 %v658
    %782 = vmatprep.subr.bf16.mxu0 %v663
    %783 = vmatpush1.bf16.msra.mxu0 %v662
    %784 = vmatprep.subr.bf16.mxu0 %v667
    %785 = vmatpush1.bf16.msra.mxu0 %v666
    %786 = vmatprep.subr.bf16.mxu0 %v671
    %787 = vmatpush1.bf16.msra.mxu0 %v670
    %788 = vmatprep.subr.bf16.mxu0 %v675
    %789 = vmatpush1.bf16.msra.mxu0 %v674
    %790 = vmatprep.subr.bf16.mxu0 %v679
    %791 = vmatpush1.bf16.msra.mxu0 %v678
    %792 = vmatprep.subr.bf16.mxu0 %v683
    %793 = vmatpush1.bf16.msra.mxu0 %v682
    %794 = vmatprep.subr.bf16.mxu0 %v687
    %795 = vmatpush1.bf16.msra.mxu0 %v686
    %796 = vmatprep.subr.bf16.mxu0 %v691
    %797 = vmatpush1.bf16.msra.mxu0 %v690
    %798 = vmatprep.subr.bf16.mxu0 %v695
    %799 = vmatpush1.bf16.msra.mxu0 %v694
    %800 = vmatprep.subr.bf16.mxu0 %v699
    %801 = vmatpush1.bf16.msra.mxu0 %v698
    %802 = vmatprep.subr.bf16.mxu0 %v703
    %803 = vmatpush1.bf16.msra.mxu0 %v702
    %804 = vmatprep.subr.bf16.mxu0 %v707
    %805 = vmatpush1.bf16.msra.mxu0 %v706
    %806 = vmatprep.mubr.bf16.mxu0 %v367
    %807 = vmatmul.mubr.bf16.gmra.mrb[0].mxu0 %v366
    %v808 = vpop.f32.mrb[0].mxu0
    %v809 = vadd.f32 %v437, %v808
    %v810 = vpop.f32.mrb[0].mxu0
    %v811 = vadd.f32 %v441, %v810
    %v812 = vpop.f32.mrb[0].mxu0
    %v813 = vpop.f32.mrb[0].mxu0
    %814 = vdwg.mxu0
    %815 = vmatprep.subr.bf16.mxu0 %v649
    %816 = vmatpush1.bf16.msra.mxu0 %v648
    %817 = vmatprep.subr.bf16.mxu0 %v653
    %818 = vmatpush1.bf16.msra.mxu0 %v652
    %819 = vmatprep.subr.bf16.mxu0 %v657
    %820 = vmatpush1.bf16.msra.mxu0 %v656
    %821 = vmatprep.subr.bf16.mxu0 %v661
    %822 = vmatpush1.bf16.msra.mxu0 %v660
    %823 = vmatprep.subr.bf16.mxu0 %v665
    %824 = vmatpush1.bf16.msra.mxu0 %v664
    %825 = vmatprep.subr.bf16.mxu0 %v669
    %826 = vmatpush1.bf16.msra.mxu0 %v668
    %827 = vmatprep.subr.bf16.mxu0 %v673
    %828 = vmatpush1.bf16.msra.mxu0 %v672
    %829 = vmatprep.subr.bf16.mxu0 %v677
    %830 = vmatpush1.bf16.msra.mxu0 %v676
    %831 = vmatprep.subr.bf16.mxu0 %v681
    %832 = vmatpush1.bf16.msra.mxu0 %v680
    %833 = vmatprep.subr.bf16.mxu0 %v685
    %834 = vmatpush1.bf16.msra.mxu0 %v684
    %835 = vmatprep.subr.bf16.mxu0 %v689
    %836 = vmatpush1.bf16.msra.mxu0 %v688
    %837 = vmatprep.subr.bf16.mxu0 %v693
    %838 = vmatpush1.bf16.msra.mxu0 %v692
    %839 = vmatprep.subr.bf16.mxu0 %v697
    %840 = vmatpush1.bf16.msra.mxu0 %v696
    %841 = vmatprep.subr.bf16.mxu0 %v701
    %842 = vmatpush1.bf16.msra.mxu0 %v700
    %843 = vmatprep.subr.bf16.mxu0 %v705
    %844 = vmatpush1.bf16.msra.mxu0 %v704
    %845 = vmatprep.subr.bf16.mxu0 %v709
    %846 = vmatpush1.bf16.msra.mxu0 %v708
    %847 = vmatprep.mubr.bf16.mxu0 %v367
    %848 = vmatmul.mubr.bf16.gmra.mrb[0].mxu0 %v366
    %v849 = vpop.f32.mrb[0].mxu0
    %v850 = vadd.f32 %v445, %v849
    %v851 = vpop.f32.mrb[0].mxu0
    %v852 = vadd.f32 %v449, %v851
    %v853 = vpop.f32.mrb[0].mxu0
    %v854 = vpop.f32.mrb[0].mxu0
    %855 = vdwg.mxu0
    %v856 = vmax.f32 %v809, 0.0
    %v857 = vmax.f32 %v811, 0.0
    %v858 = vmax.f32 %v850, 0.0
    %v859 = vmax.f32 %v852, 0.0
    %v860 = vpack.c.bf16 %v856, %v856
    %v861 = vpack.c.bf16 %v857, %v857
    %v862 = vpack.c.bf16 %v858, %v858
    %v863 = vpack.c.bf16 %v859, %v859
    %v864 = vld [vmem:[#allocation10] sm:$0xff]
    %v865 = vld [vmem:[#allocation10 + $0x8] sm:$0xff]
    %v866 = vld [vmem:[#allocation10 + $0x10] sm:$0xff]
    %v867 = vld [vmem:[#allocation10 + $0x18] sm:$0xf]
    %v868 = vld [vmem:[#allocation10 + $0x1c] sm:$0xff]
    %v869 = vld [vmem:[#allocation10 + $0x24] sm:$0xff]
    %v870 = vld [vmem:[#allocation10 + $0x2c] sm:$0xff]
    %v871 = vld [vmem:[#allocation10 + $0x34] sm:$0xf]
    %v872 = vld [vmem:[#allocation10 + $0x38] sm:$0xff]
    %v873 = vld [vmem:[#allocation10 + $0x40] sm:$0xff]
    %v874 = vld [vmem:[#allocation10 + $0x48] sm:$0xff]
    %v875 = vld [vmem:[#allocation10 + $0x50] sm:$0xf]
    %v876 = vld [vmem:[#allocation10 + $0x54] sm:$0xff]
    %v877 = vld [vmem:[#allocation10 + $0x5c] sm:$0xff]
    %v878 = vld [vmem:[#allocation10 + $0x64] sm:$0xff]
    %v879 = vld [vmem:[#allocation10 + $0x6c] sm:$0xf]
    %v880 = vld [vmem:[#allocation10 + $0x70] sm:$0xff]
    %v881 = vld [vmem:[#allocation10 + $0x78] sm:$0xff]
    %v882 = vld [vmem:[#allocation10 + $0x80] sm:$0xff]
    %v883 = vld [vmem:[#allocation10 + $0x88] sm:$0xf]
    %v884 = vld [vmem:[#allocation10 + $0x8c] sm:$0xff]
    %v885 = vld [vmem:[#allocation10 + $0x94] sm:$0xff]
    %v886 = vld [vmem:[#allocation10 + $0x9c] sm:$0xff]
    %v887 = vld [vmem:[#allocation10 + $0xa4] sm:$0xf]
    %v888 = vld [vmem:[#allocation10 + $0xa8] sm:$0xff]
    %v889 = vld [vmem:[#allocation10 + $0xb0] sm:$0xff]
    %v890 = vld [vmem:[#allocation10 + $0xb8] sm:$0xff]
    %v891 = vld [vmem:[#allocation10 + $0xc0] sm:$0xf]
    %v892 = vld [vmem:[#allocation10 + $0xc4] sm:$0xff]
    %v893 = vld [vmem:[#allocation10 + $0xcc] sm:$0xff]
    %v894 = vld [vmem:[#allocation10 + $0xd4] sm:$0xff]
    %v895 = vld [vmem:[#allocation10 + $0xdc] sm:$0xf]
    %v896 = vld [vmem:[#allocation10 + $0xe0] sm:$0xff]
    %v897 = vld [vmem:[#allocation10 + $0xe8] sm:$0xff]
    %v898 = vld [vmem:[#allocation10 + $0xf0] sm:$0xff]
    %v899 = vld [vmem:[#allocation10 + $0xf8] sm:$0xf]
    %v900 = vld [vmem:[#allocation10 + $0xfc] sm:$0xff]
    %v901 = vld [vmem:[#allocation10 + $0x104] sm:$0xff]
    %v902 = vld [vmem:[#allocation10 + $0x10c] sm:$0xff]
    %v903 = vld [vmem:[#allocation10 + $0x114] sm:$0xf]
    %v904 = vld [vmem:[#allocation10 + $0x118] sm:$0xff]
    %v905 = vld [vmem:[#allocation10 + $0x120] sm:$0xff]
    %v906 = vld [vmem:[#allocation10 + $0x128] sm:$0xff]
    %v907 = vld [vmem:[#allocation10 + $0x130] sm:$0xf]
    %v908 = vld [vmem:[#allocation10 + $0x134] sm:$0xff]
    %v909 = vld [vmem:[#allocation10 + $0x13c] sm:$0xff]
    %v910 = vld [vmem:[#allocation10 + $0x144] sm:$0xff]
    %v911 = vld [vmem:[#allocation10 + $0x14c] sm:$0xf]
    %v912 = vld [vmem:[#allocation10 + $0x150] sm:$0xff]
    %v913 = vld [vmem:[#allocation10 + $0x158] sm:$0xff]
    %v914 = vld [vmem:[#allocation10 + $0x160] sm:$0xff]
    %v915 = vld [vmem:[#allocation10 + $0x168] sm:$0xf]
    %v916 = vld [vmem:[#allocation10 + $0x16c] sm:$0xff]
    %v917 = vld [vmem:[#allocation10 + $0x174] sm:$0xff]
    %v918 = vld [vmem:[#allocation10 + $0x17c] sm:$0xff]
    %v919 = vld [vmem:[#allocation10 + $0x184] sm:$0xf]
    %v920 = vld [vmem:[#allocation10 + $0x188] sm:$0xff]
    %v921 = vld [vmem:[#allocation10 + $0x190] sm:$0xff]
    %v922 = vld [vmem:[#allocation10 + $0x198] sm:$0xff]
    %v923 = vld [vmem:[#allocation10 + $0x1a0] sm:$0xf]
    %v924 = vld [vmem:[#allocation10 + $0x1a4] sm:$0xff]
    %v925 = vld [vmem:[#allocation10 + $0x1ac] sm:$0xff]
    %v926 = vld [vmem:[#allocation10 + $0x1b4] sm:$0xff]
    %v927 = vld [vmem:[#allocation10 + $0x1bc] sm:$0xf]
    %v928 = vld [vmem:[#allocation10 + $0x1c0] sm:$0xff]
    %v929 = vld [vmem:[#allocation10 + $0x1c8] sm:$0xff]
    %v930 = vld [vmem:[#allocation10 + $0x1d0] sm:$0xff]
    %v931 = vld [vmem:[#allocation10 + $0x1d8] sm:$0xf]
    %v932 = vld [vmem:[#allocation10 + $0x1dc] sm:$0xff]
    %v933 = vld [vmem:[#allocation10 + $0x1e4] sm:$0xff]
    %v934 = vld [vmem:[#allocation10 + $0x1ec] sm:$0xff]
    %v935 = vld [vmem:[#allocation10 + $0x1f4] sm:$0xf]
    %v936 = vld [vmem:[#allocation10 + $0x1f8] sm:$0xff]
    %v937 = vld [vmem:[#allocation10 + $0x200] sm:$0xff]
    %v938 = vld [vmem:[#allocation10 + $0x208] sm:$0xff]
    %v939 = vld [vmem:[#allocation10 + $0x210] sm:$0xf]
    %v940 = vld [vmem:[#allocation10 + $0x214] sm:$0xff]
    %v941 = vld [vmem:[#allocation10 + $0x21c] sm:$0xff]
    %v942 = vld [vmem:[#allocation10 + $0x224] sm:$0xff]
    %v943 = vld [vmem:[#allocation10 + $0x22c] sm:$0xf]
    %v944 = vld [vmem:[#allocation10 + $0x230] sm:$0xff]
    %v945 = vld [vmem:[#allocation10 + $0x238] sm:$0xff]
    %v946 = vld [vmem:[#allocation10 + $0x240] sm:$0xff]
    %v947 = vld [vmem:[#allocation10 + $0x248] sm:$0xf]
    %v948 = vld [vmem:[#allocation10 + $0x24c] sm:$0xff]
    %v949 = vld [vmem:[#allocation10 + $0x254] sm:$0xff]
    %v950 = vld [vmem:[#allocation10 + $0x25c] sm:$0xff]
    %v951 = vld [vmem:[#allocation10 + $0x264] sm:$0xf]
    %v952 = vld [vmem:[#allocation10 + $0x268] sm:$0xff]
    %v953 = vld [vmem:[#allocation10 + $0x270] sm:$0xff]
    %v954 = vld [vmem:[#allocation10 + $0x278] sm:$0xff]
    %v955 = vld [vmem:[#allocation10 + $0x280] sm:$0xf]
    %v956 = vld [vmem:[#allocation10 + $0x284] sm:$0xff]
    %v957 = vld [vmem:[#allocation10 + $0x28c] sm:$0xff]
    %v958 = vld [vmem:[#allocation10 + $0x294] sm:$0xff]
    %v959 = vld [vmem:[#allocation10 + $0x29c] sm:$0xf]
    %v960 = vld [vmem:[#allocation10 + $0x2a0] sm:$0xff]
    %v961 = vld [vmem:[#allocation10 + $0x2a8] sm:$0xff]
    %v962 = vld [vmem:[#allocation10 + $0x2b0] sm:$0xff]
    %v963 = vld [vmem:[#allocation10 + $0x2b8] sm:$0xf]
    %v964 = vld [vmem:[#allocation10 + $0x2bc] sm:$0xff]
    %v965 = vld [vmem:[#allocation10 + $0x2c4] sm:$0xff]
    %v966 = vld [vmem:[#allocation10 + $0x2cc] sm:$0xff]
    %v967 = vld [vmem:[#allocation10 + $0x2d4] sm:$0xf]
    %v968 = vld [vmem:[#allocation10 + $0x2d8] sm:$0xff]
    %v969 = vld [vmem:[#allocation10 + $0x2e0] sm:$0xff]
    %v970 = vld [vmem:[#allocation10 + $0x2e8] sm:$0xff]
    %v971 = vld [vmem:[#allocation10 + $0x2f0] sm:$0xf]
    %v972 = vld [vmem:[#allocation10 + $0x2f4] sm:$0xff]
    %v973 = vld [vmem:[#allocation10 + $0x2fc] sm:$0xff]
    %v974 = vld [vmem:[#allocation10 + $0x304] sm:$0xff]
    %v975 = vld [vmem:[#allocation10 + $0x30c] sm:$0xf]
    %v976 = vld [vmem:[#allocation10 + $0x310] sm:$0xff]
    %v977 = vld [vmem:[#allocation10 + $0x318] sm:$0xff]
    %v978 = vld [vmem:[#allocation10 + $0x320] sm:$0xff]
    %v979 = vld [vmem:[#allocation10 + $0x328] sm:$0xf]
    %v980 = vld [vmem:[#allocation10 + $0x32c] sm:$0xff]
    %v981 = vld [vmem:[#allocation10 + $0x334] sm:$0xff]
    %v982 = vld [vmem:[#allocation10 + $0x33c] sm:$0xff]
    %v983 = vld [vmem:[#allocation10 + $0x344] sm:$0xf]
    %v984 = vld [vmem:[#allocation10 + $0x348] sm:$0xff]
    %v985 = vld [vmem:[#allocation10 + $0x350] sm:$0xff]
    %v986 = vld [vmem:[#allocation10 + $0x358] sm:$0xff]
    %v987 = vld [vmem:[#allocation10 + $0x360] sm:$0xf]
    %v988 = vld [vmem:[#allocation10 + $0x364] sm:$0xff]
    %v989 = vld [vmem:[#allocation10 + $0x36c] sm:$0xff]
    %v990 = vld [vmem:[#allocation10 + $0x374] sm:$0xff]
    %v991 = vld [vmem:[#allocation10 + $0x37c] sm:$0xf]
    %v992 = vld [vmem:[#allocation10 + $0x380] sm:$0xff]
    %v993 = vld [vmem:[#allocation10 + $0x388] sm:$0xff]
    %v994 = vld [vmem:[#allocation10 + $0x390] sm:$0xff]
    %v995 = vld [vmem:[#allocation10 + $0x398] sm:$0xf]
    %v996 = vld [vmem:[#allocation10 + $0x39c] sm:$0xff]
    %v997 = vld [vmem:[#allocation10 + $0x3a4] sm:$0xff]
    %v998 = vld [vmem:[#allocation10 + $0x3ac] sm:$0xff]
    %v999 = vld [vmem:[#allocation10 + $0x3b4] sm:$0xf]
    %v1000 = vld [vmem:[#allocation10 + $0x3b8] sm:$0xff]
    %v1001 = vld [vmem:[#allocation10 + $0x3c0] sm:$0xff]
    %v1002 = vld [vmem:[#allocation10 + $0x3c8] sm:$0xff]
    %v1003 = vld [vmem:[#allocation10 + $0x3d0] sm:$0xf]
    %v1004 = vld [vmem:[#allocation10 + $0x3d4] sm:$0xff]
    %v1005 = vld [vmem:[#allocation10 + $0x3dc] sm:$0xff]
    %v1006 = vld [vmem:[#allocation10 + $0x3e4] sm:$0xff]
    %v1007 = vld [vmem:[#allocation10 + $0x3ec] sm:$0xf]
    %v1008 = vld [vmem:[#allocation10 + $0x3f0] sm:$0xff]
    %v1009 = vld [vmem:[#allocation10 + $0x3f8] sm:$0xff]
    %v1010 = vld [vmem:[#allocation10 + $0x400] sm:$0xff]
    %v1011 = vld [vmem:[#allocation10 + $0x408] sm:$0xf]
    %v1012 = vld [vmem:[#allocation10 + $0x40c] sm:$0xff]
    %v1013 = vld [vmem:[#allocation10 + $0x414] sm:$0xff]
    %v1014 = vld [vmem:[#allocation10 + $0x41c] sm:$0xff]
    %v1015 = vld [vmem:[#allocation10 + $0x424] sm:$0xf]
    %v1016 = vld [vmem:[#allocation10 + $0x428] sm:$0xff]
    %v1017 = vld [vmem:[#allocation10 + $0x430] sm:$0xff]
    %v1018 = vld [vmem:[#allocation10 + $0x438] sm:$0xff]
    %v1019 = vld [vmem:[#allocation10 + $0x440] sm:$0xf]
    %v1020 = vld [vmem:[#allocation10 + $0x444] sm:$0xff]
    %v1021 = vld [vmem:[#allocation10 + $0x44c] sm:$0xff]
    %v1022 = vld [vmem:[#allocation10 + $0x454] sm:$0xff]
    %v1023 = vld [vmem:[#allocation10 + $0x45c] sm:$0xf]
    %v1024 = vld [vmem:[#allocation10 + $0x460] sm:$0xff]
    %v1025 = vld [vmem:[#allocation10 + $0x468] sm:$0xff]
    %v1026 = vld [vmem:[#allocation10 + $0x470] sm:$0xff]
    %v1027 = vld [vmem:[#allocation10 + $0x478] sm:$0xf]
    %v1028 = vld [vmem:[#allocation10 + $0x47c] sm:$0xff]
    %v1029 = vld [vmem:[#allocation10 + $0x484] sm:$0xff]
    %v1030 = vld [vmem:[#allocation10 + $0x48c] sm:$0xff]
    %v1031 = vld [vmem:[#allocation10 + $0x494] sm:$0xf]
    %v1032 = vld [vmem:[#allocation10 + $0x498] sm:$0xff]
    %v1033 = vld [vmem:[#allocation10 + $0x4a0] sm:$0xff]
    %v1034 = vld [vmem:[#allocation10 + $0x4a8] sm:$0xff]
    %v1035 = vld [vmem:[#allocation10 + $0x4b0] sm:$0xf]
    %v1036 = vld [vmem:[#allocation10 + $0x4b4] sm:$0xff]
    %v1037 = vld [vmem:[#allocation10 + $0x4bc] sm:$0xff]
    %v1038 = vld [vmem:[#allocation10 + $0x4c4] sm:$0xff]
    %v1039 = vld [vmem:[#allocation10 + $0x4cc] sm:$0xf]
    %v1040 = vld [vmem:[#allocation10 + $0x4d0] sm:$0xff]
    %v1041 = vld [vmem:[#allocation10 + $0x4d8] sm:$0xff]
    %v1042 = vld [vmem:[#allocation10 + $0x4e0] sm:$0xff]
    %v1043 = vld [vmem:[#allocation10 + $0x4e8] sm:$0xf]
    %v1044 = vld [vmem:[#allocation10 + $0x4ec] sm:$0xff]
    %v1045 = vld [vmem:[#allocation10 + $0x4f4] sm:$0xff]
    %v1046 = vld [vmem:[#allocation10 + $0x4fc] sm:$0xff]
    %v1047 = vld [vmem:[#allocation10 + $0x504] sm:$0xf]
    %v1048 = vld [vmem:[#allocation10 + $0x508] sm:$0xff]
    %v1049 = vld [vmem:[#allocation10 + $0x510] sm:$0xff]
    %v1050 = vld [vmem:[#allocation10 + $0x518] sm:$0xff]
    %v1051 = vld [vmem:[#allocation10 + $0x520] sm:$0xf]
    %v1052 = vld [vmem:[#allocation10 + $0x524] sm:$0xff]
    %v1053 = vld [vmem:[#allocation10 + $0x52c] sm:$0xff]
    %v1054 = vld [vmem:[#allocation10 + $0x534] sm:$0xff]
    %v1055 = vld [vmem:[#allocation10 + $0x53c] sm:$0xf]
    %v1056 = vld [vmem:[#allocation10 + $0x540] sm:$0xff]
    %v1057 = vld [vmem:[#allocation10 + $0x548] sm:$0xff]
    %v1058 = vld [vmem:[#allocation10 + $0x550] sm:$0xff]
    %v1059 = vld [vmem:[#allocation10 + $0x558] sm:$0xf]
    %v1060 = vld [vmem:[#allocation10 + $0x55c] sm:$0xff]
    %v1061 = vld [vmem:[#allocation10 + $0x564] sm:$0xff]
    %v1062 = vld [vmem:[#allocation10 + $0x56c] sm:$0xff]
    %v1063 = vld [vmem:[#allocation10 + $0x574] sm:$0xf]
    %v1064 = vld [vmem:[#allocation10 + $0x578] sm:$0xff]
    %v1065 = vld [vmem:[#allocation10 + $0x580] sm:$0xff]
    %v1066 = vld [vmem:[#allocation10 + $0x588] sm:$0xff]
    %v1067 = vld [vmem:[#allocation10 + $0x590] sm:$0xf]
    %v1068 = vld [vmem:[#allocation10 + $0x594] sm:$0xff]
    %v1069 = vld [vmem:[#allocation10 + $0x59c] sm:$0xff]
    %v1070 = vld [vmem:[#allocation10 + $0x5a4] sm:$0xff]
    %v1071 = vld [vmem:[#allocation10 + $0x5ac] sm:$0xf]
    %v1072 = vld [vmem:[#allocation10 + $0x5b0] sm:$0xff]
    %v1073 = vld [vmem:[#allocation10 + $0x5b8] sm:$0xff]
    %v1074 = vld [vmem:[#allocation10 + $0x5c0] sm:$0xff]
    %v1075 = vld [vmem:[#allocation10 + $0x5c8] sm:$0xf]
    %v1076 = vld [vmem:[#allocation10 + $0x5cc] sm:$0xff]
    %v1077 = vld [vmem:[#allocation10 + $0x5d4] sm:$0xff]
    %v1078 = vld [vmem:[#allocation10 + $0x5dc] sm:$0xff]
    %v1079 = vld [vmem:[#allocation10 + $0x5e4] sm:$0xf]
    %v1080 = vld [vmem:[#allocation10 + $0x5e8] sm:$0xff]
    %v1081 = vld [vmem:[#allocation10 + $0x5f0] sm:$0xff]
    %v1082 = vld [vmem:[#allocation10 + $0x5f8] sm:$0xff]
    %v1083 = vld [vmem:[#allocation10 + $0x600] sm:$0xf]
    %v1084 = vld [vmem:[#allocation10 + $0x604] sm:$0xff]
    %v1085 = vld [vmem:[#allocation10 + $0x60c] sm:$0xff]
    %v1086 = vld [vmem:[#allocation10 + $0x614] sm:$0xff]
    %v1087 = vld [vmem:[#allocation10 + $0x61c] sm:$0xf]
    %v1088 = vld [vmem:[#allocation10 + $0x620] sm:$0xff]
    %v1089 = vld [vmem:[#allocation10 + $0x628] sm:$0xff]
    %v1090 = vld [vmem:[#allocation10 + $0x630] sm:$0xff]
    %v1091 = vld [vmem:[#allocation10 + $0x638] sm:$0xf]
    %v1092 = vld [vmem:[#allocation10 + $0x63c] sm:$0xff]
    %v1093 = vld [vmem:[#allocation10 + $0x644] sm:$0xff]
    %v1094 = vld [vmem:[#allocation10 + $0x64c] sm:$0xff]
    %v1095 = vld [vmem:[#allocation10 + $0x654] sm:$0xf]
    %v1096 = vld [vmem:[#allocation10 + $0x658] sm:$0xff]
    %v1097 = vld [vmem:[#allocation10 + $0x660] sm:$0xff]
    %v1098 = vld [vmem:[#allocation10 + $0x668] sm:$0xff]
    %v1099 = vld [vmem:[#allocation10 + $0x670] sm:$0xf]
    %v1100 = vld [vmem:[#allocation10 + $0x674] sm:$0xff]
    %v1101 = vld [vmem:[#allocation10 + $0x67c] sm:$0xff]
    %v1102 = vld [vmem:[#allocation10 + $0x684] sm:$0xff]
    %v1103 = vld [vmem:[#allocation10 + $0x68c] sm:$0xf]
    %v1104 = vld [vmem:[#allocation10 + $0x690] sm:$0xff]
    %v1105 = vld [vmem:[#allocation10 + $0x698] sm:$0xff]
    %v1106 = vld [vmem:[#allocation10 + $0x6a0] sm:$0xff]
    %v1107 = vld [vmem:[#allocation10 + $0x6a8] sm:$0xf]
    %v1108 = vld [vmem:[#allocation10 + $0x6ac] sm:$0xff]
    %v1109 = vld [vmem:[#allocation10 + $0x6b4] sm:$0xff]
    %v1110 = vld [vmem:[#allocation10 + $0x6bc] sm:$0xff]
    %v1111 = vld [vmem:[#allocation10 + $0x6c4] sm:$0xf]
    %v1112 = vld [vmem:[#allocation10 + $0x6c8] sm:$0xff]
    %v1113 = vld [vmem:[#allocation10 + $0x6d0] sm:$0xff]
    %v1114 = vld [vmem:[#allocation10 + $0x6d8] sm:$0xff]
    %v1115 = vld [vmem:[#allocation10 + $0x6e0] sm:$0xf]
    %v1116 = vld [vmem:[#allocation10 + $0x6e4] sm:$0xff]
    %v1117 = vld [vmem:[#allocation10 + $0x6ec] sm:$0xff]
    %v1118 = vld [vmem:[#allocation10 + $0x6f4] sm:$0xff]
    %v1119 = vld [vmem:[#allocation10 + $0x6fc] sm:$0xf]
    %v1376 = vunpack.c.l.b16 %v864
    %v1377 = vunpack.c.h.b16 %v864
    %v1378 = vunpack.c.l.b16 %v865
    %v1379 = vunpack.c.h.b16 %v865
    %v1380 = vunpack.c.l.b16 %v866
    %v1381 = vunpack.c.h.b16 %v866
    %v1382 = vunpack.c.l.b16 %v867
    %v1383 = vunpack.c.l.b16 %v868
    %v1384 = vunpack.c.h.b16 %v868
    %v1385 = vunpack.c.l.b16 %v869
    %v1386 = vunpack.c.h.b16 %v869
    %v1387 = vunpack.c.l.b16 %v870
    %v1388 = vunpack.c.h.b16 %v870
    %v1389 = vunpack.c.l.b16 %v871
    %v1390 = vunpack.c.l.b16 %v872
    %v1391 = vunpack.c.h.b16 %v872
    %v1392 = vunpack.c.l.b16 %v873
    %v1393 = vunpack.c.h.b16 %v873
    %v1394 = vunpack.c.l.b16 %v874
    %v1395 = vunpack.c.h.b16 %v874
    %v1396 = vunpack.c.l.b16 %v875
    %v1397 = vunpack.c.l.b16 %v876
    %v1398 = vunpack.c.h.b16 %v876
    %v1399 = vunpack.c.l.b16 %v877
    %v1400 = vunpack.c.h.b16 %v877
    %v1401 = vunpack.c.l.b16 %v878
    %v1402 = vunpack.c.h.b16 %v878
    %v1403 = vunpack.c.l.b16 %v879
    %v1404 = vunpack.c.l.b16 %v880
    %v1405 = vunpack.c.h.b16 %v880
    %v1406 = vunpack.c.l.b16 %v881
    %v1407 = vunpack.c.h.b16 %v881
    %v1408 = vunpack.c.l.b16 %v882
    %v1409 = vunpack.c.h.b16 %v882
    %v1410 = vunpack.c.l.b16 %v883
    %v1411 = vunpack.c.l.b16 %v884
    %v1412 = vunpack.c.h.b16 %v884
    %v1413 = vunpack.c.l.b16 %v885
    %v1414 = vunpack.c.h.b16 %v885
    %v1415 = vunpack.c.l.b16 %v886
    %v1416 = vunpack.c.h.b16 %v886
    %v1417 = vunpack.c.l.b16 %v887
    %v1418 = vunpack.c.l.b16 %v888
    %v1419 = vunpack.c.h.b16 %v888
    %v1420 = vunpack.c.l.b16 %v889
    %v1421 = vunpack.c.h.b16 %v889
    %v1422 = vunpack.c.l.b16 %v890
    %v1423 = vunpack.c.h.b16 %v890
    %v1424 = vunpack.c.l.b16 %v891
    %v1425 = vunpack.c.l.b16 %v892
    %v1426 = vunpack.c.h.b16 %v892
    %v1427 = vunpack.c.l.b16 %v893
    %v1428 = vunpack.c.h.b16 %v893
    %v1429 = vunpack.c.l.b16 %v894
    %v1430 = vunpack.c.h.b16 %v894
    %v1431 = vunpack.c.l.b16 %v895
    %v1432 = vunpack.c.l.b16 %v896
    %v1433 = vunpack.c.h.b16 %v896
    %v1434 = vunpack.c.l.b16 %v897
    %v1435 = vunpack.c.h.b16 %v897
    %v1436 = vunpack.c.l.b16 %v898
    %v1437 = vunpack.c.h.b16 %v898
    %v1438 = vunpack.c.l.b16 %v899
    %v1439 = vunpack.c.l.b16 %v900
    %v1440 = vunpack.c.h.b16 %v900
    %v1441 = vunpack.c.l.b16 %v901
    %v1442 = vunpack.c.h.b16 %v901
    %v1443 = vunpack.c.l.b16 %v902
    %v1444 = vunpack.c.h.b16 %v902
    %v1445 = vunpack.c.l.b16 %v903
    %v1446 = vunpack.c.l.b16 %v904
    %v1447 = vunpack.c.h.b16 %v904
    %v1448 = vunpack.c.l.b16 %v905
    %v1449 = vunpack.c.h.b16 %v905
    %v1450 = vunpack.c.l.b16 %v906
    %v1451 = vunpack.c.h.b16 %v906
    %v1452 = vunpack.c.l.b16 %v907
    %v1453 = vunpack.c.l.b16 %v908
    %v1454 = vunpack.c.h.b16 %v908
    %v1455 = vunpack.c.l.b16 %v909
    %v1456 = vunpack.c.h.b16 %v909
    %v1457 = vunpack.c.l.b16 %v910
    %v1458 = vunpack.c.h.b16 %v910
    %v1459 = vunpack.c.l.b16 %v911
    %v1460 = vunpack.c.l.b16 %v912
    %v1461 = vunpack.c.h.b16 %v912
    %v1462 = vunpack.c.l.b16 %v913
    %v1463 = vunpack.c.h.b16 %v913
    %v1464 = vunpack.c.l.b16 %v914
    %v1465 = vunpack.c.h.b16 %v914
    %v1466 = vunpack.c.l.b16 %v915
    %v1467 = vunpack.c.l.b16 %v916
    %v1468 = vunpack.c.h.b16 %v916
    %v1469 = vunpack.c.l.b16 %v917
    %v1470 = vunpack.c.h.b16 %v917
    %v1471 = vunpack.c.l.b16 %v918
    %v1472 = vunpack.c.h.b16 %v918
    %v1473 = vunpack.c.l.b16 %v919
    %v1474 = vunpack.c.l.b16 %v920
    %v1475 = vunpack.c.h.b16 %v920
    %v1476 = vunpack.c.l.b16 %v921
    %v1477 = vunpack.c.h.b16 %v921
    %v1478 = vunpack.c.l.b16 %v922
    %v1479 = vunpack.c.h.b16 %v922
    %v1480 = vunpack.c.l.b16 %v923
    %v1481 = vunpack.c.l.b16 %v924
    %v1482 = vunpack.c.h.b16 %v924
    %v1483 = vunpack.c.l.b16 %v925
    %v1484 = vunpack.c.h.b16 %v925
    %v1485 = vunpack.c.l.b16 %v926
    %v1486 = vunpack.c.h.b16 %v926
    %v1487 = vunpack.c.l.b16 %v927
    %v1488 = vunpack.c.l.b16 %v928
    %v1489 = vunpack.c.h.b16 %v928
    %v1490 = vunpack.c.l.b16 %v929
    %v1491 = vunpack.c.h.b16 %v929
    %v1492 = vunpack.c.l.b16 %v930
    %v1493 = vunpack.c.h.b16 %v930
    %v1494 = vunpack.c.l.b16 %v931
    %v1495 = vunpack.c.l.b16 %v932
    %v1496 = vunpack.c.h.b16 %v932
    %v1497 = vunpack.c.l.b16 %v933
    %v1498 = vunpack.c.h.b16 %v933
    %v1499 = vunpack.c.l.b16 %v934
    %v1500 = vunpack.c.h.b16 %v934
    %v1501 = vunpack.c.l.b16 %v935
    %v1502 = vunpack.c.l.b16 %v936
    %v1503 = vunpack.c.h.b16 %v936
    %v1504 = vunpack.c.l.b16 %v937
    %v1505 = vunpack.c.h.b16 %v937
    %v1506 = vunpack.c.l.b16 %v938
    %v1507 = vunpack.c.h.b16 %v938
    %v1508 = vunpack.c.l.b16 %v939
    %v1509 = vunpack.c.l.b16 %v940
    %v1510 = vunpack.c.h.b16 %v940
    %v1511 = vunpack.c.l.b16 %v941
    %v1512 = vunpack.c.h.b16 %v941
    %v1513 = vunpack.c.l.b16 %v942
    %v1514 = vunpack.c.h.b16 %v942
    %v1515 = vunpack.c.l.b16 %v943
    %v1516 = vunpack.c.l.b16 %v944
    %v1517 = vunpack.c.h.b16 %v944
    %v1518 = vunpack.c.l.b16 %v945
    %v1519 = vunpack.c.h.b16 %v945
    %v1520 = vunpack.c.l.b16 %v946
    %v1521 = vunpack.c.h.b16 %v946
    %v1522 = vunpack.c.l.b16 %v947
    %v1523 = vunpack.c.l.b16 %v948
    %v1524 = vunpack.c.h.b16 %v948
    %v1525 = vunpack.c.l.b16 %v949
    %v1526 = vunpack.c.h.b16 %v949
    %v1527 = vunpack.c.l.b16 %v950
    %v1528 = vunpack.c.h.b16 %v950
    %v1529 = vunpack.c.l.b16 %v951
    %v1530 = vunpack.c.l.b16 %v952
    %v1531 = vunpack.c.h.b16 %v952
    %v1532 = vunpack.c.l.b16 %v953
    %v1533 = vunpack.c.h.b16 %v953
    %v1534 = vunpack.c.l.b16 %v954
    %v1535 = vunpack.c.h.b16 %v954
    %v1536 = vunpack.c.l.b16 %v955
    %v1537 = vunpack.c.l.b16 %v956
    %v1538 = vunpack.c.h.b16 %v956
    %v1539 = vunpack.c.l.b16 %v957
    %v1540 = vunpack.c.h.b16 %v957
    %v1541 = vunpack.c.l.b16 %v958
    %v1542 = vunpack.c.h.b16 %v958
    %v1543 = vunpack.c.l.b16 %v959
    %v1544 = vunpack.c.l.b16 %v960
    %v1545 = vunpack.c.h.b16 %v960
    %v1546 = vunpack.c.l.b16 %v961
    %v1547 = vunpack.c.h.b16 %v961
    %v1548 = vunpack.c.l.b16 %v962
    %v1549 = vunpack.c.h.b16 %v962
    %v1550 = vunpack.c.l.b16 %v963
    %v1551 = vunpack.c.l.b16 %v964
    %v1552 = vunpack.c.h.b16 %v964
    %v1553 = vunpack.c.l.b16 %v965
    %v1554 = vunpack.c.h.b16 %v965
    %v1555 = vunpack.c.l.b16 %v966
    %v1556 = vunpack.c.h.b16 %v966
    %v1557 = vunpack.c.l.b16 %v967
    %v1558 = vunpack.c.l.b16 %v968
    %v1559 = vunpack.c.h.b16 %v968
    %v1560 = vunpack.c.l.b16 %v969
    %v1561 = vunpack.c.h.b16 %v969
    %v1562 = vunpack.c.l.b16 %v970
    %v1563 = vunpack.c.h.b16 %v970
    %v1564 = vunpack.c.l.b16 %v971
    %v1565 = vunpack.c.l.b16 %v972
    %v1566 = vunpack.c.h.b16 %v972
    %v1567 = vunpack.c.l.b16 %v973
    %v1568 = vunpack.c.h.b16 %v973
    %v1569 = vunpack.c.l.b16 %v974
    %v1570 = vunpack.c.h.b16 %v974
    %v1571 = vunpack.c.l.b16 %v975
    %v1572 = vunpack.c.l.b16 %v976
    %v1573 = vunpack.c.h.b16 %v976
    %v1574 = vunpack.c.l.b16 %v977
    %v1575 = vunpack.c.h.b16 %v977
    %v1576 = vunpack.c.l.b16 %v978
    %v1577 = vunpack.c.h.b16 %v978
    %v1578 = vunpack.c.l.b16 %v979
    %v1579 = vunpack.c.l.b16 %v980
    %v1580 = vunpack.c.h.b16 %v980
    %v1581 = vunpack.c.l.b16 %v981
    %v1582 = vunpack.c.h.b16 %v981
    %v1583 = vunpack.c.l.b16 %v982
    %v1584 = vunpack.c.h.b16 %v982
    %v1585 = vunpack.c.l.b16 %v983
    %v1586 = vunpack.c.l.b16 %v984
    %v1587 = vunpack.c.h.b16 %v984
    %v1588 = vunpack.c.l.b16 %v985
    %v1589 = vunpack.c.h.b16 %v985
    %v1590 = vunpack.c.l.b16 %v986
    %v1591 = vunpack.c.h.b16 %v986
    %v1592 = vunpack.c.l.b16 %v987
    %v1593 = vunpack.c.l.b16 %v988
    %v1594 = vunpack.c.h.b16 %v988
    %v1595 = vunpack.c.l.b16 %v989
    %v1596 = vunpack.c.h.b16 %v989
    %v1597 = vunpack.c.l.b16 %v990
    %v1598 = vunpack.c.h.b16 %v990
    %v1599 = vunpack.c.l.b16 %v991
    %v1600 = vunpack.c.l.b16 %v992
    %v1601 = vunpack.c.h.b16 %v992
    %v1602 = vunpack.c.l.b16 %v993
    %v1603 = vunpack.c.h.b16 %v993
    %v1604 = vunpack.c.l.b16 %v994
    %v1605 = vunpack.c.h.b16 %v994
    %v1606 = vunpack.c.l.b16 %v995
    %v1607 = vunpack.c.l.b16 %v996
    %v1608 = vunpack.c.h.b16 %v996
    %v1609 = vunpack.c.l.b16 %v997
    %v1610 = vunpack.c.h.b16 %v997
    %v1611 = vunpack.c.l.b16 %v998
    %v1612 = vunpack.c.h.b16 %v998
    %v1613 = vunpack.c.l.b16 %v999
    %v1614 = vunpack.c.l.b16 %v1000
    %v1615 = vunpack.c.h.b16 %v1000
    %v1616 = vunpack.c.l.b16 %v1001
    %v1617 = vunpack.c.h.b16 %v1001
    %v1618 = vunpack.c.l.b16 %v1002
    %v1619 = vunpack.c.h.b16 %v1002
    %v1620 = vunpack.c.l.b16 %v1003
    %v1621 = vunpack.c.l.b16 %v1004
    %v1622 = vunpack.c.h.b16 %v1004
    %v1623 = vunpack.c.l.b16 %v1005
    %v1624 = vunpack.c.h.b16 %v1005
    %v1625 = vunpack.c.l.b16 %v1006
    %v1626 = vunpack.c.h.b16 %v1006
    %v1627 = vunpack.c.l.b16 %v1007
    %v1628 = vunpack.c.l.b16 %v1008
    %v1629 = vunpack.c.h.b16 %v1008
    %v1630 = vunpack.c.l.b16 %v1009
    %v1631 = vunpack.c.h.b16 %v1009
    %v1632 = vunpack.c.l.b16 %v1010
    %v1633 = vunpack.c.h.b16 %v1010
    %v1634 = vunpack.c.l.b16 %v1011
    %v1635 = vunpack.c.l.b16 %v1012
    %v1636 = vunpack.c.h.b16 %v1012
    %v1637 = vunpack.c.l.b16 %v1013
    %v1638 = vunpack.c.h.b16 %v1013
    %v1639 = vunpack.c.l.b16 %v1014
    %v1640 = vunpack.c.h.b16 %v1014
    %v1641 = vunpack.c.l.b16 %v1015
    %v1642 = vunpack.c.l.b16 %v1016
    %v1643 = vunpack.c.h.b16 %v1016
    %v1644 = vunpack.c.l.b16 %v1017
    %v1645 = vunpack.c.h.b16 %v1017
    %v1646 = vunpack.c.l.b16 %v1018
    %v1647 = vunpack.c.h.b16 %v1018
    %v1648 = vunpack.c.l.b16 %v1019
    %v1649 = vunpack.c.l.b16 %v1020
    %v1650 = vunpack.c.h.b16 %v1020
    %v1651 = vunpack.c.l.b16 %v1021
    %v1652 = vunpack.c.h.b16 %v1021
    %v1653 = vunpack.c.l.b16 %v1022
    %v1654 = vunpack.c.h.b16 %v1022
    %v1655 = vunpack.c.l.b16 %v1023
    %v1656 = vunpack.c.l.b16 %v1024
    %v1657 = vunpack.c.h.b16 %v1024
    %v1658 = vunpack.c.l.b16 %v1025
    %v1659 = vunpack.c.h.b16 %v1025
    %v1660 = vunpack.c.l.b16 %v1026
    %v1661 = vunpack.c.h.b16 %v1026
    %v1662 = vunpack.c.l.b16 %v1027
    %v1663 = vunpack.c.l.b16 %v1028
    %v1664 = vunpack.c.h.b16 %v1028
    %v1665 = vunpack.c.l.b16 %v1029
    %v1666 = vunpack.c.h.b16 %v1029
    %v1667 = vunpack.c.l.b16 %v1030
    %v1668 = vunpack.c.h.b16 %v1030
    %v1669 = vunpack.c.l.b16 %v1031
    %v1670 = vunpack.c.l.b16 %v1032
    %v1671 = vunpack.c.h.b16 %v1032
    %v1672 = vunpack.c.l.b16 %v1033
    %v1673 = vunpack.c.h.b16 %v1033
    %v1674 = vunpack.c.l.b16 %v1034
    %v1675 = vunpack.c.h.b16 %v1034
    %v1676 = vunpack.c.l.b16 %v1035
    %v1677 = vunpack.c.l.b16 %v1036
    %v1678 = vunpack.c.h.b16 %v1036
    %v1679 = vunpack.c.l.b16 %v1037
    %v1680 = vunpack.c.h.b16 %v1037
    %v1681 = vunpack.c.l.b16 %v1038
    %v1682 = vunpack.c.h.b16 %v1038
    %v1683 = vunpack.c.l.b16 %v1039
    %v1684 = vunpack.c.l.b16 %v1040
    %v1685 = vunpack.c.h.b16 %v1040
    %v1686 = vunpack.c.l.b16 %v1041
    %v1687 = vunpack.c.h.b16 %v1041
    %v1688 = vunpack.c.l.b16 %v1042
    %v1689 = vunpack.c.h.b16 %v1042
    %v1690 = vunpack.c.l.b16 %v1043
    %v1691 = vunpack.c.l.b16 %v1044
    %v1692 = vunpack.c.h.b16 %v1044
    %v1693 = vunpack.c.l.b16 %v1045
    %v1694 = vunpack.c.h.b16 %v1045
    %v1695 = vunpack.c.l.b16 %v1046
    %v1696 = vunpack.c.h.b16 %v1046
    %v1697 = vunpack.c.l.b16 %v1047
    %v1698 = vunpack.c.l.b16 %v1048
    %v1699 = vunpack.c.h.b16 %v1048
    %v1700 = vunpack.c.l.b16 %v1049
    %v1701 = vunpack.c.h.b16 %v1049
    %v1702 = vunpack.c.l.b16 %v1050
    %v1703 = vunpack.c.h.b16 %v1050
    %v1704 = vunpack.c.l.b16 %v1051
    %v1705 = vunpack.c.l.b16 %v1052
    %v1706 = vunpack.c.h.b16 %v1052
    %v1707 = vunpack.c.l.b16 %v1053
    %v1708 = vunpack.c.h.b16 %v1053
    %v1709 = vunpack.c.l.b16 %v1054
    %v1710 = vunpack.c.h.b16 %v1054
    %v1711 = vunpack.c.l.b16 %v1055
    %v1712 = vunpack.c.l.b16 %v1056
    %v1713 = vunpack.c.h.b16 %v1056
    %v1714 = vunpack.c.l.b16 %v1057
    %v1715 = vunpack.c.h.b16 %v1057
    %v1716 = vunpack.c.l.b16 %v1058
    %v1717 = vunpack.c.h.b16 %v1058
    %v1718 = vunpack.c.l.b16 %v1059
    %v1719 = vunpack.c.l.b16 %v1060
    %v1720 = vunpack.c.h.b16 %v1060
    %v1721 = vunpack.c.l.b16 %v1061
    %v1722 = vunpack.c.h.b16 %v1061
    %v1723 = vunpack.c.l.b16 %v1062
    %v1724 = vunpack.c.h.b16 %v1062
    %v1725 = vunpack.c.l.b16 %v1063
    %v1726 = vunpack.c.l.b16 %v1064
    %v1727 = vunpack.c.h.b16 %v1064
    %v1728 = vunpack.c.l.b16 %v1065
    %v1729 = vunpack.c.h.b16 %v1065
    %v1730 = vunpack.c.l.b16 %v1066
    %v1731 = vunpack.c.h.b16 %v1066
    %v1732 = vunpack.c.l.b16 %v1067
    %v1733 = vunpack.c.l.b16 %v1068
    %v1734 = vunpack.c.h.b16 %v1068
    %v1735 = vunpack.c.l.b16 %v1069
    %v1736 = vunpack.c.h.b16 %v1069
    %v1737 = vunpack.c.l.b16 %v1070
    %v1738 = vunpack.c.h.b16 %v1070
    %v1739 = vunpack.c.l.b16 %v1071
    %v1740 = vunpack.c.l.b16 %v1072
    %v1741 = vunpack.c.h.b16 %v1072
    %v1742 = vunpack.c.l.b16 %v1073
    %v1743 = vunpack.c.h.b16 %v1073
    %v1744 = vunpack.c.l.b16 %v1074
    %v1745 = vunpack.c.h.b16 %v1074
    %v1746 = vunpack.c.l.b16 %v1075
    %v1747 = vunpack.c.l.b16 %v1076
    %v1748 = vunpack.c.h.b16 %v1076
    %v1749 = vunpack.c.l.b16 %v1077
    %v1750 = vunpack.c.h.b16 %v1077
    %v1751 = vunpack.c.l.b16 %v1078
    %v1752 = vunpack.c.h.b16 %v1078
    %v1753 = vunpack.c.l.b16 %v1079
    %v1754 = vunpack.c.l.b16 %v1080
    %v1755 = vunpack.c.h.b16 %v1080
    %v1756 = vunpack.c.l.b16 %v1081
    %v1757 = vunpack.c.h.b16 %v1081
    %v1758 = vunpack.c.l.b16 %v1082
    %v1759 = vunpack.c.h.b16 %v1082
    %v1760 = vunpack.c.l.b16 %v1083
    %v1761 = vunpack.c.l.b16 %v1084
    %v1762 = vunpack.c.h.b16 %v1084
    %v1763 = vunpack.c.l.b16 %v1085
    %v1764 = vunpack.c.h.b16 %v1085
    %v1765 = vunpack.c.l.b16 %v1086
    %v1766 = vunpack.c.h.b16 %v1086
    %v1767 = vunpack.c.l.b16 %v1087
    %v1768 = vunpack.c.l.b16 %v1088
    %v1769 = vunpack.c.h.b16 %v1088
    %v1770 = vunpack.c.l.b16 %v1089
    %v1771 = vunpack.c.h.b16 %v1089
    %v1772 = vunpack.c.l.b16 %v1090
    %v1773 = vunpack.c.h.b16 %v1090
    %v1774 = vunpack.c.l.b16 %v1091
    %v1775 = vunpack.c.l.b16 %v1092
    %v1776 = vunpack.c.h.b16 %v1092
    %v1777 = vunpack.c.l.b16 %v1093
    %v1778 = vunpack.c.h.b16 %v1093
    %v1779 = vunpack.c.l.b16 %v1094
    %v1780 = vunpack.c.h.b16 %v1094
    %v1781 = vunpack.c.l.b16 %v1095
    %v1782 = vunpack.c.l.b16 %v1096
    %v1783 = vunpack.c.h.b16 %v1096
    %v1784 = vunpack.c.l.b16 %v1097
    %v1785 = vunpack.c.h.b16 %v1097
    %v1786 = vunpack.c.l.b16 %v1098
    %v1787 = vunpack.c.h.b16 %v1098
    %v1788 = vunpack.c.l.b16 %v1099
    %v1789 = vunpack.c.l.b16 %v1100
    %v1790 = vunpack.c.h.b16 %v1100
    %v1791 = vunpack.c.l.b16 %v1101
    %v1792 = vunpack.c.h.b16 %v1101
    %v1793 = vunpack.c.l.b16 %v1102
    %v1794 = vunpack.c.h.b16 %v1102
    %v1795 = vunpack.c.l.b16 %v1103
    %v1796 = vunpack.c.l.b16 %v1104
    %v1797 = vunpack.c.h.b16 %v1104
    %v1798 = vunpack.c.l.b16 %v1105
    %v1799 = vunpack.c.h.b16 %v1105
    %v1800 = vunpack.c.l.b16 %v1106
    %v1801 = vunpack.c.h.b16 %v1106
    %v1802 = vunpack.c.l.b16 %v1107
    %v1803 = vunpack.c.l.b16 %v1108
    %v1804 = vunpack.c.h.b16 %v1108
    %v1805 = vunpack.c.l.b16 %v1109
    %v1806 = vunpack.c.h.b16 %v1109
    %v1807 = vunpack.c.l.b16 %v1110
    %v1808 = vunpack.c.h.b16 %v1110
    %v1809 = vunpack.c.l.b16 %v1111
    %v1810 = vunpack.c.l.b16 %v1112
    %v1811 = vunpack.c.h.b16 %v1112
    %v1812 = vunpack.c.l.b16 %v1113
    %v1813 = vunpack.c.h.b16 %v1113
    %v1814 = vunpack.c.l.b16 %v1114
    %v1815 = vunpack.c.h.b16 %v1114
    %v1816 = vunpack.c.l.b16 %v1115
    %v1817 = vunpack.c.l.b16 %v1116
    %v1818 = vunpack.c.h.b16 %v1116
    %v1819 = vunpack.c.l.b16 %v1117
    %v1820 = vunpack.c.h.b16 %v1117
    %v1821 = vunpack.c.l.b16 %v1118
    %v1822 = vunpack.c.h.b16 %v1118
    %v1823 = vunpack.c.l.b16 %v1119
    %v1824 = vpack.c.b16 %v1383, %v1376
    %v1825 = vpack.c.b16 %v1384, %v1377
    %v1826 = vpack.c.b16 %v1385, %v1378
    %v1827 = vpack.c.b16 %v1386, %v1379
    %v1828 = vpack.c.b16 %v1387, %v1380
    %v1829 = vpack.c.b16 %v1388, %v1381
    %v1830 = vpack.c.b16 %v1389, %v1382
    %v1831 = vpack.c.b16 %v1397, %v1390
    %v1832 = vpack.c.b16 %v1398, %v1391
    %v1833 = vpack.c.b16 %v1399, %v1392
    %v1834 = vpack.c.b16 %v1400, %v1393
    %v1835 = vpack.c.b16 %v1401, %v1394
    %v1836 = vpack.c.b16 %v1402, %v1395
    %v1837 = vpack.c.b16 %v1403, %v1396
    %v1838 = vpack.c.b16 %v1411, %v1404
    %v1839 = vpack.c.b16 %v1412, %v1405
    %v1840 = vpack.c.b16 %v1413, %v1406
    %v1841 = vpack.c.b16 %v1414, %v1407
    %v1842 = vpack.c.b16 %v1415, %v1408
    %v1843 = vpack.c.b16 %v1416, %v1409
    %v1844 = vpack.c.b16 %v1417, %v1410
    %v1845 = vpack.c.b16 %v1425, %v1418
    %v1846 = vpack.c.b16 %v1426, %v1419
    %v1847 = vpack.c.b16 %v1427, %v1420
    %v1848 = vpack.c.b16 %v1428, %v1421
    %v1849 = vpack.c.b16 %v1429, %v1422
    %v1850 = vpack.c.b16 %v1430, %v1423
    %v1851 = vpack.c.b16 %v1431, %v1424
    %v1852 = vpack.c.b16 %v1439, %v1432
    %v1853 = vpack.c.b16 %v1440, %v1433
    %v1854 = vpack.c.b16 %v1441, %v1434
    %v1855 = vpack.c.b16 %v1442, %v1435
    %v1856 = vpack.c.b16 %v1443, %v1436
    %v1857 = vpack.c.b16 %v1444, %v1437
    %v1858 = vpack.c.b16 %v1445, %v1438
    %v1859 = vpack.c.b16 %v1453, %v1446
    %v1860 = vpack.c.b16 %v1454, %v1447
    %v1861 = vpack.c.b16 %v1455, %v1448
    %v1862 = vpack.c.b16 %v1456, %v1449
    %v1863 = vpack.c.b16 %v1457, %v1450
    %v1864 = vpack.c.b16 %v1458, %v1451
    %v1865 = vpack.c.b16 %v1459, %v1452
    %v1866 = vpack.c.b16 %v1467, %v1460
    %v1867 = vpack.c.b16 %v1468, %v1461
    %v1868 = vpack.c.b16 %v1469, %v1462
    %v1869 = vpack.c.b16 %v1470, %v1463
    %v1870 = vpack.c.b16 %v1471, %v1464
    %v1871 = vpack.c.b16 %v1472, %v1465
    %v1872 = vpack.c.b16 %v1473, %v1466
    %v1873 = vpack.c.b16 %v1481, %v1474
    %v1874 = vpack.c.b16 %v1482, %v1475
    %v1875 = vpack.c.b16 %v1483, %v1476
    %v1876 = vpack.c.b16 %v1484, %v1477
    %v1877 = vpack.c.b16 %v1485, %v1478
    %v1878 = vpack.c.b16 %v1486, %v1479
    %v1879 = vpack.c.b16 %v1487, %v1480
    %v1880 = vpack.c.b16 %v1495, %v1488
    %v1881 = vpack.c.b16 %v1496, %v1489
    %v1882 = vpack.c.b16 %v1497, %v1490
    %v1883 = vpack.c.b16 %v1498, %v1491
    %v1884 = vpack.c.b16 %v1499, %v1492
    %v1885 = vpack.c.b16 %v1500, %v1493
    %v1886 = vpack.c.b16 %v1501, %v1494
    %v1887 = vpack.c.b16 %v1509, %v1502
    %v1888 = vpack.c.b16 %v1510, %v1503
    %v1889 = vpack.c.b16 %v1511, %v1504
    %v1890 = vpack.c.b16 %v1512, %v1505
    %v1891 = vpack.c.b16 %v1513, %v1506
    %v1892 = vpack.c.b16 %v1514, %v1507
    %v1893 = vpack.c.b16 %v1515, %v1508
    %v1894 = vpack.c.b16 %v1523, %v1516
    %v1895 = vpack.c.b16 %v1524, %v1517
    %v1896 = vpack.c.b16 %v1525, %v1518
    %v1897 = vpack.c.b16 %v1526, %v1519
    %v1898 = vpack.c.b16 %v1527, %v1520
    %v1899 = vpack.c.b16 %v1528, %v1521
    %v1900 = vpack.c.b16 %v1529, %v1522
    %v1901 = vpack.c.b16 %v1537, %v1530
    %v1902 = vpack.c.b16 %v1538, %v1531
    %v1903 = vpack.c.b16 %v1539, %v1532
    %v1904 = vpack.c.b16 %v1540, %v1533
    %v1905 = vpack.c.b16 %v1541, %v1534
    %v1906 = vpack.c.b16 %v1542, %v1535
    %v1907 = vpack.c.b16 %v1543, %v1536
    %v1908 = vpack.c.b16 %v1551, %v1544
    %v1909 = vpack.c.b16 %v1552, %v1545
    %v1910 = vpack.c.b16 %v1553, %v1546
    %v1911 = vpack.c.b16 %v1554, %v1547
    %v1912 = vpack.c.b16 %v1555, %v1548
    %v1913 = vpack.c.b16 %v1556, %v1549
    %v1914 = vpack.c.b16 %v1557, %v1550
    %v1915 = vpack.c.b16 %v1565, %v1558
    %v1916 = vpack.c.b16 %v1566, %v1559
    %v1917 = vpack.c.b16 %v1567, %v1560
    %v1918 = vpack.c.b16 %v1568, %v1561
    %v1919 = vpack.c.b16 %v1569, %v1562
    %v1920 = vpack.c.b16 %v1570, %v1563
    %v1921 = vpack.c.b16 %v1571, %v1564
    %v1922 = vpack.c.b16 %v1579, %v1572
    %v1923 = vpack.c.b16 %v1580, %v1573
    %v1924 = vpack.c.b16 %v1581, %v1574
    %v1925 = vpack.c.b16 %v1582, %v1575
    %v1926 = vpack.c.b16 %v1583, %v1576
    %v1927 = vpack.c.b16 %v1584, %v1577
    %v1928 = vpack.c.b16 %v1585, %v1578
    %v1929 = vpack.c.b16 %v1593, %v1586
    %v1930 = vpack.c.b16 %v1594, %v1587
    %v1931 = vpack.c.b16 %v1595, %v1588
    %v1932 = vpack.c.b16 %v1596, %v1589
    %v1933 = vpack.c.b16 %v1597, %v1590
    %v1934 = vpack.c.b16 %v1598, %v1591
    %v1935 = vpack.c.b16 %v1599, %v1592
    %v1936 = vpack.c.b16 %v1607, %v1600
    %v1937 = vpack.c.b16 %v1608, %v1601
    %v1938 = vpack.c.b16 %v1609, %v1602
    %v1939 = vpack.c.b16 %v1610, %v1603
    %v1940 = vpack.c.b16 %v1611, %v1604
    %v1941 = vpack.c.b16 %v1612, %v1605
    %v1942 = vpack.c.b16 %v1613, %v1606
    %v1943 = vpack.c.b16 %v1621, %v1614
    %v1944 = vpack.c.b16 %v1622, %v1615
    %v1945 = vpack.c.b16 %v1623, %v1616
    %v1946 = vpack.c.b16 %v1624, %v1617
    %v1947 = vpack.c.b16 %v1625, %v1618
    %v1948 = vpack.c.b16 %v1626, %v1619
    %v1949 = vpack.c.b16 %v1627, %v1620
    %v1950 = vpack.c.b16 %v1635, %v1628
    %v1951 = vpack.c.b16 %v1636, %v1629
    %v1952 = vpack.c.b16 %v1637, %v1630
    %v1953 = vpack.c.b16 %v1638, %v1631
    %v1954 = vpack.c.b16 %v1639, %v1632
    %v1955 = vpack.c.b16 %v1640, %v1633
    %v1956 = vpack.c.b16 %v1641, %v1634
    %v1957 = vpack.c.b16 %v1649, %v1642
    %v1958 = vpack.c.b16 %v1650, %v1643
    %v1959 = vpack.c.b16 %v1651, %v1644
    %v1960 = vpack.c.b16 %v1652, %v1645
    %v1961 = vpack.c.b16 %v1653, %v1646
    %v1962 = vpack.c.b16 %v1654, %v1647
    %v1963 = vpack.c.b16 %v1655, %v1648
    %v1964 = vpack.c.b16 %v1663, %v1656
    %v1965 = vpack.c.b16 %v1664, %v1657
    %v1966 = vpack.c.b16 %v1665, %v1658
    %v1967 = vpack.c.b16 %v1666, %v1659
    %v1968 = vpack.c.b16 %v1667, %v1660
    %v1969 = vpack.c.b16 %v1668, %v1661
    %v1970 = vpack.c.b16 %v1669, %v1662
    %v1971 = vpack.c.b16 %v1677, %v1670
    %v1972 = vpack.c.b16 %v1678, %v1671
    %v1973 = vpack.c.b16 %v1679, %v1672
    %v1974 = vpack.c.b16 %v1680, %v1673
    %v1975 = vpack.c.b16 %v1681, %v1674
    %v1976 = vpack.c.b16 %v1682, %v1675
    %v1977 = vpack.c.b16 %v1683, %v1676
    %v1978 = vpack.c.b16 %v1691, %v1684
    %v1979 = vpack.c.b16 %v1692, %v1685
    %v1980 = vpack.c.b16 %v1693, %v1686
    %v1981 = vpack.c.b16 %v1694, %v1687
    %v1982 = vpack.c.b16 %v1695, %v1688
    %v1983 = vpack.c.b16 %v1696, %v1689
    %v1984 = vpack.c.b16 %v1697, %v1690
    %v1985 = vpack.c.b16 %v1705, %v1698
    %v1986 = vpack.c.b16 %v1706, %v1699
    %v1987 = vpack.c.b16 %v1707, %v1700
    %v1988 = vpack.c.b16 %v1708, %v1701
    %v1989 = vpack.c.b16 %v1709, %v1702
    %v1990 = vpack.c.b16 %v1710, %v1703
    %v1991 = vpack.c.b16 %v1711, %v1704
    %v1992 = vpack.c.b16 %v1719, %v1712
    %v1993 = vpack.c.b16 %v1720, %v1713
    %v1994 = vpack.c.b16 %v1721, %v1714
    %v1995 = vpack.c.b16 %v1722, %v1715
    %v1996 = vpack.c.b16 %v1723, %v1716
    %v1997 = vpack.c.b16 %v1724, %v1717
    %v1998 = vpack.c.b16 %v1725, %v1718
    %v1999 = vpack.c.b16 %v1733, %v1726
    %v2000 = vpack.c.b16 %v1734, %v1727
    %v2001 = vpack.c.b16 %v1735, %v1728
    %v2002 = vpack.c.b16 %v1736, %v1729
    %v2003 = vpack.c.b16 %v1737, %v1730
    %v2004 = vpack.c.b16 %v1738, %v1731
    %v2005 = vpack.c.b16 %v1739, %v1732
    %v2006 = vpack.c.b16 %v1747, %v1740
    %v2007 = vpack.c.b16 %v1748, %v1741
    %v2008 = vpack.c.b16 %v1749, %v1742
    %v2009 = vpack.c.b16 %v1750, %v1743
    %v2010 = vpack.c.b16 %v1751, %v1744
    %v2011 = vpack.c.b16 %v1752, %v1745
    %v2012 = vpack.c.b16 %v1753, %v1746
    %v2013 = vpack.c.b16 %v1761, %v1754
    %v2014 = vpack.c.b16 %v1762, %v1755
    %v2015 = vpack.c.b16 %v1763, %v1756
    %v2016 = vpack.c.b16 %v1764, %v1757
    %v2017 = vpack.c.b16 %v1765, %v1758
    %v2018 = vpack.c.b16 %v1766, %v1759
    %v2019 = vpack.c.b16 %v1767, %v1760
    %v2020 = vpack.c.b16 %v1775, %v1768
    %v2021 = vpack.c.b16 %v1776, %v1769
    %v2022 = vpack.c.b16 %v1777, %v1770
    %v2023 = vpack.c.b16 %v1778, %v1771
    %v2024 = vpack.c.b16 %v1779, %v1772
    %v2025 = vpack.c.b16 %v1780, %v1773
    %v2026 = vpack.c.b16 %v1781, %v1774
    %v2027 = vpack.c.b16 %v1789, %v1782
    %v2028 = vpack.c.b16 %v1790, %v1783
    %v2029 = vpack.c.b16 %v1791, %v1784
    %v2030 = vpack.c.b16 %v1792, %v1785
    %v2031 = vpack.c.b16 %v1793, %v1786
    %v2032 = vpack.c.b16 %v1794, %v1787
    %v2033 = vpack.c.b16 %v1795, %v1788
    %v2034 = vpack.c.b16 %v1803, %v1796
    %v2035 = vpack.c.b16 %v1804, %v1797
    %v2036 = vpack.c.b16 %v1805, %v1798
    %v2037 = vpack.c.b16 %v1806, %v1799
    %v2038 = vpack.c.b16 %v1807, %v1800
    %v2039 = vpack.c.b16 %v1808, %v1801
    %v2040 = vpack.c.b16 %v1809, %v1802
    %v2041 = vpack.c.b16 %v1817, %v1810
    %v2042 = vpack.c.b16 %v1818, %v1811
    %v2043 = vpack.c.b16 %v1819, %v1812
    %v2044 = vpack.c.b16 %v1820, %v1813
    %v2045 = vpack.c.b16 %v1821, %v1814
    %v2046 = vpack.c.b16 %v1822, %v1815
    %v2047 = vpack.c.b16 %v1823, %v1816
    %2272 = vmatprep.subr.bf16.mxu0 %v1825
    %2273 = vmatpush1.bf16.msra.mxu0 %v1824
    %2274 = vmatprep.subr.bf16.mxu0 %v1832
    %2275 = vmatpush1.bf16.msra.mxu0 %v1831
    %2276 = vmatprep.subr.bf16.mxu0 %v1839
    %2277 = vmatpush1.bf16.msra.mxu0 %v1838
    %2278 = vmatprep.subr.bf16.mxu0 %v1846
    %2279 = vmatpush1.bf16.msra.mxu0 %v1845
    %2280 = vmatprep.subr.bf16.mxu0 %v1853
    %2281 = vmatpush1.bf16.msra.mxu0 %v1852
    %2282 = vmatprep.subr.bf16.mxu0 %v1860
    %2283 = vmatpush1.bf16.msra.mxu0 %v1859
    %2284 = vmatprep.subr.bf16.mxu0 %v1867
    %2285 = vmatpush1.bf16.msra.mxu0 %v1866
    %2286 = vmatprep.subr.bf16.mxu0 %v1874
    %2287 = vmatpush1.bf16.msra.mxu0 %v1873
    %2288 = vmatprep.subr.bf16.mxu0 %v1881
    %2289 = vmatpush1.bf16.msra.mxu0 %v1880
    %2290 = vmatprep.subr.bf16.mxu0 %v1888
    %2291 = vmatpush1.bf16.msra.mxu0 %v1887
    %2292 = vmatprep.subr.bf16.mxu0 %v1895
    %2293 = vmatpush1.bf16.msra.mxu0 %v1894
    %2294 = vmatprep.subr.bf16.mxu0 %v1902
    %2295 = vmatpush1.bf16.msra.mxu0 %v1901
    %2296 = vmatprep.subr.bf16.mxu0 %v1909
    %2297 = vmatpush1.bf16.msra.mxu0 %v1908
    %2298 = vmatprep.subr.bf16.mxu0 %v1916
    %2299 = vmatpush1.bf16.msra.mxu0 %v1915
    %2300 = vmatprep.subr.bf16.mxu0 %v1923
    %2301 = vmatpush1.bf16.msra.mxu0 %v1922
    %2302 = vmatprep.subr.bf16.mxu0 %v1930
    %2303 = vmatpush1.bf16.msra.mxu0 %v1929
    %2304 = vmatprep.mubr.bf16.mxu0 %v861
    %2305 = vmatmul.mubr.bf16.gmra.mrb[0].mxu0 %v860
    %v2306 = vpop.f32.mrb[0].mxu0
    %v2307 = vadd.f32 0.0, %v2306
    %v2308 = vpop.f32.mrb[0].mxu0
    %v2309 = vadd.f32 0.0, %v2308
    %v2310 = vpop.f32.mrb[0].mxu0
    %v2311 = vpop.f32.mrb[0].mxu0
    %2312 = vdwg.mxu0
    %2313 = vmatprep.subr.bf16.mxu0 %v1937
    %2314 = vmatpush1.bf16.msra.mxu0 %v1936
    %2315 = vmatprep.subr.bf16.mxu0 %v1944
    %2316 = vmatpush1.bf16.msra.mxu0 %v1943
    %2317 = vmatprep.subr.bf16.mxu0 %v1951
    %2318 = vmatpush1.bf16.msra.mxu0 %v1950
    %2319 = vmatprep.subr.bf16.mxu0 %v1958
    %2320 = vmatpush1.bf16.msra.mxu0 %v1957
    %2321 = vmatprep.subr.bf16.mxu0 %v1965
    %2322 = vmatpush1.bf16.msra.mxu0 %v1964
    %2323 = vmatprep.subr.bf16.mxu0 %v1972
    %2324 = vmatpush1.bf16.msra.mxu0 %v1971
    %2325 = vmatprep.subr.bf16.mxu0 %v1979
    %2326 = vmatpush1.bf16.msra.mxu0 %v1978
    %2327 = vmatprep.subr.bf16.mxu0 %v1986
    %2328 = vmatpush1.bf16.msra.mxu0 %v1985
    %2329 = vmatprep.subr.bf16.mxu0 %v1993
    %2330 = vmatpush1.bf16.msra.mxu0 %v1992
    %2331 = vmatprep.subr.bf16.mxu0 %v2000
    %2332 = vmatpush1.bf16.msra.mxu0 %v1999
    %2333 = vmatprep.subr.bf16.mxu0 %v2007
    %2334 = vmatpush1.bf16.msra.mxu0 %v2006
    %2335 = vmatprep.subr.bf16.mxu0 %v2014
    %2336 = vmatpush1.bf16.msra.mxu0 %v2013
    %2337 = vmatprep.subr.bf16.mxu0 %v2021
    %2338 = vmatpush1.bf16.msra.mxu0 %v2020
    %2339 = vmatprep.subr.bf16.mxu0 %v2028
    %2340 = vmatpush1.bf16.msra.mxu0 %v2027
    %2341 = vmatprep.subr.bf16.mxu0 %v2035
    %2342 = vmatpush1.bf16.msra.mxu0 %v2034
    %2343 = vmatprep.subr.bf16.mxu0 %v2042
    %2344 = vmatpush1.bf16.msra.mxu0 %v2041
    %2345 = vmatprep.mubr.bf16.mxu0 %v863
    %2346 = vmatmul.mubr.bf16.gmra.mrb[0].mxu0 %v862
    %v2347 = vpop.f32.mrb[0].mxu0
    %v2348 = vadd.f32 %v2307, %v2347
    %v2349 = vpop.f32.mrb[0].mxu0
    %v2350 = vadd.f32 %v2309, %v2349
    %v2351 = vpop.f32.mrb[0].mxu0
    %v2352 = vpop.f32.mrb[0].mxu0
    %2353 = vdwg.mxu0
    %2354 = vmatprep.subr.bf16.mxu0 %v1827
    %2355 = vmatpush1.bf16.msra.mxu0 %v1826
    %2356 = vmatprep.subr.bf16.mxu0 %v1834
    %2357 = vmatpush1.bf16.msra.mxu0 %v1833
    %2358 = vmatprep.subr.bf16.mxu0 %v1841
    %2359 = vmatpush1.bf16.msra.mxu0 %v1840
    %2360 = vmatprep.subr.bf16.mxu0 %v1848
    %2361 = vmatpush1.bf16.msra.mxu0 %v1847
    %2362 = vmatprep.subr.bf16.mxu0 %v1855
    %2363 = vmatpush1.bf16.msra.mxu0 %v1854
    %2364 = vmatprep.subr.bf16.mxu0 %v1862
    %2365 = vmatpush1.bf16.msra.mxu0 %v1861
    %2366 = vmatprep.subr.bf16.mxu0 %v1869
    %2367 = vmatpush1.bf16.msra.mxu0 %v1868
    %2368 = vmatprep.subr.bf16.mxu0 %v1876
    %2369 = vmatpush1.bf16.msra.mxu0 %v1875
    %2370 = vmatprep.subr.bf16.mxu0 %v1883
    %2371 = vmatpush1.bf16.msra.mxu0 %v1882
    %2372 = vmatprep.subr.bf16.mxu0 %v1890
    %2373 = vmatpush1.bf16.msra.mxu0 %v1889
    %2374 = vmatprep.subr.bf16.mxu0 %v1897
    %2375 = vmatpush1.bf16.msra.mxu0 %v1896
    %2376 = vmatprep.subr.bf16.mxu0 %v1904
    %2377 = vmatpush1.bf16.msra.mxu0 %v1903
    %2378 = vmatprep.subr.bf16.mxu0 %v1911
    %2379 = vmatpush1.bf16.msra.mxu0 %v1910
    %2380 = vmatprep.subr.bf16.mxu0 %v1918
    %2381 = vmatpush1.bf16.msra.mxu0 %v1917
    %2382 = vmatprep.subr.bf16.mxu0 %v1925
    %2383 = vmatpush1.bf16.msra.mxu0 %v1924
    %2384 = vmatprep.subr.bf16.mxu0 %v1932
    %2385 = vmatpush1.bf16.msra.mxu0 %v1931
    %2386 = vmatprep.mubr.bf16.mxu0 %v861
    %2387 = vmatmul.mubr.bf16.gmra.mrb[0].mxu0 %v860
    %v2388 = vpop.f32.mrb[0].mxu0
    %v2389 = vadd.f32 0.0, %v2388
    %v2390 = vpop.f32.mrb[0].mxu0
    %v2391 = vadd.f32 0.0, %v2390
    %v2392 = vpop.f32.mrb[0].mxu0
    %v2393 = vpop.f32.mrb[0].mxu0
    %2394 = vdwg.mxu0
    %2395 = vmatprep.subr.bf16.mxu0 %v1939
    %2396 = vmatpush1.bf16.msra.mxu0 %v1938
    %2397 = vmatprep.subr.bf16.mxu0 %v1946
    %2398 = vmatpush1.bf16.msra.mxu0 %v1945
    %2399 = vmatprep.subr.bf16.mxu0 %v1953
    %2400 = vmatpush1.bf16.msra.mxu0 %v1952
    %2401 = vmatprep.subr.bf16.mxu0 %v1960
    %2402 = vmatpush1.bf16.msra.mxu0 %v1959
    %2403 = vmatprep.subr.bf16.mxu0 %v1967
    %2404 = vmatpush1.bf16.msra.mxu0 %v1966
    %2405 = vmatprep.subr.bf16.mxu0 %v1974
    %2406 = vmatpush1.bf16.msra.mxu0 %v1973
    %2407 = vmatprep.subr.bf16.mxu0 %v1981
    %2408 = vmatpush1.bf16.msra.mxu0 %v1980
    %2409 = vmatprep.subr.bf16.mxu0 %v1988
    %2410 = vmatpush1.bf16.msra.mxu0 %v1987
    %2411 = vmatprep.subr.bf16.mxu0 %v1995
    %2412 = vmatpush1.bf16.msra.mxu0 %v1994
    %2413 = vmatprep.subr.bf16.mxu0 %v2002
    %2414 = vmatpush1.bf16.msra.mxu0 %v2001
    %2415 = vmatprep.subr.bf16.mxu0 %v2009
    %2416 = vmatpush1.bf16.msra.mxu0 %v2008
    %2417 = vmatprep.subr.bf16.mxu0 %v2016
    %2418 = vmatpush1.bf16.msra.mxu0 %v2015
    %2419 = vmatprep.subr.bf16.mxu0 %v2023
    %2420 = vmatpush1.bf16.msra.mxu0 %v2022
    %2421 = vmatprep.subr.bf16.mxu0 %v2030
    %2422 = vmatpush1.bf16.msra.mxu0 %v2029
    %2423 = vmatprep.subr.bf16.mxu0 %v2037
    %2424 = vmatpush1.bf16.msra.mxu0 %v2036
    %2425 = vmatprep.subr.bf16.mxu0 %v2044
    %2426 = vmatpush1.bf16.msra.mxu0 %v2043
    %2427 = vmatprep.mubr.bf16.mxu0 %v863
    %2428 = vmatmul.mubr.bf16.gmra.mrb[0].mxu0 %v862
    %v2429 = vpop.f32.mrb[0].mxu0
    %v2430 = vadd.f32 %v2389, %v2429
    %v2431 = vpop.f32.mrb[0].mxu0
    %v2432 = vadd.f32 %v2391, %v2431
    %v2433 = vpop.f32.mrb[0].mxu0
    %v2434 = vpop.f32.mrb[0].mxu0
    %2435 = vdwg.mxu0
    %2436 = vmatprep.subr.bf16.mxu0 %v1829
    %2437 = vmatpush1.bf16.msra.mxu0 %v1828
    %2438 = vmatprep.subr.bf16.mxu0 %v1836
    %2439 = vmatpush1.bf16.msra.mxu0 %v1835
    %2440 = vmatprep.subr.bf16.mxu0 %v1843
    %2441 = vmatpush1.bf16.msra.mxu0 %v1842
    %2442 = vmatprep.subr.bf16.mxu0 %v1850
    %2443 = vmatpush1.bf16.msra.mxu0 %v1849
    %2444 = vmatprep.subr.bf16.mxu0 %v1857
    %2445 = vmatpush1.bf16.msra.mxu0 %v1856
    %2446 = vmatprep.subr.bf16.mxu0 %v1864
    %2447 = vmatpush1.bf16.msra.mxu0 %v1863
    %2448 = vmatprep.subr.bf16.mxu0 %v1871
    %2449 = vmatpush1.bf16.msra.mxu0 %v1870
    %2450 = vmatprep.subr.bf16.mxu0 %v1878
    %2451 = vmatpush1.bf16.msra.mxu0 %v1877
    %2452 = vmatprep.subr.bf16.mxu0 %v1885
    %2453 = vmatpush1.bf16.msra.mxu0 %v1884
    %2454 = vmatprep.subr.bf16.mxu0 %v1892
    %2455 = vmatpush1.bf16.msra.mxu0 %v1891
    %2456 = vmatprep.subr.bf16.mxu0 %v1899
    %2457 = vmatpush1.bf16.msra.mxu0 %v1898
    %2458 = vmatprep.subr.bf16.mxu0 %v1906
    %2459 = vmatpush1.bf16.msra.mxu0 %v1905
    %2460 = vmatprep.subr.bf16.mxu0 %v1913
    %2461 = vmatpush1.bf16.msra.mxu0 %v1912
    %2462 = vmatprep.subr.bf16.mxu0 %v1920
    %2463 = vmatpush1.bf16.msra.mxu0 %v1919
    %2464 = vmatprep.subr.bf16.mxu0 %v1927
    %2465 = vmatpush1.bf16.msra.mxu0 %v1926
    %2466 = vmatprep.subr.bf16.mxu0 %v1934
    %2467 = vmatpush1.bf16.msra.mxu0 %v1933
    %2468 = vmatprep.mubr.bf16.mxu0 %v861
    %2469 = vmatmul.mubr.bf16.gmra.mrb[0].mxu0 %v860
    %v2470 = vpop.f32.mrb[0].mxu0
    %v2471 = vadd.f32 0.0, %v2470
    %v2472 = vpop.f32.mrb[0].mxu0
    %v2473 = vadd.f32 0.0, %v2472
    %v2474 = vpop.f32.mrb[0].mxu0
    %v2475 = vpop.f32.mrb[0].mxu0
    %2476 = vdwg.mxu0
    %2477 = vmatprep.subr.bf16.mxu0 %v1941
    %2478 = vmatpush1.bf16.msra.mxu0 %v1940
    %2479 = vmatprep.subr.bf16.mxu0 %v1948
    %2480 = vmatpush1.bf16.msra.mxu0 %v1947
    %2481 = vmatprep.subr.bf16.mxu0 %v1955
    %2482 = vmatpush1.bf16.msra.mxu0 %v1954
    %2483 = vmatprep.subr.bf16.mxu0 %v1962
    %2484 = vmatpush1.bf16.msra.mxu0 %v1961
    %2485 = vmatprep.subr.bf16.mxu0 %v1969
    %2486 = vmatpush1.bf16.msra.mxu0 %v1968
    %2487 = vmatprep.subr.bf16.mxu0 %v1976
    %2488 = vmatpush1.bf16.msra.mxu0 %v1975
    %2489 = vmatprep.subr.bf16.mxu0 %v1983
    %2490 = vmatpush1.bf16.msra.mxu0 %v1982
    %2491 = vmatprep.subr.bf16.mxu0 %v1990
    %2492 = vmatpush1.bf16.msra.mxu0 %v1989
    %2493 = vmatprep.subr.bf16.mxu0 %v1997
    %2494 = vmatpush1.bf16.msra.mxu0 %v1996
    %2495 = vmatprep.subr.bf16.mxu0 %v2004
    %2496 = vmatpush1.bf16.msra.mxu0 %v2003
    %2497 = vmatprep.subr.bf16.mxu0 %v2011
    %2498 = vmatpush1.bf16.msra.mxu0 %v2010
    %2499 = vmatprep.subr.bf16.mxu0 %v2018
    %2500 = vmatpush1.bf16.msra.mxu0 %v2017
    %2501 = vmatprep.subr.bf16.mxu0 %v2025
    %2502 = vmatpush1.bf16.msra.mxu0 %v2024
    %2503 = vmatprep.subr.bf16.mxu0 %v2032
    %2504 = vmatpush1.bf16.msra.mxu0 %v2031
    %2505 = vmatprep.subr.bf16.mxu0 %v2039
    %2506 = vmatpush1.bf16.msra.mxu0 %v2038
    %2507 = vmatprep.subr.bf16.mxu0 %v2046
    %2508 = vmatpush1.bf16.msra.mxu0 %v2045
    %2509 = vmatprep.mubr.bf16.mxu0 %v863
    %2510 = vmatmul.mubr.bf16.gmra.mrb[0].mxu0 %v862
    %v2511 = vpop.f32.mrb[0].mxu0
    %v2512 = vadd.f32 %v2471, %v2511
    %v2513 = vpop.f32.mrb[0].mxu0
    %v2514 = vadd.f32 %v2473, %v2513
    %v2515 = vpop.f32.mrb[0].mxu0
    %v2516 = vpop.f32.mrb[0].mxu0
    %2517 = vdwg.mxu0
    %2518 = vmatprep.subr.bf16.mxu0 0
    %2519 = vmatpush1.bf16.msra.mxu0 %v1830
    %2520 = vmatprep.subr.bf16.mxu0 0
    %2521 = vmatpush1.bf16.msra.mxu0 %v1837
    %2522 = vmatprep.subr.bf16.mxu0 0
    %2523 = vmatpush1.bf16.msra.mxu0 %v1844
    %2524 = vmatprep.subr.bf16.mxu0 0
    %2525 = vmatpush1.bf16.msra.mxu0 %v1851
    %2526 = vmatprep.subr.bf16.mxu0 0
    %2527 = vmatpush1.bf16.msra.mxu0 %v1858
    %2528 = vmatprep.subr.bf16.mxu0 0
    %2529 = vmatpush1.bf16.msra.mxu0 %v1865
    %2530 = vmatprep.subr.bf16.mxu0 0
    %2531 = vmatpush1.bf16.msra.mxu0 %v1872
    %2532 = vmatprep.subr.bf16.mxu0 0
    %2533 = vmatpush1.bf16.msra.mxu0 %v1879
    %2534 = vmatprep.subr.bf16.mxu0 0
    %2535 = vmatpush1.bf16.msra.mxu0 %v1886
    %2536 = vmatprep.subr.bf16.mxu0 0
    %2537 = vmatpush1.bf16.msra.mxu0 %v1893
    %2538 = vmatprep.subr.bf16.mxu0 0
    %2539 = vmatpush1.bf16.msra.mxu0 %v1900
    %2540 = vmatprep.subr.bf16.mxu0 0
    %2541 = vmatpush1.bf16.msra.mxu0 %v1907
    %2542 = vmatprep.subr.bf16.mxu0 0
    %2543 = vmatpush1.bf16.msra.mxu0 %v1914
    %2544 = vmatprep.subr.bf16.mxu0 0
    %2545 = vmatpush1.bf16.msra.mxu0 %v1921
    %2546 = vmatprep.subr.bf16.mxu0 0
    %2547 = vmatpush1.bf16.msra.mxu0 %v1928
    %2548 = vmatprep.subr.bf16.mxu0 0
    %2549 = vmatpush1.bf16.msra.mxu0 %v1935
    %2550 = vmatprep.mubr.bf16.mxu0 %v861
    %2551 = vmatmul.mubr.bf16.gmra.mrb[0].mxu0 %v860
    %v2552 = vpop.f32.mrb[0].mxu0
    %v2553 = vadd.f32 0.0, %v2552
    %v2554 = vpop.f32.mrb[0].mxu0
    %v2555 = vpop.f32.mrb[0].mxu0
    %v2556 = vpop.f32.mrb[0].mxu0
    %2557 = vdwg.mxu0
    %2558 = vmatprep.subr.bf16.mxu0 0
    %2559 = vmatpush1.bf16.msra.mxu0 %v1942
    %2560 = vmatprep.subr.bf16.mxu0 0
    %2561 = vmatpush1.bf16.msra.mxu0 %v1949
    %2562 = vmatprep.subr.bf16.mxu0 0
    %2563 = vmatpush1.bf16.msra.mxu0 %v1956
    %2564 = vmatprep.subr.bf16.mxu0 0
    %2565 = vmatpush1.bf16.msra.mxu0 %v1963
    %2566 = vmatprep.subr.bf16.mxu0 0
    %2567 = vmatpush1.bf16.msra.mxu0 %v1970
    %2568 = vmatprep.subr.bf16.mxu0 0
    %2569 = vmatpush1.bf16.msra.mxu0 %v1977
    %2570 = vmatprep.subr.bf16.mxu0 0
    %2571 = vmatpush1.bf16.msra.mxu0 %v1984
    %2572 = vmatprep.subr.bf16.mxu0 0
    %2573 = vmatpush1.bf16.msra.mxu0 %v1991
    %2574 = vmatprep.subr.bf16.mxu0 0
    %2575 = vmatpush1.bf16.msra.mxu0 %v1998
    %2576 = vmatprep.subr.bf16.mxu0 0
    %2577 = vmatpush1.bf16.msra.mxu0 %v2005
    %2578 = vmatprep.subr.bf16.mxu0 0
    %2579 = vmatpush1.bf16.msra.mxu0 %v2012
    %2580 = vmatprep.subr.bf16.mxu0 0
    %2581 = vmatpush1.bf16.msra.mxu0 %v2019
    %2582 = vmatprep.subr.bf16.mxu0 0
    %2583 = vmatpush1.bf16.msra.mxu0 %v2026
    %2584 = vmatprep.subr.bf16.mxu0 0
    %2585 = vmatpush1.bf16.msra.mxu0 %v2033
    %2586 = vmatprep.subr.bf16.mxu0 0
    %2587 = vmatpush1.bf16.msra.mxu0 %v2040
    %2588 = vmatprep.subr.bf16.mxu0 0
    %2589 = vmatpush1.bf16.msra.mxu0 %v2047
    %2590 = vmatprep.mubr.bf16.mxu0 %v863
    %2591 = vmatmul.mubr.bf16.gmra.mrb[0].mxu0 %v862
    %v2592 = vpop.f32.mrb[0].mxu0
    %v2593 = vadd.f32 %v2553, %v2592
    %v2594 = vpop.f32.mrb[0].mxu0
    %v2595 = vpop.f32.mrb[0].mxu0
    %v2596 = vpop.f32.mrb[0].mxu0
    %2597 = vdwg.mxu0
    %v2598 = vld [vmem:[%s8] sm:$0x7f]
    %v2600 = vlaneseq
    %v2601 = vshrl.u32 %v2600, 7
    %v2602 = vsub.s32 0, %v2601
    %v2603 = vrot.slane %v2598, %v2602
    %v2604 = vlaneseq
    %v2605 = vshrl.u32 %v2604, 7
    %v2606 = vsub.s32 1, %v2605
    %v2607 = vrot.slane %v2598, %v2606
    %v2608 = vlaneseq
    %v2609 = vshrl.u32 %v2608, 7
    %v2610 = vsub.s32 2, %v2609
    %v2611 = vrot.slane %v2598, %v2610
    %v2612 = vlaneseq
    %v2613 = vshrl.u32 %v2612, 7
    %v2614 = vsub.s32 3, %v2613
    %v2615 = vrot.slane %v2598, %v2614
    %v2616 = vlaneseq
    %v2617 = vshrl.u32 %v2616, 7
    %v2618 = vsub.s32 4, %v2617
    %v2619 = vrot.slane %v2598, %v2618
    %v2620 = vlaneseq
    %v2621 = vshrl.u32 %v2620, 7
    %v2622 = vsub.s32 5, %v2621
    %v2623 = vrot.slane %v2598, %v2622
    %v2624 = vlaneseq
    %v2625 = vshrl.u32 %v2624, 7
    %v2626 = vsub.s32 6, %v2625
    %v2627 = vrot.slane %v2598, %v2626
    %v2635 = vadd.f32 %v2348, %v2603
    %v2636 = vadd.f32 %v2350, %v2607
    %v2637 = vadd.f32 %v2430, %v2611
    %v2638 = vadd.f32 %v2432, %v2615
    %v2639 = vadd.f32 %v2512, %v2619
    %v2640 = vadd.f32 %v2514, %v2623
    %v2641 = vadd.f32 %v2593, %v2627
    %v2642 = vtanh.pop %v2635
    %v2643 = vtanh.pop %v2636
    %v2644 = vtanh.pop %v2637
    %v2645 = vtanh.pop %v2638
    %v2646 = vtanh.pop %v2639
    %v2647 = vtanh.pop %v2640
    %v2648 = vtanh.pop %v2641
    %2649 = vst [vmem:[#allocation11] sm:$0xff] %v2642
    %2650 = vst [vmem:[#allocation11 + $0x8] sm:$0xff] %v2643
    %2651 = vst [vmem:[#allocation11 + $0x10] sm:$0xff] %v2644
    %2652 = vst [vmem:[#allocation11 + $0x18] sm:$0xff] %v2645
    %2653 = vst [vmem:[#allocation11 + $0x20] sm:$0xff] %v2646
    %2654 = vst [vmem:[#allocation11 + $0x28] sm:$0xff] %v2647
    %vm2655 = vcmask 130048
    %2656 = vst.msk [vmem:[#allocation11 + $0x30] sm:$0xff] %vm2655, %v2648
    // Predicated region
    $region58: #{tpu_custom_call.1} parent=1 // pred_check
      _
    $region59: #{tpu_custom_call.1} parent=1 // pred_check_branch
      %2658 = sbr.rel (0) target = $region61
    $region60: #{tpu_custom_call.1} parent=1 // pred_region
      %s2660 = ssub.s32 896, 896
      %2661 = vsyncadd [#allocation4], %s2660
      %s2663 = sshll.u32 [#allocation11], 4
      %s2664 = int_to_ptr.vmem [resolvable:$true] %s2663
      %2666 = dma.vmem_to_hbm [thread:$0]  %s2664, 896, %s9, [#allocation4]
    $region61: #{tpu_custom_call.1} parent=1 // pred_fallthru
      _
    // Predicated region
    $region62: #{tpu_custom_call.1} parent=1 // pred_check
      _
    $region63: #{tpu_custom_call.1} parent=1 // pred_check_branch
      %2668 = sbr.rel (0) target = $region65
    $region64: #{tpu_custom_call.1} parent=1 // pred_region
      %2669 = dma.done [#allocation4], 896
    $region65: #{tpu_custom_call.1} parent=1 // pred_fallthru
      _
    %2670 = vsyncpa [#allocation3], 1
    %2671 = vsyncpa [#allocation6], 1
    %2672 = vsyncpa [#allocation9], 1
    %2673 = vsyncpa [#allocation4], 1

</llo_original>
